<compile_context>
chip_gen: v6e
topology: v6e:2x2x1
jax: 0.10.0
libtpu: 0.0.40
codegen_flags: <defaults>
</compile_context>

<pallas_src>
import functools

import jax
import jax.numpy as jnp
from jax.experimental import pallas as pl
from jax.experimental.pallas import tpu as pltpu

_MAX_BATCH_TILE = 1024  # keeps per-step activations comfortably inside VMEM


# ----------------------------------------------------------------------------
# Kernel
# ----------------------------------------------------------------------------
def generator_kernel(x_ref,
                     w1_ref, b1_ref,
                     w2_ref, b2_ref,
                     w3_ref, b3_ref,
                     w4_ref, b4_ref,
                     o_ref, *, bf16_elementwise):
    def leaky_then_bf16(h_f32):
        # h_f32: f32 MXU accumulator + f32 bias.
        if bf16_elementwise:
            hb = h_f32.astype(jnp.bfloat16)          # bf16 VPU path (v6e/v7x)
            return jnp.where(hb > 0, hb, 0.2 * hb)
        h = jnp.where(h_f32 > 0, h_f32, 0.2 * h_f32)  # f32 VPU path (v5e)
        return h.astype(jnp.bfloat16)

    x = x_ref[...].astype(jnp.bfloat16)               # in-kernel cast, hidden under MXU

    h = leaky_then_bf16(
        jnp.dot(x, w1_ref[...], preferred_element_type=jnp.float32) + b1_ref[...])
    h = leaky_then_bf16(
        jnp.dot(h, w2_ref[...], preferred_element_type=jnp.float32) + b2_ref[...])
    h = leaky_then_bf16(
        jnp.dot(h, w3_ref[...], preferred_element_type=jnp.float32) + b3_ref[...])
    h = jnp.dot(h, w4_ref[...], preferred_element_type=jnp.float32) + b4_ref[...]
    o_ref[...] = jnp.tanh(h).astype(o_ref.dtype)


# ----------------------------------------------------------------------------
# Host-side helpers
# ----------------------------------------------------------------------------
def _tpu_generation():
    """Best-effort TPU generation from device_kind; None if unknown."""
    try:
        kind = jax.devices()[0].device_kind.lower()
    except Exception:
        return None
    for gen in (7, 6, 5, 4, 3, 2):
        if f"v{gen}" in kind or f"tpu{gen}" in kind or f"tpu {gen}" in kind:
            return gen
    return None


def _default_num_tiles():
    # v7x has 2 TensorCores per chip; v5e/v6e have 1.
    return 2 if _tpu_generation() == 7 else 1


def _default_bf16_elementwise():
    gen = _tpu_generation()
    return (gen is None) or (gen >= 6)   # v5e has no bf16 VPU path


def _choose_batch_tile(B, num_tiles, batch_tile=None):
    """Return (tb, num_steps, padded_B); tb is full-dim or a multiple of 16."""
    if batch_tile is None:
        batch_tile = -(-B // num_tiles)          # ceil(B / num_tiles)
    batch_tile = min(batch_tile, _MAX_BATCH_TILE)
    if batch_tile >= B:
        return B, 1, B                            # single block == full dim: legal
    tb = ((batch_tile + 15) // 16) * 16           # sublane-legal for f32 and bf16
    steps = -(-B // tb)
    return tb, steps, steps * tb


def prepare_generator_params(params):
    """One-time conversion (do NOT call per forward): bf16 weights, f32 [1,out] biases."""
    prepared = {}
    for layer in range(1, 5):
        prepared[f"w{layer}"] = params[f"w{layer}"].astype(jnp.bfloat16)
        prepared[f"b{layer}"] = params[f"b{layer}"].reshape(1, -1).astype(jnp.float32)
    return prepared


def generator_forward(x, prepared_params, *, out_dtype=jnp.bfloat16,
                      batch_tile=None, num_tiles=None, bf16_elementwise=None):
    """x: [B, input_size] f32. prepared_params: output of prepare_generator_params."""
    B, in_dim = x.shape
    w1, b1 = prepared_params["w1"], prepared_params["b1"]
    w2, b2 = prepared_params["w2"], prepared_params["b2"]
    w3, b3 = prepared_params["w3"], prepared_params["b3"]
    w4, b4 = prepared_params["w4"], prepared_params["b4"]
    out_dim = w4.shape[1]

    if num_tiles is None:
        num_tiles = _default_num_tiles()
    if bf16_elementwise is None:
        bf16_elementwise = _default_bf16_elementwise()

    tb, steps, b_pad = _choose_batch_tile(B, num_tiles, batch_tile)
    x_in = x if b_pad == B else jnp.pad(x, ((0, b_pad - B), (0, 0)))

    # Cost estimate so XLA can schedule/overlap around the custom call.
    dims = [in_dim, w1.shape[1], w2.shape[1], w3.shape[1], out_dim]
    flops = 2 * b_pad * sum(dims[i] * dims[i + 1] for i in range(4))
    bytes_accessed = (
        b_pad * in_dim * 4                                            # x (f32)
        + sum(int(w.size) for w in (w1, w2, w3, w4)) * 2              # weights (bf16)
        + sum(int(b.size) for b in (b1, b2, b3, b4)) * 4              # biases (f32)
        + b_pad * out_dim * jnp.dtype(out_dtype).itemsize             # output
    )
    cost = pl.CostEstimate(flops=flops,
                           transcendentals=b_pad * out_dim,           # tanh
                           bytes_accessed=bytes_accessed)

    # Weights / biases: whole arrays resident in VMEM (constant operands,
    # single copy, no per-step DMA or double buffering).
    vmem_spec = pl.BlockSpec(memory_space=pltpu.MemorySpace.VMEM)

    kernel = functools.partial(generator_kernel, bf16_elementwise=bf16_elementwise)

    out = pl.pallas_call(
        kernel,
        out_shape=jax.ShapeDtypeStruct((b_pad, out_dim), out_dtype),
        grid_spec=pltpu.PrefetchScalarGridSpec(
            num_scalar_prefetch=0,
            grid=(steps,),
            in_specs=[
                pl.BlockSpec((tb, in_dim), lambda i: (i, 0)),   # x tile (f32)
                vmem_spec, vmem_spec,   # w1, b1
                vmem_spec, vmem_spec,   # w2, b2
                vmem_spec, vmem_spec,   # w3, b3
                vmem_spec, vmem_spec,   # w4, b4
            ],
            out_specs=pl.BlockSpec((tb, out_dim), lambda i: (i, 0)),
        ),
        compiler_params=pltpu.CompilerParams(
            dimension_semantics=("parallel",)),
        cost_estimate=cost,
    )(x_in, w1, b1, w2, b2, w3, b3, w4, b4)

    return out if b_pad == B else out[:B]


# ----------------------------------------------------------------------------
# Init + references
# ----------------------------------------------------------------------------
def init_generator_params(key, input_size, output_size):
    """PyTorch nn.Linear-style init (U[-1/sqrt(in), 1/sqrt(in)]); W stored [in, out]."""
    dims = [input_size, 256, 512, 1024, output_size]
    params = {}
    for layer in range(4):
        fan_in, fan_out = dims[layer], dims[layer + 1]
        key, kw, kb = jax.random.split(key, 3)
        bound = 1.0 / (fan_in ** 0.5)
        params[f"w{layer+1}"] = jax.random.uniform(
            kw, (fan_in, fan_out), jnp.float32, minval=-bound, maxval=bound)
        params[f"b{layer+1}"] = jax.random.uniform(
            kb, (fan_out,), jnp.float32, minval=-bound, maxval=bound)
    return params


def generator_reference_f32(x, params):
    """Pure-f32 PyTorch-equivalent math."""
    h = x
    for layer in range(1, 4):
        h = h @ params[f"w{layer}"] + params[f"b{layer}"]
        h = jnp.where(h > 0, h, 0.2 * h)
    h = h @ params["w4"] + params["b4"]
    return jnp.tanh(h)


def generator_reference_mixed(x, params, *, bf16_elementwise=True):
    """Mirrors the kernel numerics: bf16 matmul operands, f32 accumulation."""
    h = x.astype(jnp.bfloat16)
    for layer in range(1, 4):
        w = params[f"w{layer}"].astype(jnp.bfloat16)
        hf = jnp.dot(h, w, preferred_element_type=jnp.float32) \
            + params[f"b{layer}"].reshape(1, -1)
        if bf16_elementwise:
            hb = hf.astype(jnp.bfloat16)
            h = jnp.where(hb > 0, hb, 0.2 * hb)
        else:
            h = jnp.where(hf > 0, hf, 0.2 * hf).astype(jnp.bfloat16)
    w4 = params["w4"].astype(jnp.bfloat16)
    hf = jnp.dot(h, w4, preferred_element_type=jnp.float32) + params["b4"].reshape(1, -1)
    return jnp.tanh(hf)


# ----------------------------------------------------------------------------
# Demo / self-check
# ----------------------------------------------------------------------------
if __name__ == "__main__":
    key = jax.random.PRNGKey(0)
    key, kx = jax.random.split(key)

    batch = 32           # small demo batch
    input_size = 64      # latent dimension
    output_size = 128    # generated sample dimension

    params = init_generator_params(key, input_size, output_size)
    prepared = prepare_generator_params(params)   # one-time weight cast (hoisted)
    x = jax.random.normal(kx, (batch, input_size), jnp.float32)

    bf16_ew = _default_bf16_elementwise()
    out = generator_forward(x, prepared, bf16_elementwise=bf16_ew)
    out = jax.block_until_ready(out)
    out_f32 = out.astype(jnp.float32)

    ref_mixed = generator_reference_mixed(x, params, bf16_elementwise=bf16_ew)
    ref_f32 = generator_reference_f32(x, params)

    assert out.shape == (batch, output_size)
    assert out.dtype == jnp.bfloat16
    # Tight check vs. a reference with identical bf16/f32 mixed precision
    # (tolerance covers the bf16 output quantization of the kernel).
    assert jnp.allclose(out_f32, ref_mixed, atol=1e-2, rtol=1e-2)
    # Loose sanity check vs. the pure-f32 PyTorch-equivalent math.
    assert jnp.allclose(out_f32, ref_f32, atol=5e-2, rtol=5e-2)

    print("KERNEL_OK")
</pallas_src>

<mosaic_0001>
module attributes {stable_mosaic.version = 11 : i64} {
  func.func @generator_kernel(%arg0: i32, %arg1: memref<32x64xf32, #tpu.memory_space<vmem>>, %arg2: memref<64x256xbf16, #tpu.memory_space<vmem>>, %arg3: memref<1x256xf32, #tpu.memory_space<vmem>>, %arg4: memref<256x512xbf16, #tpu.memory_space<vmem>>, %arg5: memref<1x512xf32, #tpu.memory_space<vmem>>, %arg6: memref<512x1024xbf16, #tpu.memory_space<vmem>>, %arg7: memref<1x1024xf32, #tpu.memory_space<vmem>>, %arg8: memref<1024x128xbf16, #tpu.memory_space<vmem>>, %arg9: memref<1x128xf32, #tpu.memory_space<vmem>>, %arg10: memref<32x128xbf16, #tpu.memory_space<vmem>>) attributes {dimension_semantics = [#tpu.dimension_semantics<parallel>], iteration_bounds = array<i64: 1>, scalar_prefetch = 0 : i64, scratch_operands = 0 : i64, tpu.core_type = #tpu.core_type<tc>, window_params = [{transform_indices = @transform_0, window_bounds = array<i64: 32, 64>}, {pipeline_mode = #tpu.pipeline_mode<synchronous>, transform_indices = @transform_1, window_bounds = array<i64: 64, 256>}, {pipeline_mode = #tpu.pipeline_mode<synchronous>, transform_indices = @transform_2, window_bounds = array<i64: 1, 256>}, {pipeline_mode = #tpu.pipeline_mode<synchronous>, transform_indices = @transform_3, window_bounds = array<i64: 256, 512>}, {pipeline_mode = #tpu.pipeline_mode<synchronous>, transform_indices = @transform_4, window_bounds = array<i64: 1, 512>}, {pipeline_mode = #tpu.pipeline_mode<synchronous>, transform_indices = @transform_5, window_bounds = array<i64: 512, 1024>}, {pipeline_mode = #tpu.pipeline_mode<synchronous>, transform_indices = @transform_6, window_bounds = array<i64: 1, 1024>}, {pipeline_mode = #tpu.pipeline_mode<synchronous>, transform_indices = @transform_7, window_bounds = array<i64: 1024, 128>}, {pipeline_mode = #tpu.pipeline_mode<synchronous>, transform_indices = @transform_8, window_bounds = array<i64: 1, 128>}, {transform_indices = @transform_9, window_bounds = array<i64: 32, 128>}]} {
    %c0 = arith.constant 0 : index
    %c0_0 = arith.constant 0 : index
    %0 = vector.load %arg1[%c0, %c0_0] : memref<32x64xf32, #tpu.memory_space<vmem>>, vector<32x64xf32>
    %1 = arith.truncf %0 : vector<32x64xf32> to vector<32x64xbf16>
    %c0_1 = arith.constant 0 : index
    %c0_2 = arith.constant 0 : index
    %2 = vector.load %arg2[%c0_1, %c0_2] : memref<64x256xbf16, #tpu.memory_space<vmem>>, vector<64x256xbf16>
    %cst = arith.constant dense<0.000000e+00> : vector<32x256xf32>
    %3 = tpu.matmul %1, %2, %cst {dimension_numbers = #tpu.dot_dimension_numbers<[1], [0], [0], [1], [0, 0, 1, 1], [], []>} : vector<32x64xbf16>, vector<64x256xbf16>, vector<32x256xf32> -> vector<32x256xf32>
    %c0_3 = arith.constant 0 : index
    %c0_4 = arith.constant 0 : index
    %4 = vector.load %arg3[%c0_3, %c0_4] : memref<1x256xf32, #tpu.memory_space<vmem>>, vector<1x256xf32>
    %5 = vector.broadcast %4 : vector<1x256xf32> to vector<32x256xf32>
    %6 = arith.addf %3, %5 : vector<32x256xf32>
    %7 = arith.truncf %6 : vector<32x256xf32> to vector<32x256xbf16>
    %cst_5 = arith.constant 0.000000e+00 : bf16
    %8 = vector.broadcast %cst_5 : bf16 to vector<32x256xbf16>
    %9 = arith.cmpf ogt, %7, %8 : vector<32x256xbf16>
    %cst_6 = arith.constant 2.001950e-01 : bf16
    %10 = vector.broadcast %cst_6 : bf16 to vector<32x256xbf16>
    %11 = arith.mulf %10, %7 : vector<32x256xbf16>
    %12 = arith.select %9, %7, %11 : vector<32x256xi1>, vector<32x256xbf16>
    %c0_7 = arith.constant 0 : index
    %c0_8 = arith.constant 0 : index
    %13 = vector.load %arg4[%c0_7, %c0_8] : memref<256x512xbf16, #tpu.memory_space<vmem>>, vector<256x512xbf16>
    %cst_9 = arith.constant dense<0.000000e+00> : vector<32x512xf32>
    %14 = tpu.matmul %12, %13, %cst_9 {dimension_numbers = #tpu.dot_dimension_numbers<[1], [0], [0], [1], [0, 0, 1, 1], [], []>} : vector<32x256xbf16>, vector<256x512xbf16>, vector<32x512xf32> -> vector<32x512xf32>
    %c0_10 = arith.constant 0 : index
    %c0_11 = arith.constant 0 : index
    %15 = vector.load %arg5[%c0_10, %c0_11] : memref<1x512xf32, #tpu.memory_space<vmem>>, vector<1x512xf32>
    %16 = vector.broadcast %15 : vector<1x512xf32> to vector<32x512xf32>
    %17 = arith.addf %14, %16 : vector<32x512xf32>
    %18 = arith.truncf %17 : vector<32x512xf32> to vector<32x512xbf16>
    %cst_12 = arith.constant 0.000000e+00 : bf16
    %19 = vector.broadcast %cst_12 : bf16 to vector<32x512xbf16>
    %20 = arith.cmpf ogt, %18, %19 : vector<32x512xbf16>
    %cst_13 = arith.constant 2.001950e-01 : bf16
    %21 = vector.broadcast %cst_13 : bf16 to vector<32x512xbf16>
    %22 = arith.mulf %21, %18 : vector<32x512xbf16>
    %23 = arith.select %20, %18, %22 : vector<32x512xi1>, vector<32x512xbf16>
    %c0_14 = arith.constant 0 : index
    %c0_15 = arith.constant 0 : index
    %24 = vector.load %arg6[%c0_14, %c0_15] : memref<512x1024xbf16, #tpu.memory_space<vmem>>, vector<512x1024xbf16>
    %cst_16 = arith.constant dense<0.000000e+00> : vector<32x1024xf32>
    %25 = tpu.matmul %23, %24, %cst_16 {dimension_numbers = #tpu.dot_dimension_numbers<[1], [0], [0], [1], [0, 0, 1, 1], [], []>} : vector<32x512xbf16>, vector<512x1024xbf16>, vector<32x1024xf32> -> vector<32x1024xf32>
    %c0_17 = arith.constant 0 : index
    %c0_18 = arith.constant 0 : index
    %26 = vector.load %arg7[%c0_17, %c0_18] : memref<1x1024xf32, #tpu.memory_space<vmem>>, vector<1x1024xf32>
    %27 = vector.broadcast %26 : vector<1x1024xf32> to vector<32x1024xf32>
    %28 = arith.addf %25, %27 : vector<32x1024xf32>
    %29 = arith.truncf %28 : vector<32x1024xf32> to vector<32x1024xbf16>
    %cst_19 = arith.constant 0.000000e+00 : bf16
    %30 = vector.broadcast %cst_19 : bf16 to vector<32x1024xbf16>
    %31 = arith.cmpf ogt, %29, %30 : vector<32x1024xbf16>
    %cst_20 = arith.constant 2.001950e-01 : bf16
    %32 = vector.broadcast %cst_20 : bf16 to vector<32x1024xbf16>
    %33 = arith.mulf %32, %29 : vector<32x1024xbf16>
    %34 = arith.select %31, %29, %33 : vector<32x1024xi1>, vector<32x1024xbf16>
    %c0_21 = arith.constant 0 : index
    %c0_22 = arith.constant 0 : index
    %35 = vector.load %arg8[%c0_21, %c0_22] : memref<1024x128xbf16, #tpu.memory_space<vmem>>, vector<1024x128xbf16>
    %cst_23 = arith.constant dense<0.000000e+00> : vector<32x128xf32>
    %36 = tpu.matmul %34, %35, %cst_23 {dimension_numbers = #tpu.dot_dimension_numbers<[1], [0], [0], [1], [0, 0, 1, 1], [], []>} : vector<32x1024xbf16>, vector<1024x128xbf16>, vector<32x128xf32> -> vector<32x128xf32>
    %c0_24 = arith.constant 0 : index
    %c0_25 = arith.constant 0 : index
    %37 = vector.load %arg9[%c0_24, %c0_25] : memref<1x128xf32, #tpu.memory_space<vmem>>, vector<1x128xf32>
    %38 = vector.broadcast %37 : vector<1x128xf32> to vector<32x128xf32>
    %39 = arith.addf %36, %38 : vector<32x128xf32>
    %40 = math.tanh %39 : vector<32x128xf32>
    %41 = arith.truncf %40 : vector<32x128xf32> to vector<32x128xbf16>
    %c0_26 = arith.constant 0 : index
    %c0_27 = arith.constant 0 : index
    %42 = vector.load %arg10[%c0_26, %c0_27] : memref<32x128xbf16, #tpu.memory_space<vmem>>, vector<32x128xbf16>
    tpu.vector_store %arg10[%c0_26, %c0_27], %41 {strides = array<i32>} : memref<32x128xbf16, #tpu.memory_space<vmem>>, vector<32x128xbf16>,
    return
  }
  func.func @transform_0(%arg0: i32) -> (i32, i32) {
    %c0_i32 = arith.constant 0 : i32
    %c0_i32_0 = arith.constant 0 : i32
    return %arg0, %c0_i32 : i32, i32
  }
  func.func @transform_1(%arg0: i32) -> (i32, i32) {
    %c0_i32 = arith.constant 0 : i32
    %c0_i32_0 = arith.constant 0 : i32
    %c0_i32_1 = arith.constant 0 : i32
    return %c0_i32, %c0_i32_0 : i32, i32
  }
  func.func @transform_2(%arg0: i32) -> (i32, i32) {
    %c0_i32 = arith.constant 0 : i32
    %c0_i32_0 = arith.constant 0 : i32
    %c0_i32_1 = arith.constant 0 : i32
    return %c0_i32, %c0_i32_0 : i32, i32
  }
  func.func @transform_3(%arg0: i32) -> (i32, i32) {
    %c0_i32 = arith.constant 0 : i32
    %c0_i32_0 = arith.constant 0 : i32
    %c0_i32_1 = arith.constant 0 : i32
    return %c0_i32, %c0_i32_0 : i32, i32
  }
  func.func @transform_4(%arg0: i32) -> (i32, i32) {
    %c0_i32 = arith.constant 0 : i32
    %c0_i32_0 = arith.constant 0 : i32
    %c0_i32_1 = arith.constant 0 : i32
    return %c0_i32, %c0_i32_0 : i32, i32
  }
  func.func @transform_5(%arg0: i32) -> (i32, i32) {
    %c0_i32 = arith.constant 0 : i32
    %c0_i32_0 = arith.constant 0 : i32
    %c0_i32_1 = arith.constant 0 : i32
    return %c0_i32, %c0_i32_0 : i32, i32
  }
  func.func @transform_6(%arg0: i32) -> (i32, i32) {
    %c0_i32 = arith.constant 0 : i32
    %c0_i32_0 = arith.constant 0 : i32
    %c0_i32_1 = arith.constant 0 : i32
    return %c0_i32, %c0_i32_0 : i32, i32
  }
  func.func @transform_7(%arg0: i32) -> (i32, i32) {
    %c0_i32 = arith.constant 0 : i32
    %c0_i32_0 = arith.constant 0 : i32
    %c0_i32_1 = arith.constant 0 : i32
    return %c0_i32, %c0_i32_0 : i32, i32
  }
  func.func @transform_8(%arg0: i32) -> (i32, i32) {
    %c0_i32 = arith.constant 0 : i32
    %c0_i32_0 = arith.constant 0 : i32
    %c0_i32_1 = arith.constant 0 : i32
    return %c0_i32, %c0_i32_0 : i32, i32
  }
  func.func @transform_9(%arg0: i32) -> (i32, i32) {
    %c0_i32 = arith.constant 0 : i32
    %c0_i32_0 = arith.constant 0 : i32
    return %arg0, %c0_i32 : i32, i32
  }
}

</mosaic_0001>

<llo_original>
// kernel: tpu_custom_call.1
$region0: #{tpu_custom_call.1}
  #allocation0 [shape = 'u32[]', space=smem, size = 0x4, offset = 0x4, fixed_abs, tag = 'smem constant byte address 0x4 - core index']
  #allocation1 [shape = 'u32[144,128]{1,0:T(1,128)}', space=vmem, size = 0x12000, scoped, tag = 'internal scratch']
  %s0 = inlined_call_operand.hbm [shape: f32[32,64], index: 0, kind: input, shape index: {}]
  %s1 = inlined_call_operand.hbm [shape: bf16[64,256], index: 1, kind: input, shape index: {}]
  %s2 = inlined_call_operand.vmem [shape: f32[1,256], index: 2, kind: input, shape index: {}]
  %s3 = inlined_call_operand.hbm [shape: bf16[256,512], index: 3, kind: input, shape index: {}]
  %s4 = inlined_call_operand.hbm [shape: f32[1,512], index: 4, kind: input, shape index: {}]
  %s5 = inlined_call_operand.hbm [shape: bf16[512,1024], index: 5, kind: input, shape index: {}]
  %s6 = inlined_call_operand.vmem [shape: f32[1,1024], index: 6, kind: input, shape index: {}]
  %s7 = inlined_call_operand.hbm [shape: bf16[1024,128], index: 7, kind: input, shape index: {}]
  %s8 = inlined_call_operand.vmem [shape: f32[1,128], index: 8, kind: input, shape index: {}]
  %s9 = inlined_call_operand.hbm [shape: bf16[32,128], index: 9, kind: output, shape index: {}]
  %s10 = sld [smem:[#allocation0]]
  $region70: #{tpu_custom_call.1} parent=0
    _
  %s12 = ssub.s32 1, %s10
  %s13 = scalar_select 0, %s12, %s10
  $region1: #{tpu_custom_call.1} parent=0
    #allocation2 [shape = 'u8[16384]{0}', space=vmem, size = 0x4000, scoped, tag = 'input window, operand 0, single buffered']
    #allocation3 [shape = 's32[1]{0}', space=sflag, size = 0x4, scoped, tag = 'scoped memory for tpu_custom_call.1']
    #allocation4 [shape = 's32[1]{0}', space=sflag, size = 0x4, scoped, tag = 'scoped memory for tpu_custom_call.1']
    #allocation5 [shape = 'u8[32768]{0}', space=vmem, size = 0x8000, scoped, tag = 'input window, operand 1, single buffered']
    #allocation6 [shape = 's32[1]{0}', space=sflag, size = 0x4, scoped, tag = 'scoped memory for tpu_custom_call.1']
    #allocation7 [shape = 'u8[262144]{0}', space=vmem, size = 0x40000, scoped, tag = 'input window, operand 3, single buffered']
    #allocation8 [shape = 'u8[2048]{0}', space=vmem, size = 0x800, scoped, tag = 'input window, operand 4, single buffered']
    #allocation9 [shape = 's32[1]{0}', space=sflag, size = 0x4, scoped, tag = 'scoped memory for tpu_custom_call.1']
    #allocation10 [shape = 'u8[1048576]{0}', space=vmem, size = 0x100000, scoped, tag = 'input window, operand 5, single buffered']
    #allocation11 [shape = 'u8[262144]{0}', space=vmem, size = 0x40000, scoped, tag = 'input window, operand 7, single buffered']
    #allocation12 [shape = 's32[1]{0}', space=sflag, size = 0x4, scoped, tag = 'scoped memory for tpu_custom_call.1']
    #allocation13 [shape = 'u8[8192]{0}', space=vmem, size = 0x2000, scoped, tag = 'output window, operand 0, single buffered']
    %14 = vsyncpa [#allocation3], 0
    %15 = vsyncpa [#allocation6], 0
    %16 = vsyncpa [#allocation9], 0
    %17 = vsyncpa [#allocation12], 0
    %18 = vsyncpa [#allocation4], 0
    // Predicated region
    $region2: #{tpu_custom_call.1} parent=1 // pred_check
      _
    $region3: #{tpu_custom_call.1} parent=1 // pred_check_branch
      %20 = sbr.rel (0) target = $region5
    $region4: #{tpu_custom_call.1} parent=1 // pred_region
      %s22 = ssub.s32 512, 512
      %23 = vsyncadd [#allocation3], %s22
      %s24 = sshll.u32 [#allocation2], 4
      %s25 = int_to_ptr.vmem [resolvable:$true] %s24
      %30 = dma.hbm_to_vmem [thread:$0]  %s0, 512, %s25, [#allocation3], 128, 128, 8
    $region5: #{tpu_custom_call.1} parent=1 // pred_fallthru
      _
    // Predicated region
    $region6: #{tpu_custom_call.1} parent=1 // pred_check
      _
    $region7: #{tpu_custom_call.1} parent=1 // pred_check_branch
      %32 = sbr.rel (0) target = $region9
    $region8: #{tpu_custom_call.1} parent=1 // pred_region
      %s34 = ssub.s32 1024, 1024
      %35 = vsyncadd [#allocation6], %s34
      %s36 = sshll.u32 [#allocation5], 4
      %s37 = int_to_ptr.vmem [resolvable:$true] %s36
      %42 = dma.hbm_to_vmem [thread:$0]  %s1, 1024, %s37, [#allocation6], 128, 128, 8
    $region9: #{tpu_custom_call.1} parent=1 // pred_fallthru
      _
    // Predicated region
    $region10: #{tpu_custom_call.1} parent=1 // pred_check
      _
    $region11: #{tpu_custom_call.1} parent=1 // pred_check_branch
      %44 = sbr.rel (0) target = $region13
    $region12: #{tpu_custom_call.1} parent=1 // pred_region
      _
    $region13: #{tpu_custom_call.1} parent=1 // pred_fallthru
      _
    // Predicated region
    $region14: #{tpu_custom_call.1} parent=1 // pred_check
      _
    $region15: #{tpu_custom_call.1} parent=1 // pred_check_branch
      %46 = sbr.rel (0) target = $region17
    $region16: #{tpu_custom_call.1} parent=1 // pred_region
      %s48 = ssub.s32 8192, 8192
      %49 = vsyncadd [#allocation6], %s48
      %s50 = sshll.u32 [#allocation7], 4
      %s51 = int_to_ptr.vmem [resolvable:$true] %s50
      %56 = dma.hbm_to_vmem [thread:$0]  %s3, 8192, %s51, [#allocation6], 256, 256, 16
    $region17: #{tpu_custom_call.1} parent=1 // pred_fallthru
      _
    // Predicated region
    $region18: #{tpu_custom_call.1} parent=1 // pred_check
      _
    $region19: #{tpu_custom_call.1} parent=1 // pred_check_branch
      %58 = sbr.rel (0) target = $region21
    $region20: #{tpu_custom_call.1} parent=1 // pred_region
      %s60 = ssub.s32 64, 64
      %61 = vsyncadd [#allocation9], %s60
      %s63 = sshll.u32 [#allocation8], 4
      %s64 = int_to_ptr.vmem [resolvable:$true] %s63
      %66 = dma.hbm_to_vmem [thread:$0]  %s4, 64, %s64, [#allocation9]
    $region21: #{tpu_custom_call.1} parent=1 // pred_fallthru
      _
    // Predicated region
    $region22: #{tpu_custom_call.1} parent=1 // pred_check
      _
    $region23: #{tpu_custom_call.1} parent=1 // pred_check_branch
      %68 = sbr.rel (0) target = $region25
    $region24: #{tpu_custom_call.1} parent=1 // pred_region
      %s70 = ssub.s32 32768, 32768
      %71 = vsyncadd [#allocation9], %s70
      %s72 = sshll.u32 [#allocation10], 4
      %s73 = int_to_ptr.vmem [resolvable:$true] %s72
      %78 = dma.hbm_to_vmem [thread:$0]  %s5, 32768, %s73, [#allocation9], 512, 512, 32
    $region25: #{tpu_custom_call.1} parent=1 // pred_fallthru
      _
    // Predicated region
    $region26: #{tpu_custom_call.1} parent=1 // pred_check
      _
    $region27: #{tpu_custom_call.1} parent=1 // pred_check_branch
      %80 = sbr.rel (0) target = $region29
    $region28: #{tpu_custom_call.1} parent=1 // pred_region
      _
    $region29: #{tpu_custom_call.1} parent=1 // pred_fallthru
      _
    // Predicated region
    $region30: #{tpu_custom_call.1} parent=1 // pred_check
      _
    $region31: #{tpu_custom_call.1} parent=1 // pred_check_branch
      %82 = sbr.rel (0) target = $region33
    $region32: #{tpu_custom_call.1} parent=1 // pred_region
      %s84 = ssub.s32 8192, 8192
      %85 = vsyncadd [#allocation12], %s84
      %s86 = sshll.u32 [#allocation11], 4
      %s87 = int_to_ptr.vmem [resolvable:$true] %s86
      %92 = dma.hbm_to_vmem [thread:$0]  %s7, 8192, %s87, [#allocation12], 64, 64, 4
    $region33: #{tpu_custom_call.1} parent=1 // pred_fallthru
      _
    // Predicated region
    $region34: #{tpu_custom_call.1} parent=1 // pred_check
      _
    $region35: #{tpu_custom_call.1} parent=1 // pred_check_branch
      %94 = sbr.rel (0) target = $region37
    $region36: #{tpu_custom_call.1} parent=1 // pred_region
      _
    $region37: #{tpu_custom_call.1} parent=1 // pred_fallthru
      _
    // Predicated region
    $region38: #{tpu_custom_call.1} parent=1 // pred_check
      _
    $region39: #{tpu_custom_call.1} parent=1 // pred_check_branch
      %96 = sbr.rel (0) target = $region41
    $region40: #{tpu_custom_call.1} parent=1 // pred_region
      %97 = dma.done [#allocation3], 512
    $region41: #{tpu_custom_call.1} parent=1 // pred_fallthru
      _
    // Predicated region
    $region42: #{tpu_custom_call.1} parent=1 // pred_check
      _
    $region43: #{tpu_custom_call.1} parent=1 // pred_check_branch
      %99 = sbr.rel (0) target = $region45
    $region44: #{tpu_custom_call.1} parent=1 // pred_region
      %100 = dma.done [#allocation6], 1024
    $region45: #{tpu_custom_call.1} parent=1 // pred_fallthru
      _
    // Predicated region
    $region46: #{tpu_custom_call.1} parent=1 // pred_check
      _
    $region47: #{tpu_custom_call.1} parent=1 // pred_check_branch
      %102 = sbr.rel (0) target = $region49
    $region48: #{tpu_custom_call.1} parent=1 // pred_region
      %103 = dma.done [#allocation6], 8192
    $region49: #{tpu_custom_call.1} parent=1 // pred_fallthru
      _
    // Predicated region
    $region50: #{tpu_custom_call.1} parent=1 // pred_check
      _
    $region51: #{tpu_custom_call.1} parent=1 // pred_check_branch
      %105 = sbr.rel (0) target = $region53
    $region52: #{tpu_custom_call.1} parent=1 // pred_region
      %106 = dma.done [#allocation9], 64
    $region53: #{tpu_custom_call.1} parent=1 // pred_fallthru
      _
    // Predicated region
    $region54: #{tpu_custom_call.1} parent=1 // pred_check
      _
    $region55: #{tpu_custom_call.1} parent=1 // pred_check_branch
      %108 = sbr.rel (0) target = $region57
    $region56: #{tpu_custom_call.1} parent=1 // pred_region
      %109 = dma.done [#allocation9], 32768
    $region57: #{tpu_custom_call.1} parent=1 // pred_fallthru
      _
    // Predicated region
    $region58: #{tpu_custom_call.1} parent=1 // pred_check
      _
    $region59: #{tpu_custom_call.1} parent=1 // pred_check_branch
      %111 = sbr.rel (0) target = $region61
    $region60: #{tpu_custom_call.1} parent=1 // pred_region
      %112 = dma.done [#allocation12], 8192
    $region61: #{tpu_custom_call.1} parent=1 // pred_fallthru
      _
    %v115 = vld [vmem:[#allocation2] sm:$0xff]
    %v116 = vld [vmem:[#allocation2 + $0x8] sm:$0xff]
    %v117 = vld [vmem:[#allocation2 + $0x10] sm:$0xff]
    %v118 = vld [vmem:[#allocation2 + $0x18] sm:$0xff]
    %v119 = vpack.c.bf16 %v116, %v115
    %v120 = vpack.c.bf16 %v118, %v117
    %v121 = vld [vmem:[#allocation5] sm:$0xff]
    %v122 = vld [vmem:[#allocation5 + $0x8] sm:$0xff]
    %v123 = vld [vmem:[#allocation5 + $0x10] sm:$0xff]
    %v124 = vld [vmem:[#allocation5 + $0x18] sm:$0xff]
    %v125 = vld [vmem:[#allocation5 + $0x20] sm:$0xff]
    %v126 = vld [vmem:[#allocation5 + $0x28] sm:$0xff]
    %v127 = vld [vmem:[#allocation5 + $0x30] sm:$0xff]
    %v128 = vld [vmem:[#allocation5 + $0x38] sm:$0xff]
    %v129 = vld [vmem:[%s2] sm:$0x3]
    %v131 = vlaneseq
    %v132 = vshrl.u32 %v131, 7
    %v133 = vsub.s32 0, %v132
    %v134 = vrot.slane %v129, %v133
    %v135 = vlaneseq
    %v136 = vshrl.u32 %v135, 7
    %v137 = vsub.s32 1, %v136
    %v138 = vrot.slane %v129, %v137
    %v149 = vunpack.c.l.b16 %v121
    %v150 = vunpack.c.h.b16 %v121
    %v151 = vunpack.c.l.b16 %v122
    %v152 = vunpack.c.h.b16 %v122
    %v153 = vunpack.c.l.b16 %v123
    %v154 = vunpack.c.h.b16 %v123
    %v155 = vunpack.c.l.b16 %v124
    %v156 = vunpack.c.h.b16 %v124
    %v157 = vunpack.c.l.b16 %v125
    %v158 = vunpack.c.h.b16 %v125
    %v159 = vunpack.c.l.b16 %v126
    %v160 = vunpack.c.h.b16 %v126
    %v161 = vunpack.c.l.b16 %v127
    %v162 = vunpack.c.h.b16 %v127
    %v163 = vunpack.c.l.b16 %v128
    %v164 = vunpack.c.h.b16 %v128
    %v165 = vpack.c.b16 %v151, %v149
    %v166 = vpack.c.b16 %v152, %v150
    %v167 = vpack.c.b16 %v155, %v153
    %v168 = vpack.c.b16 %v156, %v154
    %v169 = vpack.c.b16 %v159, %v157
    %v170 = vpack.c.b16 %v160, %v158
    %v171 = vpack.c.b16 %v163, %v161
    %v172 = vpack.c.b16 %v164, %v162
    %vm181 = vcmask 523264
    %v183 = vsel %vm181, %v119, 0
    %v186 = vsel %vm181, %v120, 0
    %188 = vmatprep.subr.bf16.mxu0 0
    %189 = vmatpush1.bf16.msra.mxu0 0
    %190 = vmatprep.subr.bf16.mxu0 0
    %191 = vmatpush1.bf16.msra.mxu0 0
    %192 = vmatprep.subr.bf16.mxu0 0
    %193 = vmatpush1.bf16.msra.mxu0 0
    %194 = vmatprep.subr.bf16.mxu0 0
    %195 = vmatpush1.bf16.msra.mxu0 0
    %196 = vmatprep.subr.bf16.mxu0 %v172
    %197 = vmatpush1.bf16.msra.mxu0 %v171
    %198 = vmatprep.subr.bf16.mxu0 %v170
    %199 = vmatpush1.bf16.msra.mxu0 %v169
    %200 = vmatprep.subr.bf16.mxu0 %v168
    %201 = vmatpush1.bf16.msra.mxu0 %v167
    %202 = vmatprep.subr.bf16.mxu0 %v166
    %203 = vmatpush1.bf16.msra.mxu0 %v165
    %204 = vmatprep.subr.bf16.mxu0 0
    %205 = vmatpush2.bf16.msra.mxu0 0
    %206 = vmatprep.subr.bf16.mxu0 0
    %207 = vmatpush2.bf16.msra.mxu0 0
    %208 = vmatprep.subr.bf16.mxu0 0
    %209 = vmatpush2.bf16.msra.mxu0 0
    %210 = vmatprep.subr.bf16.mxu0 0
    %211 = vmatpush2.bf16.msra.mxu0 0
    %212 = vmatprep.subr.bf16.mxu0 0
    %213 = vmatpush2.bf16.msra.mxu0 0
    %214 = vmatprep.subr.bf16.mxu0 0
    %215 = vmatpush2.bf16.msra.mxu0 0
    %216 = vmatprep.subr.bf16.mxu0 0
    %217 = vmatpush2.bf16.msra.mxu0 0
    %218 = vmatprep.subr.bf16.mxu0 0
    %219 = vmatpush2.bf16.msra.mxu0 0
    %220 = vmatprep.mubr.bf16.mxu0 0
    %221 = vmatmul.mubr.bf16.gmra.mxu0 %v183
    %v222 = vpop.f32.mrf.mxu0
    %v223 = vadd.f32 %v134, %v222
    %v224 = vpop.f32.mrf.mxu0
    %v225 = vadd.f32 %v138, %v224
    %v226 = vpop.f32.mrf.mxu0
    %v227 = vadd.f32 %v134, %v226
    %v228 = vpop.f32.mrf.mxu0
    %v229 = vadd.f32 %v138, %v228
    %230 = vmatprep.mubr.bf16.mxu0 0
    %231 = vmatmul.mubr.bf16.gmra.mxu0 %v186
    %v232 = vpop.f32.mrf.mxu0
    %v233 = vadd.f32 %v134, %v232
    %v234 = vpop.f32.mrf.mxu0
    %v235 = vadd.f32 %v138, %v234
    %v236 = vpop.f32.mrf.mxu0
    %v237 = vadd.f32 %v134, %v236
    %v238 = vpop.f32.mrf.mxu0
    %v239 = vadd.f32 %v138, %v238
    %240 = vdwg.mxu0
    %v241 = vpack.c.bf16 %v227, %v223
    %v242 = vpack.c.bf16 %v229, %v225
    %v243 = vpack.c.bf16 %v237, %v233
    %v244 = vpack.c.bf16 %v239, %v235
    %vm245 = vcmp.gt.bf16.partialorder %v241, 0
    %vm246 = vcmp.gt.bf16.partialorder %v242, 0
    %vm247 = vcmp.gt.bf16.partialorder %v243, 0
    %vm248 = vcmp.gt.bf16.partialorder %v244, 0
    %v249 = vmul.bf16 %v241, 1045249613
    %v250 = vmul.bf16 %v242, 1045249613
    %v251 = vmul.bf16 %v243, 1045249613
    %v252 = vmul.bf16 %v244, 1045249613
    %v253 = vsel %vm245, %v241, %v249
    %v254 = vsel %vm246, %v242, %v250
    %v255 = vsel %vm247, %v243, %v251
    %v256 = vsel %vm248, %v244, %v252
    %v257 = vld [vmem:[#allocation7] sm:$0xff]
    %v258 = vld [vmem:[#allocation7 + $0x8] sm:$0xff]
    %v259 = vld [vmem:[#allocation7 + $0x10] sm:$0xff]
    %v260 = vld [vmem:[#allocation7 + $0x18] sm:$0xff]
    %v261 = vld [vmem:[#allocation7 + $0x20] sm:$0xff]
    %v262 = vld [vmem:[#allocation7 + $0x28] sm:$0xff]
    %v263 = vld [vmem:[#allocation7 + $0x30] sm:$0xff]
    %v264 = vld [vmem:[#allocation7 + $0x38] sm:$0xff]
    %v265 = vld [vmem:[#allocation7 + $0x40] sm:$0xff]
    %v266 = vld [vmem:[#allocation7 + $0x48] sm:$0xff]
    %v267 = vld [vmem:[#allocation7 + $0x50] sm:$0xff]
    %v268 = vld [vmem:[#allocation7 + $0x58] sm:$0xff]
    %v269 = vld [vmem:[#allocation7 + $0x60] sm:$0xff]
    %v270 = vld [vmem:[#allocation7 + $0x68] sm:$0xff]
    %v271 = vld [vmem:[#allocation7 + $0x70] sm:$0xff]
    %v272 = vld [vmem:[#allocation7 + $0x78] sm:$0xff]
    %v273 = vld [vmem:[#allocation7 + $0x80] sm:$0xff]
    %v274 = vld [vmem:[#allocation7 + $0x88] sm:$0xff]
    %v275 = vld [vmem:[#allocation7 + $0x90] sm:$0xff]
    %v276 = vld [vmem:[#allocation7 + $0x98] sm:$0xff]
    %v277 = vld [vmem:[#allocation7 + $0xa0] sm:$0xff]
    %v278 = vld [vmem:[#allocation7 + $0xa8] sm:$0xff]
    %v279 = vld [vmem:[#allocation7 + $0xb0] sm:$0xff]
    %v280 = vld [vmem:[#allocation7 + $0xb8] sm:$0xff]
    %v281 = vld [vmem:[#allocation7 + $0xc0] sm:$0xff]
    %v282 = vld [vmem:[#allocation7 + $0xc8] sm:$0xff]
    %v283 = vld [vmem:[#allocation7 + $0xd0] sm:$0xff]
    %v284 = vld [vmem:[#allocation7 + $0xd8] sm:$0xff]
    %v285 = vld [vmem:[#allocation7 + $0xe0] sm:$0xff]
    %v286 = vld [vmem:[#allocation7 + $0xe8] sm:$0xff]
    %v287 = vld [vmem:[#allocation7 + $0xf0] sm:$0xff]
    %v288 = vld [vmem:[#allocation7 + $0xf8] sm:$0xff]
    %v289 = vld [vmem:[#allocation7 + $0x100] sm:$0xff]
    %v290 = vld [vmem:[#allocation7 + $0x108] sm:$0xff]
    %v291 = vld [vmem:[#allocation7 + $0x110] sm:$0xff]
    %v292 = vld [vmem:[#allocation7 + $0x118] sm:$0xff]
    %v293 = vld [vmem:[#allocation7 + $0x120] sm:$0xff]
    %v294 = vld [vmem:[#allocation7 + $0x128] sm:$0xff]
    %v295 = vld [vmem:[#allocation7 + $0x130] sm:$0xff]
    %v296 = vld [vmem:[#allocation7 + $0x138] sm:$0xff]
    %v297 = vld [vmem:[#allocation7 + $0x140] sm:$0xff]
    %v298 = vld [vmem:[#allocation7 + $0x148] sm:$0xff]
    %v299 = vld [vmem:[#allocation7 + $0x150] sm:$0xff]
    %v300 = vld [vmem:[#allocation7 + $0x158] sm:$0xff]
    %v301 = vld [vmem:[#allocation7 + $0x160] sm:$0xff]
    %v302 = vld [vmem:[#allocation7 + $0x168] sm:$0xff]
    %v303 = vld [vmem:[#allocation7 + $0x170] sm:$0xff]
    %v304 = vld [vmem:[#allocation7 + $0x178] sm:$0xff]
    %v305 = vld [vmem:[#allocation7 + $0x180] sm:$0xff]
    %v306 = vld [vmem:[#allocation7 + $0x188] sm:$0xff]
    %v307 = vld [vmem:[#allocation7 + $0x190] sm:$0xff]
    %v308 = vld [vmem:[#allocation7 + $0x198] sm:$0xff]
    %v309 = vld [vmem:[#allocation7 + $0x1a0] sm:$0xff]
    %v310 = vld [vmem:[#allocation7 + $0x1a8] sm:$0xff]
    %v311 = vld [vmem:[#allocation7 + $0x1b0] sm:$0xff]
    %v312 = vld [vmem:[#allocation7 + $0x1b8] sm:$0xff]
    %v313 = vld [vmem:[#allocation7 + $0x1c0] sm:$0xff]
    %v314 = vld [vmem:[#allocation7 + $0x1c8] sm:$0xff]
    %v315 = vld [vmem:[#allocation7 + $0x1d0] sm:$0xff]
    %v316 = vld [vmem:[#allocation7 + $0x1d8] sm:$0xff]
    %v317 = vld [vmem:[#allocation7 + $0x1e0] sm:$0xff]
    %v318 = vld [vmem:[#allocation7 + $0x1e8] sm:$0xff]
    %v319 = vld [vmem:[#allocation7 + $0x1f0] sm:$0xff]
    %v320 = vld [vmem:[#allocation7 + $0x1f8] sm:$0xff]
    %v321 = vld [vmem:[#allocation8] sm:$0xf]
    %v323 = vlaneseq
    %v324 = vshrl.u32 %v323, 7
    %v325 = vsub.s32 0, %v324
    %v326 = vrot.slane %v321, %v325
    %v327 = vlaneseq
    %v328 = vshrl.u32 %v327, 7
    %v329 = vsub.s32 1, %v328
    %v330 = vrot.slane %v321, %v329
    %v331 = vlaneseq
    %v332 = vshrl.u32 %v331, 7
    %v333 = vsub.s32 2, %v332
    %v334 = vrot.slane %v321, %v333
    %v335 = vlaneseq
    %v336 = vshrl.u32 %v335, 7
    %v337 = vsub.s32 3, %v336
    %v338 = vrot.slane %v321, %v337
    %v407 = vunpack.c.l.b16 %v257
    %v408 = vunpack.c.h.b16 %v257
    %v409 = vunpack.c.l.b16 %v258
    %v410 = vunpack.c.h.b16 %v258
    %v411 = vunpack.c.l.b16 %v259
    %v412 = vunpack.c.h.b16 %v259
    %v413 = vunpack.c.l.b16 %v260
    %v414 = vunpack.c.h.b16 %v260
    %v415 = vunpack.c.l.b16 %v261
    %v416 = vunpack.c.h.b16 %v261
    %v417 = vunpack.c.l.b16 %v262
    %v418 = vunpack.c.h.b16 %v262
    %v419 = vunpack.c.l.b16 %v263
    %v420 = vunpack.c.h.b16 %v263
    %v421 = vunpack.c.l.b16 %v264
    %v422 = vunpack.c.h.b16 %v264
    %v423 = vunpack.c.l.b16 %v265
    %v424 = vunpack.c.h.b16 %v265
    %v425 = vunpack.c.l.b16 %v266
    %v426 = vunpack.c.h.b16 %v266
    %v427 = vunpack.c.l.b16 %v267
    %v428 = vunpack.c.h.b16 %v267
    %v429 = vunpack.c.l.b16 %v268
    %v430 = vunpack.c.h.b16 %v268
    %v431 = vunpack.c.l.b16 %v269
    %v432 = vunpack.c.h.b16 %v269
    %v433 = vunpack.c.l.b16 %v270
    %v434 = vunpack.c.h.b16 %v270
    %v435 = vunpack.c.l.b16 %v271
    %v436 = vunpack.c.h.b16 %v271
    %v437 = vunpack.c.l.b16 %v272
    %v438 = vunpack.c.h.b16 %v272
    %v439 = vunpack.c.l.b16 %v273
    %v440 = vunpack.c.h.b16 %v273
    %v441 = vunpack.c.l.b16 %v274
    %v442 = vunpack.c.h.b16 %v274
    %v443 = vunpack.c.l.b16 %v275
    %v444 = vunpack.c.h.b16 %v275
    %v445 = vunpack.c.l.b16 %v276
    %v446 = vunpack.c.h.b16 %v276
    %v447 = vunpack.c.l.b16 %v277
    %v448 = vunpack.c.h.b16 %v277
    %v449 = vunpack.c.l.b16 %v278
    %v450 = vunpack.c.h.b16 %v278
    %v451 = vunpack.c.l.b16 %v279
    %v452 = vunpack.c.h.b16 %v279
    %v453 = vunpack.c.l.b16 %v280
    %v454 = vunpack.c.h.b16 %v280
    %v455 = vunpack.c.l.b16 %v281
    %v456 = vunpack.c.h.b16 %v281
    %v457 = vunpack.c.l.b16 %v282
    %v458 = vunpack.c.h.b16 %v282
    %v459 = vunpack.c.l.b16 %v283
    %v460 = vunpack.c.h.b16 %v283
    %v461 = vunpack.c.l.b16 %v284
    %v462 = vunpack.c.h.b16 %v284
    %v463 = vunpack.c.l.b16 %v285
    %v464 = vunpack.c.h.b16 %v285
    %v465 = vunpack.c.l.b16 %v286
    %v466 = vunpack.c.h.b16 %v286
    %v467 = vunpack.c.l.b16 %v287
    %v468 = vunpack.c.h.b16 %v287
    %v469 = vunpack.c.l.b16 %v288
    %v470 = vunpack.c.h.b16 %v288
    %v471 = vunpack.c.l.b16 %v289
    %v472 = vunpack.c.h.b16 %v289
    %v473 = vunpack.c.l.b16 %v290
    %v474 = vunpack.c.h.b16 %v290
    %v475 = vunpack.c.l.b16 %v291
    %v476 = vunpack.c.h.b16 %v291
    %v477 = vunpack.c.l.b16 %v292
    %v478 = vunpack.c.h.b16 %v292
    %v479 = vunpack.c.l.b16 %v293
    %v480 = vunpack.c.h.b16 %v293
    %v481 = vunpack.c.l.b16 %v294
    %v482 = vunpack.c.h.b16 %v294
    %v483 = vunpack.c.l.b16 %v295
    %v484 = vunpack.c.h.b16 %v295
    %v485 = vunpack.c.l.b16 %v296
    %v486 = vunpack.c.h.b16 %v296
    %v487 = vunpack.c.l.b16 %v297
    %v488 = vunpack.c.h.b16 %v297
    %v489 = vunpack.c.l.b16 %v298
    %v490 = vunpack.c.h.b16 %v298
    %v491 = vunpack.c.l.b16 %v299
    %v492 = vunpack.c.h.b16 %v299
    %v493 = vunpack.c.l.b16 %v300
    %v494 = vunpack.c.h.b16 %v300
    %v495 = vunpack.c.l.b16 %v301
    %v496 = vunpack.c.h.b16 %v301
    %v497 = vunpack.c.l.b16 %v302
    %v498 = vunpack.c.h.b16 %v302
    %v499 = vunpack.c.l.b16 %v303
    %v500 = vunpack.c.h.b16 %v303
    %v501 = vunpack.c.l.b16 %v304
    %v502 = vunpack.c.h.b16 %v304
    %v503 = vunpack.c.l.b16 %v305
    %v504 = vunpack.c.h.b16 %v305
    %v505 = vunpack.c.l.b16 %v306
    %v506 = vunpack.c.h.b16 %v306
    %v507 = vunpack.c.l.b16 %v307
    %v508 = vunpack.c.h.b16 %v307
    %v509 = vunpack.c.l.b16 %v308
    %v510 = vunpack.c.h.b16 %v308
    %v511 = vunpack.c.l.b16 %v309
    %v512 = vunpack.c.h.b16 %v309
    %v513 = vunpack.c.l.b16 %v310
    %v514 = vunpack.c.h.b16 %v310
    %v515 = vunpack.c.l.b16 %v311
    %v516 = vunpack.c.h.b16 %v311
    %v517 = vunpack.c.l.b16 %v312
    %v518 = vunpack.c.h.b16 %v312
    %v519 = vunpack.c.l.b16 %v313
    %v520 = vunpack.c.h.b16 %v313
    %v521 = vunpack.c.l.b16 %v314
    %v522 = vunpack.c.h.b16 %v314
    %v523 = vunpack.c.l.b16 %v315
    %v524 = vunpack.c.h.b16 %v315
    %v525 = vunpack.c.l.b16 %v316
    %v526 = vunpack.c.h.b16 %v316
    %v527 = vunpack.c.l.b16 %v317
    %v528 = vunpack.c.h.b16 %v317
    %v529 = vunpack.c.l.b16 %v318
    %v530 = vunpack.c.h.b16 %v318
    %v531 = vunpack.c.l.b16 %v319
    %v532 = vunpack.c.h.b16 %v319
    %v533 = vunpack.c.l.b16 %v320
    %v534 = vunpack.c.h.b16 %v320
    %v535 = vpack.c.b16 %v411, %v407
    %v536 = vpack.c.b16 %v412, %v408
    %v537 = vpack.c.b16 %v413, %v409
    %v538 = vpack.c.b16 %v414, %v410
    %v539 = vpack.c.b16 %v419, %v415
    %v540 = vpack.c.b16 %v420, %v416
    %v541 = vpack.c.b16 %v421, %v417
    %v542 = vpack.c.b16 %v422, %v418
    %v543 = vpack.c.b16 %v427, %v423
    %v544 = vpack.c.b16 %v428, %v424
    %v545 = vpack.c.b16 %v429, %v425
    %v546 = vpack.c.b16 %v430, %v426
    %v547 = vpack.c.b16 %v435, %v431
    %v548 = vpack.c.b16 %v436, %v432
    %v549 = vpack.c.b16 %v437, %v433
    %v550 = vpack.c.b16 %v438, %v434
    %v551 = vpack.c.b16 %v443, %v439
    %v552 = vpack.c.b16 %v444, %v440
    %v553 = vpack.c.b16 %v445, %v441
    %v554 = vpack.c.b16 %v446, %v442
    %v555 = vpack.c.b16 %v451, %v447
    %v556 = vpack.c.b16 %v452, %v448
    %v557 = vpack.c.b16 %v453, %v449
    %v558 = vpack.c.b16 %v454, %v450
    %v559 = vpack.c.b16 %v459, %v455
    %v560 = vpack.c.b16 %v460, %v456
    %v561 = vpack.c.b16 %v461, %v457
    %v562 = vpack.c.b16 %v462, %v458
    %v563 = vpack.c.b16 %v467, %v463
    %v564 = vpack.c.b16 %v468, %v464
    %v565 = vpack.c.b16 %v469, %v465
    %v566 = vpack.c.b16 %v470, %v466
    %v567 = vpack.c.b16 %v475, %v471
    %v568 = vpack.c.b16 %v476, %v472
    %v569 = vpack.c.b16 %v477, %v473
    %v570 = vpack.c.b16 %v478, %v474
    %v571 = vpack.c.b16 %v483, %v479
    %v572 = vpack.c.b16 %v484, %v480
    %v573 = vpack.c.b16 %v485, %v481
    %v574 = vpack.c.b16 %v486, %v482
    %v575 = vpack.c.b16 %v491, %v487
    %v576 = vpack.c.b16 %v492, %v488
    %v577 = vpack.c.b16 %v493, %v489
    %v578 = vpack.c.b16 %v494, %v490
    %v579 = vpack.c.b16 %v499, %v495
    %v580 = vpack.c.b16 %v500, %v496
    %v581 = vpack.c.b16 %v501, %v497
    %v582 = vpack.c.b16 %v502, %v498
    %v583 = vpack.c.b16 %v507, %v503
    %v584 = vpack.c.b16 %v508, %v504
    %v585 = vpack.c.b16 %v509, %v505
    %v586 = vpack.c.b16 %v510, %v506
    %v587 = vpack.c.b16 %v515, %v511
    %v588 = vpack.c.b16 %v516, %v512
    %v589 = vpack.c.b16 %v517, %v513
    %v590 = vpack.c.b16 %v518, %v514
    %v591 = vpack.c.b16 %v523, %v519
    %v592 = vpack.c.b16 %v524, %v520
    %v593 = vpack.c.b16 %v525, %v521
    %v594 = vpack.c.b16 %v526, %v522
    %v595 = vpack.c.b16 %v531, %v527
    %v596 = vpack.c.b16 %v532, %v528
    %v597 = vpack.c.b16 %v533, %v529
    %v598 = vpack.c.b16 %v534, %v530
    %663 = vmatprep.subr.bf16.mxu0 %v564
    %664 = vmatpush1.bf16.msra.mxu0 %v563
    %665 = vmatprep.subr.bf16.mxu0 %v560
    %666 = vmatpush1.bf16.msra.mxu0 %v559
    %667 = vmatprep.subr.bf16.mxu0 %v556
    %668 = vmatpush1.bf16.msra.mxu0 %v555
    %669 = vmatprep.subr.bf16.mxu0 %v552
    %670 = vmatpush1.bf16.msra.mxu0 %v551
    %671 = vmatprep.subr.bf16.mxu0 %v548
    %672 = vmatpush1.bf16.msra.mxu0 %v547
    %673 = vmatprep.subr.bf16.mxu0 %v544
    %674 = vmatpush1.bf16.msra.mxu0 %v543
    %675 = vmatprep.subr.bf16.mxu0 %v540
    %676 = vmatpush1.bf16.msra.mxu0 %v539
    %677 = vmatprep.subr.bf16.mxu0 %v536
    %678 = vmatpush1.bf16.msra.mxu0 %v535
    %679 = vmatprep.subr.bf16.mxu0 %v596
    %680 = vmatpush2.bf16.msra.mxu0 %v595
    %681 = vmatprep.subr.bf16.mxu0 %v592
    %682 = vmatpush2.bf16.msra.mxu0 %v591
    %683 = vmatprep.subr.bf16.mxu0 %v588
    %684 = vmatpush2.bf16.msra.mxu0 %v587
    %685 = vmatprep.subr.bf16.mxu0 %v584
    %686 = vmatpush2.bf16.msra.mxu0 %v583
    %687 = vmatprep.subr.bf16.mxu0 %v580
    %688 = vmatpush2.bf16.msra.mxu0 %v579
    %689 = vmatprep.subr.bf16.mxu0 %v576
    %690 = vmatpush2.bf16.msra.mxu0 %v575
    %691 = vmatprep.subr.bf16.mxu0 %v572
    %692 = vmatpush2.bf16.msra.mxu0 %v571
    %693 = vmatprep.subr.bf16.mxu0 %v568
    %694 = vmatpush2.bf16.msra.mxu0 %v567
    %695 = vmatprep.mubr.bf16.mxu0 %v254
    %696 = vmatmul.mubr.bf16.gmra.mxu0 %v253
    %v697 = vpop.f32.mrf.mxu0
    %v698 = vadd.f32 %v326, %v697
    %v699 = vpop.f32.mrf.mxu0
    %v700 = vadd.f32 %v330, %v699
    %v701 = vpop.f32.mrf.mxu0
    %v702 = vadd.f32 %v326, %v701
    %v703 = vpop.f32.mrf.mxu0
    %v704 = vadd.f32 %v330, %v703
    %705 = vmatprep.mubr.bf16.mxu0 %v256
    %706 = vmatmul.mubr.bf16.gmra.mxu0 %v255
    %v707 = vpop.f32.mrf.mxu0
    %v708 = vadd.f32 %v326, %v707
    %v709 = vpop.f32.mrf.mxu0
    %v710 = vadd.f32 %v330, %v709
    %v711 = vpop.f32.mrf.mxu0
    %v712 = vadd.f32 %v326, %v711
    %v713 = vpop.f32.mrf.mxu0
    %v714 = vadd.f32 %v330, %v713
    %715 = vdwg.mxu0
    %716 = vmatprep.subr.bf16.mxu0 %v566
    %717 = vmatpush1.bf16.msra.mxu0 %v565
    %718 = vmatprep.subr.bf16.mxu0 %v562
    %719 = vmatpush1.bf16.msra.mxu0 %v561
    %720 = vmatprep.subr.bf16.mxu0 %v558
    %721 = vmatpush1.bf16.msra.mxu0 %v557
    %722 = vmatprep.subr.bf16.mxu0 %v554
    %723 = vmatpush1.bf16.msra.mxu0 %v553
    %724 = vmatprep.subr.bf16.mxu0 %v550
    %725 = vmatpush1.bf16.msra.mxu0 %v549
    %726 = vmatprep.subr.bf16.mxu0 %v546
    %727 = vmatpush1.bf16.msra.mxu0 %v545
    %728 = vmatprep.subr.bf16.mxu0 %v542
    %729 = vmatpush1.bf16.msra.mxu0 %v541
    %730 = vmatprep.subr.bf16.mxu0 %v538
    %731 = vmatpush1.bf16.msra.mxu0 %v537
    %732 = vmatprep.subr.bf16.mxu0 %v598
    %733 = vmatpush2.bf16.msra.mxu0 %v597
    %734 = vmatprep.subr.bf16.mxu0 %v594
    %735 = vmatpush2.bf16.msra.mxu0 %v593
    %736 = vmatprep.subr.bf16.mxu0 %v590
    %737 = vmatpush2.bf16.msra.mxu0 %v589
    %738 = vmatprep.subr.bf16.mxu0 %v586
    %739 = vmatpush2.bf16.msra.mxu0 %v585
    %740 = vmatprep.subr.bf16.mxu0 %v582
    %741 = vmatpush2.bf16.msra.mxu0 %v581
    %742 = vmatprep.subr.bf16.mxu0 %v578
    %743 = vmatpush2.bf16.msra.mxu0 %v577
    %744 = vmatprep.subr.bf16.mxu0 %v574
    %745 = vmatpush2.bf16.msra.mxu0 %v573
    %746 = vmatprep.subr.bf16.mxu0 %v570
    %747 = vmatpush2.bf16.msra.mxu0 %v569
    %748 = vmatprep.mubr.bf16.mxu0 %v254
    %749 = vmatmul.mubr.bf16.gmra.mxu0 %v253
    %v750 = vpop.f32.mrf.mxu0
    %v751 = vadd.f32 %v334, %v750
    %v752 = vpop.f32.mrf.mxu0
    %v753 = vadd.f32 %v338, %v752
    %v754 = vpop.f32.mrf.mxu0
    %v755 = vadd.f32 %v334, %v754
    %v756 = vpop.f32.mrf.mxu0
    %v757 = vadd.f32 %v338, %v756
    %758 = vmatprep.mubr.bf16.mxu0 %v256
    %759 = vmatmul.mubr.bf16.gmra.mxu0 %v255
    %v760 = vpop.f32.mrf.mxu0
    %v761 = vadd.f32 %v334, %v760
    %v762 = vpop.f32.mrf.mxu0
    %v763 = vadd.f32 %v338, %v762
    %v764 = vpop.f32.mrf.mxu0
    %v765 = vadd.f32 %v334, %v764
    %v766 = vpop.f32.mrf.mxu0
    %v767 = vadd.f32 %v338, %v766
    %768 = vdwg.mxu0
    %v769 = vpack.c.bf16 %v702, %v698
    %v770 = vpack.c.bf16 %v704, %v700
    %v771 = vpack.c.bf16 %v755, %v751
    %v772 = vpack.c.bf16 %v757, %v753
    %v773 = vpack.c.bf16 %v712, %v708
    %v774 = vpack.c.bf16 %v714, %v710
    %v775 = vpack.c.bf16 %v765, %v761
    %v776 = vpack.c.bf16 %v767, %v763
    %vm777 = vcmp.gt.bf16.partialorder %v769, 0
    %vm778 = vcmp.gt.bf16.partialorder %v770, 0
    %vm779 = vcmp.gt.bf16.partialorder %v771, 0
    %vm780 = vcmp.gt.bf16.partialorder %v772, 0
    %vm781 = vcmp.gt.bf16.partialorder %v773, 0
    %vm782 = vcmp.gt.bf16.partialorder %v774, 0
    %vm783 = vcmp.gt.bf16.partialorder %v775, 0
    %vm784 = vcmp.gt.bf16.partialorder %v776, 0
    %v785 = vmul.bf16 %v769, 1045249613
    %v786 = vmul.bf16 %v770, 1045249613
    %v787 = vmul.bf16 %v771, 1045249613
    %v788 = vmul.bf16 %v772, 1045249613
    %v789 = vmul.bf16 %v773, 1045249613
    %v790 = vmul.bf16 %v774, 1045249613
    %v791 = vmul.bf16 %v775, 1045249613
    %v792 = vmul.bf16 %v776, 1045249613
    %v793 = vsel %vm777, %v769, %v785
    %v794 = vsel %vm778, %v770, %v786
    %v795 = vsel %vm779, %v771, %v787
    %v796 = vsel %vm780, %v772, %v788
    %v797 = vsel %vm781, %v773, %v789
    %v798 = vsel %vm782, %v774, %v790
    %v799 = vsel %vm783, %v775, %v791
    %v800 = vsel %vm784, %v776, %v792
    %v801 = vld [vmem:[#allocation10] sm:$0xff]
    %v802 = vld [vmem:[#allocation10 + $0x8] sm:$0xff]
    %v803 = vld [vmem:[#allocation10 + $0x10] sm:$0xff]
    %v804 = vld [vmem:[#allocation10 + $0x18] sm:$0xff]
    %v805 = vld [vmem:[#allocation10 + $0x20] sm:$0xff]
    %v806 = vld [vmem:[#allocation10 + $0x28] sm:$0xff]
    %v807 = vld [vmem:[#allocation10 + $0x30] sm:$0xff]
    %v808 = vld [vmem:[#allocation10 + $0x38] sm:$0xff]
    %v809 = vld [vmem:[#allocation10 + $0x40] sm:$0xff]
    %v810 = vld [vmem:[#allocation10 + $0x48] sm:$0xff]
    %v811 = vld [vmem:[#allocation10 + $0x50] sm:$0xff]
    %v812 = vld [vmem:[#allocation10 + $0x58] sm:$0xff]
    %v813 = vld [vmem:[#allocation10 + $0x60] sm:$0xff]
    %v814 = vld [vmem:[#allocation10 + $0x68] sm:$0xff]
    %v815 = vld [vmem:[#allocation10 + $0x70] sm:$0xff]
    %v816 = vld [vmem:[#allocation10 + $0x78] sm:$0xff]
    %v817 = vld [vmem:[#allocation10 + $0x80] sm:$0xff]
    %v818 = vld [vmem:[#allocation10 + $0x88] sm:$0xff]
    %v819 = vld [vmem:[#allocation10 + $0x90] sm:$0xff]
    %v820 = vld [vmem:[#allocation10 + $0x98] sm:$0xff]
    %v821 = vld [vmem:[#allocation10 + $0xa0] sm:$0xff]
    %v822 = vld [vmem:[#allocation10 + $0xa8] sm:$0xff]
    %v823 = vld [vmem:[#allocation10 + $0xb0] sm:$0xff]
    %v824 = vld [vmem:[#allocation10 + $0xb8] sm:$0xff]
    %v825 = vld [vmem:[#allocation10 + $0xc0] sm:$0xff]
    %v826 = vld [vmem:[#allocation10 + $0xc8] sm:$0xff]
    %v827 = vld [vmem:[#allocation10 + $0xd0] sm:$0xff]
    %v828 = vld [vmem:[#allocation10 + $0xd8] sm:$0xff]
    %v829 = vld [vmem:[#allocation10 + $0xe0] sm:$0xff]
    %v830 = vld [vmem:[#allocation10 + $0xe8] sm:$0xff]
    %v831 = vld [vmem:[#allocation10 + $0xf0] sm:$0xff]
    %v832 = vld [vmem:[#allocation10 + $0xf8] sm:$0xff]
    %v833 = vld [vmem:[#allocation10 + $0x100] sm:$0xff]
    %v834 = vld [vmem:[#allocation10 + $0x108] sm:$0xff]
    %v835 = vld [vmem:[#allocation10 + $0x110] sm:$0xff]
    %v836 = vld [vmem:[#allocation10 + $0x118] sm:$0xff]
    %v837 = vld [vmem:[#allocation10 + $0x120] sm:$0xff]
    %v838 = vld [vmem:[#allocation10 + $0x128] sm:$0xff]
    %v839 = vld [vmem:[#allocation10 + $0x130] sm:$0xff]
    %v840 = vld [vmem:[#allocation10 + $0x138] sm:$0xff]
    %v841 = vld [vmem:[#allocation10 + $0x140] sm:$0xff]
    %v842 = vld [vmem:[#allocation10 + $0x148] sm:$0xff]
    %v843 = vld [vmem:[#allocation10 + $0x150] sm:$0xff]
    %v844 = vld [vmem:[#allocation10 + $0x158] sm:$0xff]
    %v845 = vld [vmem:[#allocation10 + $0x160] sm:$0xff]
    %v846 = vld [vmem:[#allocation10 + $0x168] sm:$0xff]
    %v847 = vld [vmem:[#allocation10 + $0x170] sm:$0xff]
    %v848 = vld [vmem:[#allocation10 + $0x178] sm:$0xff]
    %v849 = vld [vmem:[#allocation10 + $0x180] sm:$0xff]
    %v850 = vld [vmem:[#allocation10 + $0x188] sm:$0xff]
    %v851 = vld [vmem:[#allocation10 + $0x190] sm:$0xff]
    %v852 = vld [vmem:[#allocation10 + $0x198] sm:$0xff]
    %v853 = vld [vmem:[#allocation10 + $0x1a0] sm:$0xff]
    %v854 = vld [vmem:[#allocation10 + $0x1a8] sm:$0xff]
    %v855 = vld [vmem:[#allocation10 + $0x1b0] sm:$0xff]
    %v856 = vld [vmem:[#allocation10 + $0x1b8] sm:$0xff]
    %v857 = vld [vmem:[#allocation10 + $0x1c0] sm:$0xff]
    %v858 = vld [vmem:[#allocation10 + $0x1c8] sm:$0xff]
    %v859 = vld [vmem:[#allocation10 + $0x1d0] sm:$0xff]
    %v860 = vld [vmem:[#allocation10 + $0x1d8] sm:$0xff]
    %v861 = vld [vmem:[#allocation10 + $0x1e0] sm:$0xff]
    %v862 = vld [vmem:[#allocation10 + $0x1e8] sm:$0xff]
    %v863 = vld [vmem:[#allocation10 + $0x1f0] sm:$0xff]
    %v864 = vld [vmem:[#allocation10 + $0x1f8] sm:$0xff]
    %v865 = vld [vmem:[#allocation10 + $0x200] sm:$0xff]
    %v866 = vld [vmem:[#allocation10 + $0x208] sm:$0xff]
    %v867 = vld [vmem:[#allocation10 + $0x210] sm:$0xff]
    %v868 = vld [vmem:[#allocation10 + $0x218] sm:$0xff]
    %v869 = vld [vmem:[#allocation10 + $0x220] sm:$0xff]
    %v870 = vld [vmem:[#allocation10 + $0x228] sm:$0xff]
    %v871 = vld [vmem:[#allocation10 + $0x230] sm:$0xff]
    %v872 = vld [vmem:[#allocation10 + $0x238] sm:$0xff]
    %v873 = vld [vmem:[#allocation10 + $0x240] sm:$0xff]
    %v874 = vld [vmem:[#allocation10 + $0x248] sm:$0xff]
    %v875 = vld [vmem:[#allocation10 + $0x250] sm:$0xff]
    %v876 = vld [vmem:[#allocation10 + $0x258] sm:$0xff]
    %v877 = vld [vmem:[#allocation10 + $0x260] sm:$0xff]
    %v878 = vld [vmem:[#allocation10 + $0x268] sm:$0xff]
    %v879 = vld [vmem:[#allocation10 + $0x270] sm:$0xff]
    %v880 = vld [vmem:[#allocation10 + $0x278] sm:$0xff]
    %v881 = vld [vmem:[#allocation10 + $0x280] sm:$0xff]
    %v882 = vld [vmem:[#allocation10 + $0x288] sm:$0xff]
    %v883 = vld [vmem:[#allocation10 + $0x290] sm:$0xff]
    %v884 = vld [vmem:[#allocation10 + $0x298] sm:$0xff]
    %v885 = vld [vmem:[#allocation10 + $0x2a0] sm:$0xff]
    %v886 = vld [vmem:[#allocation10 + $0x2a8] sm:$0xff]
    %v887 = vld [vmem:[#allocation10 + $0x2b0] sm:$0xff]
    %v888 = vld [vmem:[#allocation10 + $0x2b8] sm:$0xff]
    %v889 = vld [vmem:[#allocation10 + $0x2c0] sm:$0xff]
    %v890 = vld [vmem:[#allocation10 + $0x2c8] sm:$0xff]
    %v891 = vld [vmem:[#allocation10 + $0x2d0] sm:$0xff]
    %v892 = vld [vmem:[#allocation10 + $0x2d8] sm:$0xff]
    %v893 = vld [vmem:[#allocation10 + $0x2e0] sm:$0xff]
    %v894 = vld [vmem:[#allocation10 + $0x2e8] sm:$0xff]
    %v895 = vld [vmem:[#allocation10 + $0x2f0] sm:$0xff]
    %v896 = vld [vmem:[#allocation10 + $0x2f8] sm:$0xff]
    %v897 = vld [vmem:[#allocation10 + $0x300] sm:$0xff]
    %v898 = vld [vmem:[#allocation10 + $0x308] sm:$0xff]
    %v899 = vld [vmem:[#allocation10 + $0x310] sm:$0xff]
    %v900 = vld [vmem:[#allocation10 + $0x318] sm:$0xff]
    %v901 = vld [vmem:[#allocation10 + $0x320] sm:$0xff]
    %v902 = vld [vmem:[#allocation10 + $0x328] sm:$0xff]
    %v903 = vld [vmem:[#allocation10 + $0x330] sm:$0xff]
    %v904 = vld [vmem:[#allocation10 + $0x338] sm:$0xff]
    %v905 = vld [vmem:[#allocation10 + $0x340] sm:$0xff]
    %v906 = vld [vmem:[#allocation10 + $0x348] sm:$0xff]
    %v907 = vld [vmem:[#allocation10 + $0x350] sm:$0xff]
    %v908 = vld [vmem:[#allocation10 + $0x358] sm:$0xff]
    %v909 = vld [vmem:[#allocation10 + $0x360] sm:$0xff]
    %v910 = vld [vmem:[#allocation10 + $0x368] sm:$0xff]
    %v911 = vld [vmem:[#allocation10 + $0x370] sm:$0xff]
    %v912 = vld [vmem:[#allocation10 + $0x378] sm:$0xff]
    %v913 = vld [vmem:[#allocation10 + $0x380] sm:$0xff]
    %v914 = vld [vmem:[#allocation10 + $0x388] sm:$0xff]
    %v915 = vld [vmem:[#allocation10 + $0x390] sm:$0xff]
    %v916 = vld [vmem:[#allocation10 + $0x398] sm:$0xff]
    %v917 = vld [vmem:[#allocation10 + $0x3a0] sm:$0xff]
    %v918 = vld [vmem:[#allocation10 + $0x3a8] sm:$0xff]
    %v919 = vld [vmem:[#allocation10 + $0x3b0] sm:$0xff]
    %v920 = vld [vmem:[#allocation10 + $0x3b8] sm:$0xff]
    %v921 = vld [vmem:[#allocation10 + $0x3c0] sm:$0xff]
    %v922 = vld [vmem:[#allocation10 + $0x3c8] sm:$0xff]
    %v923 = vld [vmem:[#allocation10 + $0x3d0] sm:$0xff]
    %v924 = vld [vmem:[#allocation10 + $0x3d8] sm:$0xff]
    %v925 = vld [vmem:[#allocation10 + $0x3e0] sm:$0xff]
    %v926 = vld [vmem:[#allocation10 + $0x3e8] sm:$0xff]
    %v927 = vld [vmem:[#allocation10 + $0x3f0] sm:$0xff]
    %v928 = vld [vmem:[#allocation10 + $0x3f8] sm:$0xff]
    %v929 = vld [vmem:[#allocation10 + $0x400] sm:$0xff]
    %v930 = vld [vmem:[#allocation10 + $0x408] sm:$0xff]
    %v931 = vld [vmem:[#allocation10 + $0x410] sm:$0xff]
    %v932 = vld [vmem:[#allocation10 + $0x418] sm:$0xff]
    %v933 = vld [vmem:[#allocation10 + $0x420] sm:$0xff]
    %v934 = vld [vmem:[#allocation10 + $0x428] sm:$0xff]
    %v935 = vld [vmem:[#allocation10 + $0x430] sm:$0xff]
    %v936 = vld [vmem:[#allocation10 + $0x438] sm:$0xff]
    %v937 = vld [vmem:[#allocation10 + $0x440] sm:$0xff]
    %v938 = vld [vmem:[#allocation10 + $0x448] sm:$0xff]
    %v939 = vld [vmem:[#allocation10 + $0x450] sm:$0xff]
    %v940 = vld [vmem:[#allocation10 + $0x458] sm:$0xff]
    %v941 = vld [vmem:[#allocation10 + $0x460] sm:$0xff]
    %v942 = vld [vmem:[#allocation10 + $0x468] sm:$0xff]
    %v943 = vld [vmem:[#allocation10 + $0x470] sm:$0xff]
    %v944 = vld [vmem:[#allocation10 + $0x478] sm:$0xff]
    %v945 = vld [vmem:[#allocation10 + $0x480] sm:$0xff]
    %v946 = vld [vmem:[#allocation10 + $0x488] sm:$0xff]
    %v947 = vld [vmem:[#allocation10 + $0x490] sm:$0xff]
    %v948 = vld [vmem:[#allocation10 + $0x498] sm:$0xff]
    %v949 = vld [vmem:[#allocation10 + $0x4a0] sm:$0xff]
    %v950 = vld [vmem:[#allocation10 + $0x4a8] sm:$0xff]
    %v951 = vld [vmem:[#allocation10 + $0x4b0] sm:$0xff]
    %v952 = vld [vmem:[#allocation10 + $0x4b8] sm:$0xff]
    %v953 = vld [vmem:[#allocation10 + $0x4c0] sm:$0xff]
    %v954 = vld [vmem:[#allocation10 + $0x4c8] sm:$0xff]
    %v955 = vld [vmem:[#allocation10 + $0x4d0] sm:$0xff]
    %v956 = vld [vmem:[#allocation10 + $0x4d8] sm:$0xff]
    %v957 = vld [vmem:[#allocation10 + $0x4e0] sm:$0xff]
    %v958 = vld [vmem:[#allocation10 + $0x4e8] sm:$0xff]
    %v959 = vld [vmem:[#allocation10 + $0x4f0] sm:$0xff]
    %v960 = vld [vmem:[#allocation10 + $0x4f8] sm:$0xff]
    %v961 = vld [vmem:[#allocation10 + $0x500] sm:$0xff]
    %v962 = vld [vmem:[#allocation10 + $0x508] sm:$0xff]
    %v963 = vld [vmem:[#allocation10 + $0x510] sm:$0xff]
    %v964 = vld [vmem:[#allocation10 + $0x518] sm:$0xff]
    %v965 = vld [vmem:[#allocation10 + $0x520] sm:$0xff]
    %v966 = vld [vmem:[#allocation10 + $0x528] sm:$0xff]
    %v967 = vld [vmem:[#allocation10 + $0x530] sm:$0xff]
    %v968 = vld [vmem:[#allocation10 + $0x538] sm:$0xff]
    %v969 = vld [vmem:[#allocation10 + $0x540] sm:$0xff]
    %v970 = vld [vmem:[#allocation10 + $0x548] sm:$0xff]
    %v971 = vld [vmem:[#allocation10 + $0x550] sm:$0xff]
    %v972 = vld [vmem:[#allocation10 + $0x558] sm:$0xff]
    %v973 = vld [vmem:[#allocation10 + $0x560] sm:$0xff]
    %v974 = vld [vmem:[#allocation10 + $0x568] sm:$0xff]
    %v975 = vld [vmem:[#allocation10 + $0x570] sm:$0xff]
    %v976 = vld [vmem:[#allocation10 + $0x578] sm:$0xff]
    %v977 = vld [vmem:[#allocation10 + $0x580] sm:$0xff]
    %v978 = vld [vmem:[#allocation10 + $0x588] sm:$0xff]
    %v979 = vld [vmem:[#allocation10 + $0x590] sm:$0xff]
    %v980 = vld [vmem:[#allocation10 + $0x598] sm:$0xff]
    %v981 = vld [vmem:[#allocation10 + $0x5a0] sm:$0xff]
    %v982 = vld [vmem:[#allocation10 + $0x5a8] sm:$0xff]
    %v983 = vld [vmem:[#allocation10 + $0x5b0] sm:$0xff]
    %v984 = vld [vmem:[#allocation10 + $0x5b8] sm:$0xff]
    %v985 = vld [vmem:[#allocation10 + $0x5c0] sm:$0xff]
    %v986 = vld [vmem:[#allocation10 + $0x5c8] sm:$0xff]
    %v987 = vld [vmem:[#allocation10 + $0x5d0] sm:$0xff]
    %v988 = vld [vmem:[#allocation10 + $0x5d8] sm:$0xff]
    %v989 = vld [vmem:[#allocation10 + $0x5e0] sm:$0xff]
    %v990 = vld [vmem:[#allocation10 + $0x5e8] sm:$0xff]
    %v991 = vld [vmem:[#allocation10 + $0x5f0] sm:$0xff]
    %v992 = vld [vmem:[#allocation10 + $0x5f8] sm:$0xff]
    %v993 = vld [vmem:[#allocation10 + $0x600] sm:$0xff]
    %v994 = vld [vmem:[#allocation10 + $0x608] sm:$0xff]
    %v995 = vld [vmem:[#allocation10 + $0x610] sm:$0xff]
    %v996 = vld [vmem:[#allocation10 + $0x618] sm:$0xff]
    %v997 = vld [vmem:[#allocation10 + $0x620] sm:$0xff]
    %v998 = vld [vmem:[#allocation10 + $0x628] sm:$0xff]
    %v999 = vld [vmem:[#allocation10 + $0x630] sm:$0xff]
    %v1000 = vld [vmem:[#allocation10 + $0x638] sm:$0xff]
    %v1001 = vld [vmem:[#allocation10 + $0x640] sm:$0xff]
    %v1002 = vld [vmem:[#allocation10 + $0x648] sm:$0xff]
    %v1003 = vld [vmem:[#allocation10 + $0x650] sm:$0xff]
    %v1004 = vld [vmem:[#allocation10 + $0x658] sm:$0xff]
    %v1005 = vld [vmem:[#allocation10 + $0x660] sm:$0xff]
    %v1006 = vld [vmem:[#allocation10 + $0x668] sm:$0xff]
    %v1007 = vld [vmem:[#allocation10 + $0x670] sm:$0xff]
    %v1008 = vld [vmem:[#allocation10 + $0x678] sm:$0xff]
    %v1009 = vld [vmem:[#allocation10 + $0x680] sm:$0xff]
    %v1010 = vld [vmem:[#allocation10 + $0x688] sm:$0xff]
    %v1011 = vld [vmem:[#allocation10 + $0x690] sm:$0xff]
    %v1012 = vld [vmem:[#allocation10 + $0x698] sm:$0xff]
    %v1013 = vld [vmem:[#allocation10 + $0x6a0] sm:$0xff]
    %v1014 = vld [vmem:[#allocation10 + $0x6a8] sm:$0xff]
    %v1015 = vld [vmem:[#allocation10 + $0x6b0] sm:$0xff]
    %v1016 = vld [vmem:[#allocation10 + $0x6b8] sm:$0xff]
    %v1017 = vld [vmem:[#allocation10 + $0x6c0] sm:$0xff]
    %v1018 = vld [vmem:[#allocation10 + $0x6c8] sm:$0xff]
    %v1019 = vld [vmem:[#allocation10 + $0x6d0] sm:$0xff]
    %v1020 = vld [vmem:[#allocation10 + $0x6d8] sm:$0xff]
    %v1021 = vld [vmem:[#allocation10 + $0x6e0] sm:$0xff]
    %v1022 = vld [vmem:[#allocation10 + $0x6e8] sm:$0xff]
    %v1023 = vld [vmem:[#allocation10 + $0x6f0] sm:$0xff]
    %v1024 = vld [vmem:[#allocation10 + $0x6f8] sm:$0xff]
    %v1025 = vld [vmem:[#allocation10 + $0x700] sm:$0xff]
    %v1026 = vld [vmem:[#allocation10 + $0x708] sm:$0xff]
    %v1027 = vld [vmem:[#allocation10 + $0x710] sm:$0xff]
    %v1028 = vld [vmem:[#allocation10 + $0x718] sm:$0xff]
    %v1029 = vld [vmem:[#allocation10 + $0x720] sm:$0xff]
    %v1030 = vld [vmem:[#allocation10 + $0x728] sm:$0xff]
    %v1031 = vld [vmem:[#allocation10 + $0x730] sm:$0xff]
    %v1032 = vld [vmem:[#allocation10 + $0x738] sm:$0xff]
    %v1033 = vld [vmem:[#allocation10 + $0x740] sm:$0xff]
    %v1034 = vld [vmem:[#allocation10 + $0x748] sm:$0xff]
    %v1035 = vld [vmem:[#allocation10 + $0x750] sm:$0xff]
    %v1036 = vld [vmem:[#allocation10 + $0x758] sm:$0xff]
    %v1037 = vld [vmem:[#allocation10 + $0x760] sm:$0xff]
    %v1038 = vld [vmem:[#allocation10 + $0x768] sm:$0xff]
    %v1039 = vld [vmem:[#allocation10 + $0x770] sm:$0xff]
    %v1040 = vld [vmem:[#allocation10 + $0x778] sm:$0xff]
    %v1041 = vld [vmem:[#allocation10 + $0x780] sm:$0xff]
    %v1042 = vld [vmem:[#allocation10 + $0x788] sm:$0xff]
    %v1043 = vld [vmem:[#allocation10 + $0x790] sm:$0xff]
    %v1044 = vld [vmem:[#allocation10 + $0x798] sm:$0xff]
    %v1045 = vld [vmem:[#allocation10 + $0x7a0] sm:$0xff]
    %v1046 = vld [vmem:[#allocation10 + $0x7a8] sm:$0xff]
    %v1047 = vld [vmem:[#allocation10 + $0x7b0] sm:$0xff]
    %v1048 = vld [vmem:[#allocation10 + $0x7b8] sm:$0xff]
    %v1049 = vld [vmem:[#allocation10 + $0x7c0] sm:$0xff]
    %v1050 = vld [vmem:[#allocation10 + $0x7c8] sm:$0xff]
    %v1051 = vld [vmem:[#allocation10 + $0x7d0] sm:$0xff]
    %v1052 = vld [vmem:[#allocation10 + $0x7d8] sm:$0xff]
    %v1053 = vld [vmem:[#allocation10 + $0x7e0] sm:$0xff]
    %v1054 = vld [vmem:[#allocation10 + $0x7e8] sm:$0xff]
    %v1055 = vld [vmem:[#allocation10 + $0x7f0] sm:$0xff]
    %v1056 = vld [vmem:[#allocation10 + $0x7f8] sm:$0xff]
    %v1057 = vld [vmem:[%s6] sm:$0xff]
    %v1059 = vlaneseq
    %v1060 = vshrl.u32 %v1059, 7
    %v1061 = vsub.s32 0, %v1060
    %v1062 = vrot.slane %v1057, %v1061
    %v1063 = vlaneseq
    %v1064 = vshrl.u32 %v1063, 7
    %v1065 = vsub.s32 1, %v1064
    %v1066 = vrot.slane %v1057, %v1065
    %v1067 = vlaneseq
    %v1068 = vshrl.u32 %v1067, 7
    %v1069 = vsub.s32 2, %v1068
    %v1070 = vrot.slane %v1057, %v1069
    %v1071 = vlaneseq
    %v1072 = vshrl.u32 %v1071, 7
    %v1073 = vsub.s32 3, %v1072
    %v1074 = vrot.slane %v1057, %v1073
    %v1075 = vlaneseq
    %v1076 = vshrl.u32 %v1075, 7
    %v1077 = vsub.s32 4, %v1076
    %v1078 = vrot.slane %v1057, %v1077
    %v1079 = vlaneseq
    %v1080 = vshrl.u32 %v1079, 7
    %v1081 = vsub.s32 5, %v1080
    %v1082 = vrot.slane %v1057, %v1081
    %v1083 = vlaneseq
    %v1084 = vshrl.u32 %v1083, 7
    %v1085 = vsub.s32 6, %v1084
    %v1086 = vrot.slane %v1057, %v1085
    %v1087 = vlaneseq
    %v1088 = vshrl.u32 %v1087, 7
    %v1089 = vsub.s32 7, %v1088
    %v1090 = vrot.slane %v1057, %v1089
    %v1355 = vunpack.c.l.b16 %v801
    %v1356 = vunpack.c.h.b16 %v801
    %v1357 = vunpack.c.l.b16 %v802
    %v1358 = vunpack.c.h.b16 %v802
    %v1359 = vunpack.c.l.b16 %v803
    %v1360 = vunpack.c.h.b16 %v803
    %v1361 = vunpack.c.l.b16 %v804
    %v1362 = vunpack.c.h.b16 %v804
    %v1363 = vunpack.c.l.b16 %v805
    %v1364 = vunpack.c.h.b16 %v805
    %v1365 = vunpack.c.l.b16 %v806
    %v1366 = vunpack.c.h.b16 %v806
    %v1367 = vunpack.c.l.b16 %v807
    %v1368 = vunpack.c.h.b16 %v807
    %v1369 = vunpack.c.l.b16 %v808
    %v1370 = vunpack.c.h.b16 %v808
    %v1371 = vunpack.c.l.b16 %v809
    %v1372 = vunpack.c.h.b16 %v809
    %v1373 = vunpack.c.l.b16 %v810
    %v1374 = vunpack.c.h.b16 %v810
    %v1375 = vunpack.c.l.b16 %v811
    %v1376 = vunpack.c.h.b16 %v811
    %v1377 = vunpack.c.l.b16 %v812
    %v1378 = vunpack.c.h.b16 %v812
    %v1379 = vunpack.c.l.b16 %v813
    %v1380 = vunpack.c.h.b16 %v813
    %v1381 = vunpack.c.l.b16 %v814
    %v1382 = vunpack.c.h.b16 %v814
    %v1383 = vunpack.c.l.b16 %v815
    %v1384 = vunpack.c.h.b16 %v815
    %v1385 = vunpack.c.l.b16 %v816
    %v1386 = vunpack.c.h.b16 %v816
    %v1387 = vunpack.c.l.b16 %v817
    %v1388 = vunpack.c.h.b16 %v817
    %v1389 = vunpack.c.l.b16 %v818
    %v1390 = vunpack.c.h.b16 %v818
    %v1391 = vunpack.c.l.b16 %v819
    %v1392 = vunpack.c.h.b16 %v819
    %v1393 = vunpack.c.l.b16 %v820
    %v1394 = vunpack.c.h.b16 %v820
    %v1395 = vunpack.c.l.b16 %v821
    %v1396 = vunpack.c.h.b16 %v821
    %v1397 = vunpack.c.l.b16 %v822
    %v1398 = vunpack.c.h.b16 %v822
    %v1399 = vunpack.c.l.b16 %v823
    %v1400 = vunpack.c.h.b16 %v823
    %v1401 = vunpack.c.l.b16 %v824
    %v1402 = vunpack.c.h.b16 %v824
    %v1403 = vunpack.c.l.b16 %v825
    %v1404 = vunpack.c.h.b16 %v825
    %v1405 = vunpack.c.l.b16 %v826
    %v1406 = vunpack.c.h.b16 %v826
    %v1407 = vunpack.c.l.b16 %v827
    %v1408 = vunpack.c.h.b16 %v827
    %v1409 = vunpack.c.l.b16 %v828
    %v1410 = vunpack.c.h.b16 %v828
    %v1411 = vunpack.c.l.b16 %v829
    %v1412 = vunpack.c.h.b16 %v829
    %v1413 = vunpack.c.l.b16 %v830
    %v1414 = vunpack.c.h.b16 %v830
    %v1415 = vunpack.c.l.b16 %v831
    %v1416 = vunpack.c.h.b16 %v831
    %v1417 = vunpack.c.l.b16 %v832
    %v1418 = vunpack.c.h.b16 %v832
    %v1419 = vunpack.c.l.b16 %v833
    %v1420 = vunpack.c.h.b16 %v833
    %v1421 = vunpack.c.l.b16 %v834
    %v1422 = vunpack.c.h.b16 %v834
    %v1423 = vunpack.c.l.b16 %v835
    %v1424 = vunpack.c.h.b16 %v835
    %v1425 = vunpack.c.l.b16 %v836
    %v1426 = vunpack.c.h.b16 %v836
    %v1427 = vunpack.c.l.b16 %v837
    %v1428 = vunpack.c.h.b16 %v837
    %v1429 = vunpack.c.l.b16 %v838
    %v1430 = vunpack.c.h.b16 %v838
    %v1431 = vunpack.c.l.b16 %v839
    %v1432 = vunpack.c.h.b16 %v839
    %v1433 = vunpack.c.l.b16 %v840
    %v1434 = vunpack.c.h.b16 %v840
    %v1435 = vunpack.c.l.b16 %v841
    %v1436 = vunpack.c.h.b16 %v841
    %v1437 = vunpack.c.l.b16 %v842
    %v1438 = vunpack.c.h.b16 %v842
    %v1439 = vunpack.c.l.b16 %v843
    %v1440 = vunpack.c.h.b16 %v843
    %v1441 = vunpack.c.l.b16 %v844
    %v1442 = vunpack.c.h.b16 %v844
    %v1443 = vunpack.c.l.b16 %v845
    %v1444 = vunpack.c.h.b16 %v845
    %v1445 = vunpack.c.l.b16 %v846
    %v1446 = vunpack.c.h.b16 %v846
    %v1447 = vunpack.c.l.b16 %v847
    %v1448 = vunpack.c.h.b16 %v847
    %v1449 = vunpack.c.l.b16 %v848
    %v1450 = vunpack.c.h.b16 %v848
    %v1451 = vunpack.c.l.b16 %v849
    %v1452 = vunpack.c.h.b16 %v849
    %v1453 = vunpack.c.l.b16 %v850
    %v1454 = vunpack.c.h.b16 %v850
    %v1455 = vunpack.c.l.b16 %v851
    %v1456 = vunpack.c.h.b16 %v851
    %v1457 = vunpack.c.l.b16 %v852
    %v1458 = vunpack.c.h.b16 %v852
    %v1459 = vunpack.c.l.b16 %v853
    %v1460 = vunpack.c.h.b16 %v853
    %v1461 = vunpack.c.l.b16 %v854
    %v1462 = vunpack.c.h.b16 %v854
    %v1463 = vunpack.c.l.b16 %v855
    %v1464 = vunpack.c.h.b16 %v855
    %v1465 = vunpack.c.l.b16 %v856
    %v1466 = vunpack.c.h.b16 %v856
    %v1467 = vunpack.c.l.b16 %v857
    %v1468 = vunpack.c.h.b16 %v857
    %v1469 = vunpack.c.l.b16 %v858
    %v1470 = vunpack.c.h.b16 %v858
    %v1471 = vunpack.c.l.b16 %v859
    %v1472 = vunpack.c.h.b16 %v859
    %v1473 = vunpack.c.l.b16 %v860
    %v1474 = vunpack.c.h.b16 %v860
    %v1475 = vunpack.c.l.b16 %v861
    %v1476 = vunpack.c.h.b16 %v861
    %v1477 = vunpack.c.l.b16 %v862
    %v1478 = vunpack.c.h.b16 %v862
    %v1479 = vunpack.c.l.b16 %v863
    %v1480 = vunpack.c.h.b16 %v863
    %v1481 = vunpack.c.l.b16 %v864
    %v1482 = vunpack.c.h.b16 %v864
    %v1483 = vunpack.c.l.b16 %v865
    %v1484 = vunpack.c.h.b16 %v865
    %v1485 = vunpack.c.l.b16 %v866
    %v1486 = vunpack.c.h.b16 %v866
    %v1487 = vunpack.c.l.b16 %v867
    %v1488 = vunpack.c.h.b16 %v867
    %v1489 = vunpack.c.l.b16 %v868
    %v1490 = vunpack.c.h.b16 %v868
    %v1491 = vunpack.c.l.b16 %v869
    %v1492 = vunpack.c.h.b16 %v869
    %v1493 = vunpack.c.l.b16 %v870
    %v1494 = vunpack.c.h.b16 %v870
    %v1495 = vunpack.c.l.b16 %v871
    %v1496 = vunpack.c.h.b16 %v871
    %v1497 = vunpack.c.l.b16 %v872
    %v1498 = vunpack.c.h.b16 %v872
    %v1499 = vunpack.c.l.b16 %v873
    %v1500 = vunpack.c.h.b16 %v873
    %v1501 = vunpack.c.l.b16 %v874
    %v1502 = vunpack.c.h.b16 %v874
    %v1503 = vunpack.c.l.b16 %v875
    %v1504 = vunpack.c.h.b16 %v875
    %v1505 = vunpack.c.l.b16 %v876
    %v1506 = vunpack.c.h.b16 %v876
    %v1507 = vunpack.c.l.b16 %v877
    %v1508 = vunpack.c.h.b16 %v877
    %v1509 = vunpack.c.l.b16 %v878
    %v1510 = vunpack.c.h.b16 %v878
    %v1511 = vunpack.c.l.b16 %v879
    %v1512 = vunpack.c.h.b16 %v879
    %v1513 = vunpack.c.l.b16 %v880
    %v1514 = vunpack.c.h.b16 %v880
    %v1515 = vunpack.c.l.b16 %v881
    %v1516 = vunpack.c.h.b16 %v881
    %v1517 = vunpack.c.l.b16 %v882
    %v1518 = vunpack.c.h.b16 %v882
    %v1519 = vunpack.c.l.b16 %v883
    %v1520 = vunpack.c.h.b16 %v883
    %v1521 = vunpack.c.l.b16 %v884
    %v1522 = vunpack.c.h.b16 %v884
    %v1523 = vunpack.c.l.b16 %v885
    %v1524 = vunpack.c.h.b16 %v885
    %v1525 = vunpack.c.l.b16 %v886
    %v1526 = vunpack.c.h.b16 %v886
    %v1527 = vunpack.c.l.b16 %v887
    %v1528 = vunpack.c.h.b16 %v887
    %v1529 = vunpack.c.l.b16 %v888
    %v1530 = vunpack.c.h.b16 %v888
    %v1531 = vunpack.c.l.b16 %v889
    %v1532 = vunpack.c.h.b16 %v889
    %v1533 = vunpack.c.l.b16 %v890
    %v1534 = vunpack.c.h.b16 %v890
    %v1535 = vunpack.c.l.b16 %v891
    %v1536 = vunpack.c.h.b16 %v891
    %v1537 = vunpack.c.l.b16 %v892
    %v1538 = vunpack.c.h.b16 %v892
    %v1539 = vunpack.c.l.b16 %v893
    %v1540 = vunpack.c.h.b16 %v893
    %v1541 = vunpack.c.l.b16 %v894
    %v1542 = vunpack.c.h.b16 %v894
    %v1543 = vunpack.c.l.b16 %v895
    %v1544 = vunpack.c.h.b16 %v895
    %v1545 = vunpack.c.l.b16 %v896
    %v1546 = vunpack.c.h.b16 %v896
    %v1547 = vunpack.c.l.b16 %v897
    %v1548 = vunpack.c.h.b16 %v897
    %v1549 = vunpack.c.l.b16 %v898
    %v1550 = vunpack.c.h.b16 %v898
    %v1551 = vunpack.c.l.b16 %v899
    %v1552 = vunpack.c.h.b16 %v899
    %v1553 = vunpack.c.l.b16 %v900
    %v1554 = vunpack.c.h.b16 %v900
    %v1555 = vunpack.c.l.b16 %v901
    %v1556 = vunpack.c.h.b16 %v901
    %v1557 = vunpack.c.l.b16 %v902
    %v1558 = vunpack.c.h.b16 %v902
    %v1559 = vunpack.c.l.b16 %v903
    %v1560 = vunpack.c.h.b16 %v903
    %v1561 = vunpack.c.l.b16 %v904
    %v1562 = vunpack.c.h.b16 %v904
    %v1563 = vunpack.c.l.b16 %v905
    %v1564 = vunpack.c.h.b16 %v905
    %v1565 = vunpack.c.l.b16 %v906
    %v1566 = vunpack.c.h.b16 %v906
    %v1567 = vunpack.c.l.b16 %v907
    %v1568 = vunpack.c.h.b16 %v907
    %v1569 = vunpack.c.l.b16 %v908
    %v1570 = vunpack.c.h.b16 %v908
    %v1571 = vunpack.c.l.b16 %v909
    %v1572 = vunpack.c.h.b16 %v909
    %v1573 = vunpack.c.l.b16 %v910
    %v1574 = vunpack.c.h.b16 %v910
    %v1575 = vunpack.c.l.b16 %v911
    %v1576 = vunpack.c.h.b16 %v911
    %v1577 = vunpack.c.l.b16 %v912
    %v1578 = vunpack.c.h.b16 %v912
    %v1579 = vunpack.c.l.b16 %v913
    %v1580 = vunpack.c.h.b16 %v913
    %v1581 = vunpack.c.l.b16 %v914
    %v1582 = vunpack.c.h.b16 %v914
    %v1583 = vunpack.c.l.b16 %v915
    %v1584 = vunpack.c.h.b16 %v915
    %v1585 = vunpack.c.l.b16 %v916
    %v1586 = vunpack.c.h.b16 %v916
    %v1587 = vunpack.c.l.b16 %v917
    %v1588 = vunpack.c.h.b16 %v917
    %v1589 = vunpack.c.l.b16 %v918
    %v1590 = vunpack.c.h.b16 %v918
    %v1591 = vunpack.c.l.b16 %v919
    %v1592 = vunpack.c.h.b16 %v919
    %v1593 = vunpack.c.l.b16 %v920
    %v1594 = vunpack.c.h.b16 %v920
    %v1595 = vunpack.c.l.b16 %v921
    %v1596 = vunpack.c.h.b16 %v921
    %v1597 = vunpack.c.l.b16 %v922
    %v1598 = vunpack.c.h.b16 %v922
    %v1599 = vunpack.c.l.b16 %v923
    %v1600 = vunpack.c.h.b16 %v923
    %v1601 = vunpack.c.l.b16 %v924
    %v1602 = vunpack.c.h.b16 %v924
    %v1603 = vunpack.c.l.b16 %v925
    %v1604 = vunpack.c.h.b16 %v925
    %v1605 = vunpack.c.l.b16 %v926
    %v1606 = vunpack.c.h.b16 %v926
    %v1607 = vunpack.c.l.b16 %v927
    %v1608 = vunpack.c.h.b16 %v927
    %v1609 = vunpack.c.l.b16 %v928
    %v1610 = vunpack.c.h.b16 %v928
    %v1611 = vunpack.c.l.b16 %v929
    %v1612 = vunpack.c.h.b16 %v929
    %v1613 = vunpack.c.l.b16 %v930
    %v1614 = vunpack.c.h.b16 %v930
    %v1615 = vunpack.c.l.b16 %v931
    %v1616 = vunpack.c.h.b16 %v931
    %v1617 = vunpack.c.l.b16 %v932
    %v1618 = vunpack.c.h.b16 %v932
    %v1619 = vunpack.c.l.b16 %v933
    %v1620 = vunpack.c.h.b16 %v933
    %v1621 = vunpack.c.l.b16 %v934
    %v1622 = vunpack.c.h.b16 %v934
    %v1623 = vunpack.c.l.b16 %v935
    %v1624 = vunpack.c.h.b16 %v935
    %v1625 = vunpack.c.l.b16 %v936
    %v1626 = vunpack.c.h.b16 %v936
    %v1627 = vunpack.c.l.b16 %v937
    %v1628 = vunpack.c.h.b16 %v937
    %v1629 = vunpack.c.l.b16 %v938
    %v1630 = vunpack.c.h.b16 %v938
    %v1631 = vunpack.c.l.b16 %v939
    %v1632 = vunpack.c.h.b16 %v939
    %v1633 = vunpack.c.l.b16 %v940
    %v1634 = vunpack.c.h.b16 %v940
    %v1635 = vunpack.c.l.b16 %v941
    %v1636 = vunpack.c.h.b16 %v941
    %v1637 = vunpack.c.l.b16 %v942
    %v1638 = vunpack.c.h.b16 %v942
    %v1639 = vunpack.c.l.b16 %v943
    %v1640 = vunpack.c.h.b16 %v943
    %v1641 = vunpack.c.l.b16 %v944
    %v1642 = vunpack.c.h.b16 %v944
    %v1643 = vunpack.c.l.b16 %v945
    %v1644 = vunpack.c.h.b16 %v945
    %v1645 = vunpack.c.l.b16 %v946
    %v1646 = vunpack.c.h.b16 %v946
    %v1647 = vunpack.c.l.b16 %v947
    %v1648 = vunpack.c.h.b16 %v947
    %v1649 = vunpack.c.l.b16 %v948
    %v1650 = vunpack.c.h.b16 %v948
    %v1651 = vunpack.c.l.b16 %v949
    %v1652 = vunpack.c.h.b16 %v949
    %v1653 = vunpack.c.l.b16 %v950
    %v1654 = vunpack.c.h.b16 %v950
    %v1655 = vunpack.c.l.b16 %v951
    %v1656 = vunpack.c.h.b16 %v951
    %v1657 = vunpack.c.l.b16 %v952
    %v1658 = vunpack.c.h.b16 %v952
    %v1659 = vunpack.c.l.b16 %v953
    %v1660 = vunpack.c.h.b16 %v953
    %v1661 = vunpack.c.l.b16 %v954
    %v1662 = vunpack.c.h.b16 %v954
    %v1663 = vunpack.c.l.b16 %v955
    %v1664 = vunpack.c.h.b16 %v955
    %v1665 = vunpack.c.l.b16 %v956
    %v1666 = vunpack.c.h.b16 %v956
    %v1667 = vunpack.c.l.b16 %v957
    %v1668 = vunpack.c.h.b16 %v957
    %v1669 = vunpack.c.l.b16 %v958
    %v1670 = vunpack.c.h.b16 %v958
    %v1671 = vunpack.c.l.b16 %v959
    %v1672 = vunpack.c.h.b16 %v959
    %v1673 = vunpack.c.l.b16 %v960
    %v1674 = vunpack.c.h.b16 %v960
    %v1675 = vunpack.c.l.b16 %v961
    %v1676 = vunpack.c.h.b16 %v961
    %v1677 = vunpack.c.l.b16 %v962
    %v1678 = vunpack.c.h.b16 %v962
    %v1679 = vunpack.c.l.b16 %v963
    %v1680 = vunpack.c.h.b16 %v963
    %v1681 = vunpack.c.l.b16 %v964
    %v1682 = vunpack.c.h.b16 %v964
    %v1683 = vunpack.c.l.b16 %v965
    %v1684 = vunpack.c.h.b16 %v965
    %v1685 = vunpack.c.l.b16 %v966
    %v1686 = vunpack.c.h.b16 %v966
    %v1687 = vunpack.c.l.b16 %v967
    %v1688 = vunpack.c.h.b16 %v967
    %v1689 = vunpack.c.l.b16 %v968
    %v1690 = vunpack.c.h.b16 %v968
    %v1691 = vunpack.c.l.b16 %v969
    %v1692 = vunpack.c.h.b16 %v969
    %v1693 = vunpack.c.l.b16 %v970
    %v1694 = vunpack.c.h.b16 %v970
    %v1695 = vunpack.c.l.b16 %v971
    %v1696 = vunpack.c.h.b16 %v971
    %v1697 = vunpack.c.l.b16 %v972
    %v1698 = vunpack.c.h.b16 %v972
    %v1699 = vunpack.c.l.b16 %v973
    %v1700 = vunpack.c.h.b16 %v973
    %v1701 = vunpack.c.l.b16 %v974
    %v1702 = vunpack.c.h.b16 %v974
    %v1703 = vunpack.c.l.b16 %v975
    %v1704 = vunpack.c.h.b16 %v975
    %v1705 = vunpack.c.l.b16 %v976
    %v1706 = vunpack.c.h.b16 %v976
    %v1707 = vunpack.c.l.b16 %v977
    %v1708 = vunpack.c.h.b16 %v977
    %v1709 = vunpack.c.l.b16 %v978
    %v1710 = vunpack.c.h.b16 %v978
    %v1711 = vunpack.c.l.b16 %v979
    %v1712 = vunpack.c.h.b16 %v979
    %v1713 = vunpack.c.l.b16 %v980
    %v1714 = vunpack.c.h.b16 %v980
    %v1715 = vunpack.c.l.b16 %v981
    %v1716 = vunpack.c.h.b16 %v981
    %v1717 = vunpack.c.l.b16 %v982
    %v1718 = vunpack.c.h.b16 %v982
    %v1719 = vunpack.c.l.b16 %v983
    %v1720 = vunpack.c.h.b16 %v983
    %v1721 = vunpack.c.l.b16 %v984
    %v1722 = vunpack.c.h.b16 %v984
    %v1723 = vunpack.c.l.b16 %v985
    %v1724 = vunpack.c.h.b16 %v985
    %v1725 = vunpack.c.l.b16 %v986
    %v1726 = vunpack.c.h.b16 %v986
    %v1727 = vunpack.c.l.b16 %v987
    %v1728 = vunpack.c.h.b16 %v987
    %v1729 = vunpack.c.l.b16 %v988
    %v1730 = vunpack.c.h.b16 %v988
    %v1731 = vunpack.c.l.b16 %v989
    %v1732 = vunpack.c.h.b16 %v989
    %v1733 = vunpack.c.l.b16 %v990
    %v1734 = vunpack.c.h.b16 %v990
    %v1735 = vunpack.c.l.b16 %v991
    %v1736 = vunpack.c.h.b16 %v991
    %v1737 = vunpack.c.l.b16 %v992
    %v1738 = vunpack.c.h.b16 %v992
    %v1739 = vunpack.c.l.b16 %v993
    %v1740 = vunpack.c.h.b16 %v993
    %v1741 = vunpack.c.l.b16 %v994
    %v1742 = vunpack.c.h.b16 %v994
    %v1743 = vunpack.c.l.b16 %v995
    %v1744 = vunpack.c.h.b16 %v995
    %v1745 = vunpack.c.l.b16 %v996
    %v1746 = vunpack.c.h.b16 %v996
    %v1747 = vunpack.c.l.b16 %v997
    %v1748 = vunpack.c.h.b16 %v997
    %v1749 = vunpack.c.l.b16 %v998
    %v1750 = vunpack.c.h.b16 %v998
    %v1751 = vunpack.c.l.b16 %v999
    %v1752 = vunpack.c.h.b16 %v999
    %v1753 = vunpack.c.l.b16 %v1000
    %v1754 = vunpack.c.h.b16 %v1000
    %v1755 = vunpack.c.l.b16 %v1001
    %v1756 = vunpack.c.h.b16 %v1001
    %v1757 = vunpack.c.l.b16 %v1002
    %v1758 = vunpack.c.h.b16 %v1002
    %v1759 = vunpack.c.l.b16 %v1003
    %v1760 = vunpack.c.h.b16 %v1003
    %v1761 = vunpack.c.l.b16 %v1004
    %v1762 = vunpack.c.h.b16 %v1004
    %v1763 = vunpack.c.l.b16 %v1005
    %v1764 = vunpack.c.h.b16 %v1005
    %v1765 = vunpack.c.l.b16 %v1006
    %v1766 = vunpack.c.h.b16 %v1006
    %v1767 = vunpack.c.l.b16 %v1007
    %v1768 = vunpack.c.h.b16 %v1007
    %v1769 = vunpack.c.l.b16 %v1008
    %v1770 = vunpack.c.h.b16 %v1008
    %v1771 = vunpack.c.l.b16 %v1009
    %v1772 = vunpack.c.h.b16 %v1009
    %v1773 = vunpack.c.l.b16 %v1010
    %v1774 = vunpack.c.h.b16 %v1010
    %v1775 = vunpack.c.l.b16 %v1011
    %v1776 = vunpack.c.h.b16 %v1011
    %v1777 = vunpack.c.l.b16 %v1012
    %v1778 = vunpack.c.h.b16 %v1012
    %v1779 = vunpack.c.l.b16 %v1013
    %v1780 = vunpack.c.h.b16 %v1013
    %v1781 = vunpack.c.l.b16 %v1014
    %v1782 = vunpack.c.h.b16 %v1014
    %v1783 = vunpack.c.l.b16 %v1015
    %v1784 = vunpack.c.h.b16 %v1015
    %v1785 = vunpack.c.l.b16 %v1016
    %v1786 = vunpack.c.h.b16 %v1016
    %v1787 = vunpack.c.l.b16 %v1017
    %v1788 = vunpack.c.h.b16 %v1017
    %v1789 = vunpack.c.l.b16 %v1018
    %v1790 = vunpack.c.h.b16 %v1018
    %v1791 = vunpack.c.l.b16 %v1019
    %v1792 = vunpack.c.h.b16 %v1019
    %v1793 = vunpack.c.l.b16 %v1020
    %v1794 = vunpack.c.h.b16 %v1020
    %v1795 = vunpack.c.l.b16 %v1021
    %v1796 = vunpack.c.h.b16 %v1021
    %v1797 = vunpack.c.l.b16 %v1022
    %v1798 = vunpack.c.h.b16 %v1022
    %v1799 = vunpack.c.l.b16 %v1023
    %v1800 = vunpack.c.h.b16 %v1023
    %v1801 = vunpack.c.l.b16 %v1024
    %v1802 = vunpack.c.h.b16 %v1024
    %v1803 = vunpack.c.l.b16 %v1025
    %v1804 = vunpack.c.h.b16 %v1025
    %v1805 = vunpack.c.l.b16 %v1026
    %v1806 = vunpack.c.h.b16 %v1026
    %v1807 = vunpack.c.l.b16 %v1027
    %v1808 = vunpack.c.h.b16 %v1027
    %v1809 = vunpack.c.l.b16 %v1028
    %v1810 = vunpack.c.h.b16 %v1028
    %v1811 = vunpack.c.l.b16 %v1029
    %v1812 = vunpack.c.h.b16 %v1029
    %v1813 = vunpack.c.l.b16 %v1030
    %v1814 = vunpack.c.h.b16 %v1030
    %v1815 = vunpack.c.l.b16 %v1031
    %v1816 = vunpack.c.h.b16 %v1031
    %v1817 = vunpack.c.l.b16 %v1032
    %v1818 = vunpack.c.h.b16 %v1032
    %v1819 = vunpack.c.l.b16 %v1033
    %v1820 = vunpack.c.h.b16 %v1033
    %v1821 = vunpack.c.l.b16 %v1034
    %v1822 = vunpack.c.h.b16 %v1034
    %v1823 = vunpack.c.l.b16 %v1035
    %v1824 = vunpack.c.h.b16 %v1035
    %v1825 = vunpack.c.l.b16 %v1036
    %v1826 = vunpack.c.h.b16 %v1036
    %v1827 = vunpack.c.l.b16 %v1037
    %v1828 = vunpack.c.h.b16 %v1037
    %v1829 = vunpack.c.l.b16 %v1038
    %v1830 = vunpack.c.h.b16 %v1038
    %v1831 = vunpack.c.l.b16 %v1039
    %v1832 = vunpack.c.h.b16 %v1039
    %v1833 = vunpack.c.l.b16 %v1040
    %v1834 = vunpack.c.h.b16 %v1040
    %v1835 = vunpack.c.l.b16 %v1041
    %v1836 = vunpack.c.h.b16 %v1041
    %v1837 = vunpack.c.l.b16 %v1042
    %v1838 = vunpack.c.h.b16 %v1042
    %v1839 = vunpack.c.l.b16 %v1043
    %v1840 = vunpack.c.h.b16 %v1043
    %v1841 = vunpack.c.l.b16 %v1044
    %v1842 = vunpack.c.h.b16 %v1044
    %v1843 = vunpack.c.l.b16 %v1045
    %v1844 = vunpack.c.h.b16 %v1045
    %v1845 = vunpack.c.l.b16 %v1046
    %v1846 = vunpack.c.h.b16 %v1046
    %v1847 = vunpack.c.l.b16 %v1047
    %v1848 = vunpack.c.h.b16 %v1047
    %v1849 = vunpack.c.l.b16 %v1048
    %v1850 = vunpack.c.h.b16 %v1048
    %v1851 = vunpack.c.l.b16 %v1049
    %v1852 = vunpack.c.h.b16 %v1049
    %v1853 = vunpack.c.l.b16 %v1050
    %v1854 = vunpack.c.h.b16 %v1050
    %v1855 = vunpack.c.l.b16 %v1051
    %v1856 = vunpack.c.h.b16 %v1051
    %v1857 = vunpack.c.l.b16 %v1052
    %v1858 = vunpack.c.h.b16 %v1052
    %v1859 = vunpack.c.l.b16 %v1053
    %v1860 = vunpack.c.h.b16 %v1053
    %v1861 = vunpack.c.l.b16 %v1054
    %v1862 = vunpack.c.h.b16 %v1054
    %v1863 = vunpack.c.l.b16 %v1055
    %v1864 = vunpack.c.h.b16 %v1055
    %v1865 = vunpack.c.l.b16 %v1056
    %v1866 = vunpack.c.h.b16 %v1056
    %v1867 = vpack.c.b16 %v1363, %v1355
    %v1868 = vpack.c.b16 %v1364, %v1356
    %v1869 = vpack.c.b16 %v1365, %v1357
    %v1870 = vpack.c.b16 %v1366, %v1358
    %v1871 = vpack.c.b16 %v1367, %v1359
    %v1872 = vpack.c.b16 %v1368, %v1360
    %v1873 = vpack.c.b16 %v1369, %v1361
    %v1874 = vpack.c.b16 %v1370, %v1362
    %v1875 = vpack.c.b16 %v1379, %v1371
    %v1876 = vpack.c.b16 %v1380, %v1372
    %v1877 = vpack.c.b16 %v1381, %v1373
    %v1878 = vpack.c.b16 %v1382, %v1374
    %v1879 = vpack.c.b16 %v1383, %v1375
    %v1880 = vpack.c.b16 %v1384, %v1376
    %v1881 = vpack.c.b16 %v1385, %v1377
    %v1882 = vpack.c.b16 %v1386, %v1378
    %v1883 = vpack.c.b16 %v1395, %v1387
    %v1884 = vpack.c.b16 %v1396, %v1388
    %v1885 = vpack.c.b16 %v1397, %v1389
    %v1886 = vpack.c.b16 %v1398, %v1390
    %v1887 = vpack.c.b16 %v1399, %v1391
    %v1888 = vpack.c.b16 %v1400, %v1392
    %v1889 = vpack.c.b16 %v1401, %v1393
    %v1890 = vpack.c.b16 %v1402, %v1394
    %v1891 = vpack.c.b16 %v1411, %v1403
    %v1892 = vpack.c.b16 %v1412, %v1404
    %v1893 = vpack.c.b16 %v1413, %v1405
    %v1894 = vpack.c.b16 %v1414, %v1406
    %v1895 = vpack.c.b16 %v1415, %v1407
    %v1896 = vpack.c.b16 %v1416, %v1408
    %v1897 = vpack.c.b16 %v1417, %v1409
    %v1898 = vpack.c.b16 %v1418, %v1410
    %v1899 = vpack.c.b16 %v1427, %v1419
    %v1900 = vpack.c.b16 %v1428, %v1420
    %v1901 = vpack.c.b16 %v1429, %v1421
    %v1902 = vpack.c.b16 %v1430, %v1422
    %v1903 = vpack.c.b16 %v1431, %v1423
    %v1904 = vpack.c.b16 %v1432, %v1424
    %v1905 = vpack.c.b16 %v1433, %v1425
    %v1906 = vpack.c.b16 %v1434, %v1426
    %v1907 = vpack.c.b16 %v1443, %v1435
    %v1908 = vpack.c.b16 %v1444, %v1436
    %v1909 = vpack.c.b16 %v1445, %v1437
    %v1910 = vpack.c.b16 %v1446, %v1438
    %v1911 = vpack.c.b16 %v1447, %v1439
    %v1912 = vpack.c.b16 %v1448, %v1440
    %v1913 = vpack.c.b16 %v1449, %v1441
    %v1914 = vpack.c.b16 %v1450, %v1442
    %v1915 = vpack.c.b16 %v1459, %v1451
    %v1916 = vpack.c.b16 %v1460, %v1452
    %v1917 = vpack.c.b16 %v1461, %v1453
    %v1918 = vpack.c.b16 %v1462, %v1454
    %v1919 = vpack.c.b16 %v1463, %v1455
    %v1920 = vpack.c.b16 %v1464, %v1456
    %v1921 = vpack.c.b16 %v1465, %v1457
    %v1922 = vpack.c.b16 %v1466, %v1458
    %v1923 = vpack.c.b16 %v1475, %v1467
    %v1924 = vpack.c.b16 %v1476, %v1468
    %v1925 = vpack.c.b16 %v1477, %v1469
    %v1926 = vpack.c.b16 %v1478, %v1470
    %v1927 = vpack.c.b16 %v1479, %v1471
    %v1928 = vpack.c.b16 %v1480, %v1472
    %v1929 = vpack.c.b16 %v1481, %v1473
    %v1930 = vpack.c.b16 %v1482, %v1474
    %v1931 = vpack.c.b16 %v1491, %v1483
    %v1932 = vpack.c.b16 %v1492, %v1484
    %v1933 = vpack.c.b16 %v1493, %v1485
    %v1934 = vpack.c.b16 %v1494, %v1486
    %v1935 = vpack.c.b16 %v1495, %v1487
    %v1936 = vpack.c.b16 %v1496, %v1488
    %v1937 = vpack.c.b16 %v1497, %v1489
    %v1938 = vpack.c.b16 %v1498, %v1490
    %v1939 = vpack.c.b16 %v1507, %v1499
    %v1940 = vpack.c.b16 %v1508, %v1500
    %v1941 = vpack.c.b16 %v1509, %v1501
    %v1942 = vpack.c.b16 %v1510, %v1502
    %v1943 = vpack.c.b16 %v1511, %v1503
    %v1944 = vpack.c.b16 %v1512, %v1504
    %v1945 = vpack.c.b16 %v1513, %v1505
    %v1946 = vpack.c.b16 %v1514, %v1506
    %v1947 = vpack.c.b16 %v1523, %v1515
    %v1948 = vpack.c.b16 %v1524, %v1516
    %v1949 = vpack.c.b16 %v1525, %v1517
    %v1950 = vpack.c.b16 %v1526, %v1518
    %v1951 = vpack.c.b16 %v1527, %v1519
    %v1952 = vpack.c.b16 %v1528, %v1520
    %v1953 = vpack.c.b16 %v1529, %v1521
    %v1954 = vpack.c.b16 %v1530, %v1522
    %v1955 = vpack.c.b16 %v1539, %v1531
    %v1956 = vpack.c.b16 %v1540, %v1532
    %v1957 = vpack.c.b16 %v1541, %v1533
    %v1958 = vpack.c.b16 %v1542, %v1534
    %v1959 = vpack.c.b16 %v1543, %v1535
    %v1960 = vpack.c.b16 %v1544, %v1536
    %v1961 = vpack.c.b16 %v1545, %v1537
    %v1962 = vpack.c.b16 %v1546, %v1538
    %v1963 = vpack.c.b16 %v1555, %v1547
    %v1964 = vpack.c.b16 %v1556, %v1548
    %v1965 = vpack.c.b16 %v1557, %v1549
    %v1966 = vpack.c.b16 %v1558, %v1550
    %v1967 = vpack.c.b16 %v1559, %v1551
    %v1968 = vpack.c.b16 %v1560, %v1552
    %v1969 = vpack.c.b16 %v1561, %v1553
    %v1970 = vpack.c.b16 %v1562, %v1554
    %v1971 = vpack.c.b16 %v1571, %v1563
    %v1972 = vpack.c.b16 %v1572, %v1564
    %v1973 = vpack.c.b16 %v1573, %v1565
    %v1974 = vpack.c.b16 %v1574, %v1566
    %v1975 = vpack.c.b16 %v1575, %v1567
    %v1976 = vpack.c.b16 %v1576, %v1568
    %v1977 = vpack.c.b16 %v1577, %v1569
    %v1978 = vpack.c.b16 %v1578, %v1570
    %v1979 = vpack.c.b16 %v1587, %v1579
    %v1980 = vpack.c.b16 %v1588, %v1580
    %v1981 = vpack.c.b16 %v1589, %v1581
    %v1982 = vpack.c.b16 %v1590, %v1582
    %v1983 = vpack.c.b16 %v1591, %v1583
    %v1984 = vpack.c.b16 %v1592, %v1584
    %v1985 = vpack.c.b16 %v1593, %v1585
    %v1986 = vpack.c.b16 %v1594, %v1586
    %v1987 = vpack.c.b16 %v1603, %v1595
    %v1988 = vpack.c.b16 %v1604, %v1596
    %v1989 = vpack.c.b16 %v1605, %v1597
    %v1990 = vpack.c.b16 %v1606, %v1598
    %v1991 = vpack.c.b16 %v1607, %v1599
    %v1992 = vpack.c.b16 %v1608, %v1600
    %v1993 = vpack.c.b16 %v1609, %v1601
    %v1994 = vpack.c.b16 %v1610, %v1602
    %v1995 = vpack.c.b16 %v1619, %v1611
    %v1996 = vpack.c.b16 %v1620, %v1612
    %v1997 = vpack.c.b16 %v1621, %v1613
    %v1998 = vpack.c.b16 %v1622, %v1614
    %v1999 = vpack.c.b16 %v1623, %v1615
    %v2000 = vpack.c.b16 %v1624, %v1616
    %v2001 = vpack.c.b16 %v1625, %v1617
    %v2002 = vpack.c.b16 %v1626, %v1618
    %v2003 = vpack.c.b16 %v1635, %v1627
    %v2004 = vpack.c.b16 %v1636, %v1628
    %v2005 = vpack.c.b16 %v1637, %v1629
    %v2006 = vpack.c.b16 %v1638, %v1630
    %v2007 = vpack.c.b16 %v1639, %v1631
    %v2008 = vpack.c.b16 %v1640, %v1632
    %v2009 = vpack.c.b16 %v1641, %v1633
    %v2010 = vpack.c.b16 %v1642, %v1634
    %v2011 = vpack.c.b16 %v1651, %v1643
    %v2012 = vpack.c.b16 %v1652, %v1644
    %v2013 = vpack.c.b16 %v1653, %v1645
    %v2014 = vpack.c.b16 %v1654, %v1646
    %v2015 = vpack.c.b16 %v1655, %v1647
    %v2016 = vpack.c.b16 %v1656, %v1648
    %v2017 = vpack.c.b16 %v1657, %v1649
    %v2018 = vpack.c.b16 %v1658, %v1650
    %v2019 = vpack.c.b16 %v1667, %v1659
    %v2020 = vpack.c.b16 %v1668, %v1660
    %v2021 = vpack.c.b16 %v1669, %v1661
    %v2022 = vpack.c.b16 %v1670, %v1662
    %v2023 = vpack.c.b16 %v1671, %v1663
    %v2024 = vpack.c.b16 %v1672, %v1664
    %v2025 = vpack.c.b16 %v1673, %v1665
    %v2026 = vpack.c.b16 %v1674, %v1666
    %v2027 = vpack.c.b16 %v1683, %v1675
    %v2028 = vpack.c.b16 %v1684, %v1676
    %v2029 = vpack.c.b16 %v1685, %v1677
    %v2030 = vpack.c.b16 %v1686, %v1678
    %v2031 = vpack.c.b16 %v1687, %v1679
    %v2032 = vpack.c.b16 %v1688, %v1680
    %v2033 = vpack.c.b16 %v1689, %v1681
    %v2034 = vpack.c.b16 %v1690, %v1682
    %v2035 = vpack.c.b16 %v1699, %v1691
    %v2036 = vpack.c.b16 %v1700, %v1692
    %v2037 = vpack.c.b16 %v1701, %v1693
    %v2038 = vpack.c.b16 %v1702, %v1694
    %v2039 = vpack.c.b16 %v1703, %v1695
    %v2040 = vpack.c.b16 %v1704, %v1696
    %v2041 = vpack.c.b16 %v1705, %v1697
    %v2042 = vpack.c.b16 %v1706, %v1698
    %v2043 = vpack.c.b16 %v1715, %v1707
    %v2044 = vpack.c.b16 %v1716, %v1708
    %v2045 = vpack.c.b16 %v1717, %v1709
    %v2046 = vpack.c.b16 %v1718, %v1710
    %v2047 = vpack.c.b16 %v1719, %v1711
    %v2048 = vpack.c.b16 %v1720, %v1712
    %v2049 = vpack.c.b16 %v1721, %v1713
    %v2050 = vpack.c.b16 %v1722, %v1714
    %v2051 = vpack.c.b16 %v1731, %v1723
    %v2052 = vpack.c.b16 %v1732, %v1724
    %v2053 = vpack.c.b16 %v1733, %v1725
    %v2054 = vpack.c.b16 %v1734, %v1726
    %v2055 = vpack.c.b16 %v1735, %v1727
    %v2056 = vpack.c.b16 %v1736, %v1728
    %v2057 = vpack.c.b16 %v1737, %v1729
    %v2058 = vpack.c.b16 %v1738, %v1730
    %v2059 = vpack.c.b16 %v1747, %v1739
    %v2060 = vpack.c.b16 %v1748, %v1740
    %v2061 = vpack.c.b16 %v1749, %v1741
    %v2062 = vpack.c.b16 %v1750, %v1742
    %v2063 = vpack.c.b16 %v1751, %v1743
    %v2064 = vpack.c.b16 %v1752, %v1744
    %v2065 = vpack.c.b16 %v1753, %v1745
    %v2066 = vpack.c.b16 %v1754, %v1746
    %v2067 = vpack.c.b16 %v1763, %v1755
    %v2068 = vpack.c.b16 %v1764, %v1756
    %v2069 = vpack.c.b16 %v1765, %v1757
    %v2070 = vpack.c.b16 %v1766, %v1758
    %v2071 = vpack.c.b16 %v1767, %v1759
    %v2072 = vpack.c.b16 %v1768, %v1760
    %v2073 = vpack.c.b16 %v1769, %v1761
    %v2074 = vpack.c.b16 %v1770, %v1762
    %v2075 = vpack.c.b16 %v1779, %v1771
    %v2076 = vpack.c.b16 %v1780, %v1772
    %v2077 = vpack.c.b16 %v1781, %v1773
    %v2078 = vpack.c.b16 %v1782, %v1774
    %v2079 = vpack.c.b16 %v1783, %v1775
    %v2080 = vpack.c.b16 %v1784, %v1776
    %v2081 = vpack.c.b16 %v1785, %v1777
    %v2082 = vpack.c.b16 %v1786, %v1778
    %v2083 = vpack.c.b16 %v1795, %v1787
    %v2084 = vpack.c.b16 %v1796, %v1788
    %v2085 = vpack.c.b16 %v1797, %v1789
    %v2086 = vpack.c.b16 %v1798, %v1790
    %v2087 = vpack.c.b16 %v1799, %v1791
    %v2088 = vpack.c.b16 %v1800, %v1792
    %v2089 = vpack.c.b16 %v1801, %v1793
    %v2090 = vpack.c.b16 %v1802, %v1794
    %v2091 = vpack.c.b16 %v1811, %v1803
    %v2092 = vpack.c.b16 %v1812, %v1804
    %v2093 = vpack.c.b16 %v1813, %v1805
    %v2094 = vpack.c.b16 %v1814, %v1806
    %v2095 = vpack.c.b16 %v1815, %v1807
    %v2096 = vpack.c.b16 %v1816, %v1808
    %v2097 = vpack.c.b16 %v1817, %v1809
    %v2098 = vpack.c.b16 %v1818, %v1810
    %v2099 = vpack.c.b16 %v1827, %v1819
    %v2100 = vpack.c.b16 %v1828, %v1820
    %v2101 = vpack.c.b16 %v1829, %v1821
    %v2102 = vpack.c.b16 %v1830, %v1822
    %v2103 = vpack.c.b16 %v1831, %v1823
    %v2104 = vpack.c.b16 %v1832, %v1824
    %v2105 = vpack.c.b16 %v1833, %v1825
    %v2106 = vpack.c.b16 %v1834, %v1826
    %v2107 = vpack.c.b16 %v1843, %v1835
    %v2108 = vpack.c.b16 %v1844, %v1836
    %v2109 = vpack.c.b16 %v1845, %v1837
    %v2110 = vpack.c.b16 %v1846, %v1838
    %v2111 = vpack.c.b16 %v1847, %v1839
    %v2112 = vpack.c.b16 %v1848, %v1840
    %v2113 = vpack.c.b16 %v1849, %v1841
    %v2114 = vpack.c.b16 %v1850, %v1842
    %v2115 = vpack.c.b16 %v1859, %v1851
    %v2116 = vpack.c.b16 %v1860, %v1852
    %v2117 = vpack.c.b16 %v1861, %v1853
    %v2118 = vpack.c.b16 %v1862, %v1854
    %v2119 = vpack.c.b16 %v1863, %v1855
    %v2120 = vpack.c.b16 %v1864, %v1856
    %v2121 = vpack.c.b16 %v1865, %v1857
    %v2122 = vpack.c.b16 %v1866, %v1858
    %2379 = vmatprep.subr.bf16.mxu0 %v1924
    %2380 = vmatpush1.bf16.msra.mxu0 %v1923
    %2381 = vmatprep.subr.bf16.mxu0 %v1916
    %2382 = vmatpush1.bf16.msra.mxu0 %v1915
    %2383 = vmatprep.subr.bf16.mxu0 %v1908
    %2384 = vmatpush1.bf16.msra.mxu0 %v1907
    %2385 = vmatprep.subr.bf16.mxu0 %v1900
    %2386 = vmatpush1.bf16.msra.mxu0 %v1899
    %2387 = vmatprep.subr.bf16.mxu0 %v1892
    %2388 = vmatpush1.bf16.msra.mxu0 %v1891
    %2389 = vmatprep.subr.bf16.mxu0 %v1884
    %2390 = vmatpush1.bf16.msra.mxu0 %v1883
    %2391 = vmatprep.subr.bf16.mxu0 %v1876
    %2392 = vmatpush1.bf16.msra.mxu0 %v1875
    %2393 = vmatprep.subr.bf16.mxu0 %v1868
    %2394 = vmatpush1.bf16.msra.mxu0 %v1867
    %2395 = vmatprep.subr.bf16.mxu0 %v1988
    %2396 = vmatpush2.bf16.msra.mxu0 %v1987
    %2397 = vmatprep.subr.bf16.mxu0 %v1980
    %2398 = vmatpush2.bf16.msra.mxu0 %v1979
    %2399 = vmatprep.subr.bf16.mxu0 %v1972
    %2400 = vmatpush2.bf16.msra.mxu0 %v1971
    %2401 = vmatprep.subr.bf16.mxu0 %v1964
    %2402 = vmatpush2.bf16.msra.mxu0 %v1963
    %2403 = vmatprep.subr.bf16.mxu0 %v1956
    %2404 = vmatpush2.bf16.msra.mxu0 %v1955
    %2405 = vmatprep.subr.bf16.mxu0 %v1948
    %2406 = vmatpush2.bf16.msra.mxu0 %v1947
    %2407 = vmatprep.subr.bf16.mxu0 %v1940
    %2408 = vmatpush2.bf16.msra.mxu0 %v1939
    %2409 = vmatprep.subr.bf16.mxu0 %v1932
    %2410 = vmatpush2.bf16.msra.mxu0 %v1931
    %2411 = vmatprep.mubr.bf16.mxu0 %v794
    %2412 = vmatmul.mubr.bf16.gmra.mxu0 %v793
    %v2413 = vpop.f32.mrf.mxu0
    %v2414 = vadd.f32 %v1062, %v2413
    %v2415 = vpop.f32.mrf.mxu0
    %v2416 = vadd.f32 %v1066, %v2415
    %v2417 = vpop.f32.mrf.mxu0
    %v2418 = vadd.f32 %v1062, %v2417
    %v2419 = vpop.f32.mrf.mxu0
    %v2420 = vadd.f32 %v1066, %v2419
    %2421 = vmatprep.mubr.bf16.mxu0 %v798
    %2422 = vmatmul.mubr.bf16.gmra.mxu0 %v797
    %v2423 = vpop.f32.mrf.mxu0
    %v2424 = vadd.f32 %v1062, %v2423
    %v2425 = vpop.f32.mrf.mxu0
    %v2426 = vadd.f32 %v1066, %v2425
    %v2427 = vpop.f32.mrf.mxu0
    %v2428 = vadd.f32 %v1062, %v2427
    %v2429 = vpop.f32.mrf.mxu0
    %v2430 = vadd.f32 %v1066, %v2429
    %2431 = vdwg.mxu0
    %2432 = vmatprep.subr.bf16.mxu0 %v2052
    %2433 = vmatpush1.bf16.msra.mxu0 %v2051
    %2434 = vmatprep.subr.bf16.mxu0 %v2044
    %2435 = vmatpush1.bf16.msra.mxu0 %v2043
    %2436 = vmatprep.subr.bf16.mxu0 %v2036
    %2437 = vmatpush1.bf16.msra.mxu0 %v2035
    %2438 = vmatprep.subr.bf16.mxu0 %v2028
    %2439 = vmatpush1.bf16.msra.mxu0 %v2027
    %2440 = vmatprep.subr.bf16.mxu0 %v2020
    %2441 = vmatpush1.bf16.msra.mxu0 %v2019
    %2442 = vmatprep.subr.bf16.mxu0 %v2012
    %2443 = vmatpush1.bf16.msra.mxu0 %v2011
    %2444 = vmatprep.subr.bf16.mxu0 %v2004
    %2445 = vmatpush1.bf16.msra.mxu0 %v2003
    %2446 = vmatprep.subr.bf16.mxu0 %v1996
    %2447 = vmatpush1.bf16.msra.mxu0 %v1995
    %2448 = vmatprep.subr.bf16.mxu0 %v2116
    %2449 = vmatpush2.bf16.msra.mxu0 %v2115
    %2450 = vmatprep.subr.bf16.mxu0 %v2108
    %2451 = vmatpush2.bf16.msra.mxu0 %v2107
    %2452 = vmatprep.subr.bf16.mxu0 %v2100
    %2453 = vmatpush2.bf16.msra.mxu0 %v2099
    %2454 = vmatprep.subr.bf16.mxu0 %v2092
    %2455 = vmatpush2.bf16.msra.mxu0 %v2091
    %2456 = vmatprep.subr.bf16.mxu0 %v2084
    %2457 = vmatpush2.bf16.msra.mxu0 %v2083
    %2458 = vmatprep.subr.bf16.mxu0 %v2076
    %2459 = vmatpush2.bf16.msra.mxu0 %v2075
    %2460 = vmatprep.subr.bf16.mxu0 %v2068
    %2461 = vmatpush2.bf16.msra.mxu0 %v2067
    %2462 = vmatprep.subr.bf16.mxu0 %v2060
    %2463 = vmatpush2.bf16.msra.mxu0 %v2059
    %2464 = vmatprep.mubr.bf16.mxu0 %v796
    %2465 = vmatmul.mubr.bf16.gmra.mxu0 %v795
    %v2466 = vpop.f32.mrf.mxu0
    %v2467 = vadd.f32 %v2414, %v2466
    %v2468 = vpop.f32.mrf.mxu0
    %v2469 = vadd.f32 %v2416, %v2468
    %v2470 = vpop.f32.mrf.mxu0
    %v2471 = vadd.f32 %v2418, %v2470
    %v2472 = vpop.f32.mrf.mxu0
    %v2473 = vadd.f32 %v2420, %v2472
    %2474 = vmatprep.mubr.bf16.mxu0 %v800
    %2475 = vmatmul.mubr.bf16.gmra.mxu0 %v799
    %v2476 = vpop.f32.mrf.mxu0
    %v2477 = vadd.f32 %v2424, %v2476
    %v2478 = vpop.f32.mrf.mxu0
    %v2479 = vadd.f32 %v2426, %v2478
    %v2480 = vpop.f32.mrf.mxu0
    %v2481 = vadd.f32 %v2428, %v2480
    %v2482 = vpop.f32.mrf.mxu0
    %v2483 = vadd.f32 %v2430, %v2482
    %2484 = vdwg.mxu0
    %2485 = vmatprep.subr.bf16.mxu0 %v1926
    %2486 = vmatpush1.bf16.msra.mxu0 %v1925
    %2487 = vmatprep.subr.bf16.mxu0 %v1918
    %2488 = vmatpush1.bf16.msra.mxu0 %v1917
    %2489 = vmatprep.subr.bf16.mxu0 %v1910
    %2490 = vmatpush1.bf16.msra.mxu0 %v1909
    %2491 = vmatprep.subr.bf16.mxu0 %v1902
    %2492 = vmatpush1.bf16.msra.mxu0 %v1901
    %2493 = vmatprep.subr.bf16.mxu0 %v1894
    %2494 = vmatpush1.bf16.msra.mxu0 %v1893
    %2495 = vmatprep.subr.bf16.mxu0 %v1886
    %2496 = vmatpush1.bf16.msra.mxu0 %v1885
    %2497 = vmatprep.subr.bf16.mxu0 %v1878
    %2498 = vmatpush1.bf16.msra.mxu0 %v1877
    %2499 = vmatprep.subr.bf16.mxu0 %v1870
    %2500 = vmatpush1.bf16.msra.mxu0 %v1869
    %2501 = vmatprep.subr.bf16.mxu0 %v1990
    %2502 = vmatpush2.bf16.msra.mxu0 %v1989
    %2503 = vmatprep.subr.bf16.mxu0 %v1982
    %2504 = vmatpush2.bf16.msra.mxu0 %v1981
    %2505 = vmatprep.subr.bf16.mxu0 %v1974
    %2506 = vmatpush2.bf16.msra.mxu0 %v1973
    %2507 = vmatprep.subr.bf16.mxu0 %v1966
    %2508 = vmatpush2.bf16.msra.mxu0 %v1965
    %2509 = vmatprep.subr.bf16.mxu0 %v1958
    %2510 = vmatpush2.bf16.msra.mxu0 %v1957
    %2511 = vmatprep.subr.bf16.mxu0 %v1950
    %2512 = vmatpush2.bf16.msra.mxu0 %v1949
    %2513 = vmatprep.subr.bf16.mxu0 %v1942
    %2514 = vmatpush2.bf16.msra.mxu0 %v1941
    %2515 = vmatprep.subr.bf16.mxu0 %v1934
    %2516 = vmatpush2.bf16.msra.mxu0 %v1933
    %2517 = vmatprep.mubr.bf16.mxu0 %v794
    %2518 = vmatmul.mubr.bf16.gmra.mxu0 %v793
    %v2519 = vpop.f32.mrf.mxu0
    %v2520 = vadd.f32 %v1070, %v2519
    %v2521 = vpop.f32.mrf.mxu0
    %v2522 = vadd.f32 %v1074, %v2521
    %v2523 = vpop.f32.mrf.mxu0
    %v2524 = vadd.f32 %v1070, %v2523
    %v2525 = vpop.f32.mrf.mxu0
    %v2526 = vadd.f32 %v1074, %v2525
    %2527 = vmatprep.mubr.bf16.mxu0 %v798
    %2528 = vmatmul.mubr.bf16.gmra.mxu0 %v797
    %v2529 = vpop.f32.mrf.mxu0
    %v2530 = vadd.f32 %v1070, %v2529
    %v2531 = vpop.f32.mrf.mxu0
    %v2532 = vadd.f32 %v1074, %v2531
    %v2533 = vpop.f32.mrf.mxu0
    %v2534 = vadd.f32 %v1070, %v2533
    %v2535 = vpop.f32.mrf.mxu0
    %v2536 = vadd.f32 %v1074, %v2535
    %2537 = vdwg.mxu0
    %2538 = vmatprep.subr.bf16.mxu0 %v2054
    %2539 = vmatpush1.bf16.msra.mxu0 %v2053
    %2540 = vmatprep.subr.bf16.mxu0 %v2046
    %2541 = vmatpush1.bf16.msra.mxu0 %v2045
    %2542 = vmatprep.subr.bf16.mxu0 %v2038
    %2543 = vmatpush1.bf16.msra.mxu0 %v2037
    %2544 = vmatprep.subr.bf16.mxu0 %v2030
    %2545 = vmatpush1.bf16.msra.mxu0 %v2029
    %2546 = vmatprep.subr.bf16.mxu0 %v2022
    %2547 = vmatpush1.bf16.msra.mxu0 %v2021
    %2548 = vmatprep.subr.bf16.mxu0 %v2014
    %2549 = vmatpush1.bf16.msra.mxu0 %v2013
    %2550 = vmatprep.subr.bf16.mxu0 %v2006
    %2551 = vmatpush1.bf16.msra.mxu0 %v2005
    %2552 = vmatprep.subr.bf16.mxu0 %v1998
    %2553 = vmatpush1.bf16.msra.mxu0 %v1997
    %2554 = vmatprep.subr.bf16.mxu0 %v2118
    %2555 = vmatpush2.bf16.msra.mxu0 %v2117
    %2556 = vmatprep.subr.bf16.mxu0 %v2110
    %2557 = vmatpush2.bf16.msra.mxu0 %v2109
    %2558 = vmatprep.subr.bf16.mxu0 %v2102
    %2559 = vmatpush2.bf16.msra.mxu0 %v2101
    %2560 = vmatprep.subr.bf16.mxu0 %v2094
    %2561 = vmatpush2.bf16.msra.mxu0 %v2093
    %2562 = vmatprep.subr.bf16.mxu0 %v2086
    %2563 = vmatpush2.bf16.msra.mxu0 %v2085
    %2564 = vmatprep.subr.bf16.mxu0 %v2078
    %2565 = vmatpush2.bf16.msra.mxu0 %v2077
    %2566 = vmatprep.subr.bf16.mxu0 %v2070
    %2567 = vmatpush2.bf16.msra.mxu0 %v2069
    %2568 = vmatprep.subr.bf16.mxu0 %v2062
    %2569 = vmatpush2.bf16.msra.mxu0 %v2061
    %2570 = vmatprep.mubr.bf16.mxu0 %v796
    %2571 = vmatmul.mubr.bf16.gmra.mxu0 %v795
    %v2572 = vpop.f32.mrf.mxu0
    %v2573 = vadd.f32 %v2520, %v2572
    %v2574 = vpop.f32.mrf.mxu0
    %v2575 = vadd.f32 %v2522, %v2574
    %v2576 = vpop.f32.mrf.mxu0
    %v2577 = vadd.f32 %v2524, %v2576
    %v2578 = vpop.f32.mrf.mxu0
    %v2579 = vadd.f32 %v2526, %v2578
    %2580 = vmatprep.mubr.bf16.mxu0 %v800
    %2581 = vmatmul.mubr.bf16.gmra.mxu0 %v799
    %v2582 = vpop.f32.mrf.mxu0
    %v2583 = vadd.f32 %v2530, %v2582
    %v2584 = vpop.f32.mrf.mxu0
    %v2585 = vadd.f32 %v2532, %v2584
    %v2586 = vpop.f32.mrf.mxu0
    %v2587 = vadd.f32 %v2534, %v2586
    %v2588 = vpop.f32.mrf.mxu0
    %v2589 = vadd.f32 %v2536, %v2588
    %2590 = vdwg.mxu0
    %2591 = vmatprep.subr.bf16.mxu0 %v1928
    %2592 = vmatpush1.bf16.msra.mxu0 %v1927
    %2593 = vmatprep.subr.bf16.mxu0 %v1920
    %2594 = vmatpush1.bf16.msra.mxu0 %v1919
    %2595 = vmatprep.subr.bf16.mxu0 %v1912
    %2596 = vmatpush1.bf16.msra.mxu0 %v1911
    %2597 = vmatprep.subr.bf16.mxu0 %v1904
    %2598 = vmatpush1.bf16.msra.mxu0 %v1903
    %2599 = vmatprep.subr.bf16.mxu0 %v1896
    %2600 = vmatpush1.bf16.msra.mxu0 %v1895
    %2601 = vmatprep.subr.bf16.mxu0 %v1888
    %2602 = vmatpush1.bf16.msra.mxu0 %v1887
    %2603 = vmatprep.subr.bf16.mxu0 %v1880
    %2604 = vmatpush1.bf16.msra.mxu0 %v1879
    %2605 = vmatprep.subr.bf16.mxu0 %v1872
    %2606 = vmatpush1.bf16.msra.mxu0 %v1871
    %2607 = vmatprep.subr.bf16.mxu0 %v1992
    %2608 = vmatpush2.bf16.msra.mxu0 %v1991
    %2609 = vmatprep.subr.bf16.mxu0 %v1984
    %2610 = vmatpush2.bf16.msra.mxu0 %v1983
    %2611 = vmatprep.subr.bf16.mxu0 %v1976
    %2612 = vmatpush2.bf16.msra.mxu0 %v1975
    %2613 = vmatprep.subr.bf16.mxu0 %v1968
    %2614 = vmatpush2.bf16.msra.mxu0 %v1967
    %2615 = vmatprep.subr.bf16.mxu0 %v1960
    %2616 = vmatpush2.bf16.msra.mxu0 %v1959
    %2617 = vmatprep.subr.bf16.mxu0 %v1952
    %2618 = vmatpush2.bf16.msra.mxu0 %v1951
    %2619 = vmatprep.subr.bf16.mxu0 %v1944
    %2620 = vmatpush2.bf16.msra.mxu0 %v1943
    %2621 = vmatprep.subr.bf16.mxu0 %v1936
    %2622 = vmatpush2.bf16.msra.mxu0 %v1935
    %2623 = vmatprep.mubr.bf16.mxu0 %v794
    %2624 = vmatmul.mubr.bf16.gmra.mxu0 %v793
    %v2625 = vpop.f32.mrf.mxu0
    %v2626 = vadd.f32 %v1078, %v2625
    %v2627 = vpop.f32.mrf.mxu0
    %v2628 = vadd.f32 %v1082, %v2627
    %v2629 = vpop.f32.mrf.mxu0
    %v2630 = vadd.f32 %v1078, %v2629
    %v2631 = vpop.f32.mrf.mxu0
    %v2632 = vadd.f32 %v1082, %v2631
    %2633 = vmatprep.mubr.bf16.mxu0 %v798
    %2634 = vmatmul.mubr.bf16.gmra.mxu0 %v797
    %v2635 = vpop.f32.mrf.mxu0
    %v2636 = vadd.f32 %v1078, %v2635
    %v2637 = vpop.f32.mrf.mxu0
    %v2638 = vadd.f32 %v1082, %v2637
    %v2639 = vpop.f32.mrf.mxu0
    %v2640 = vadd.f32 %v1078, %v2639
    %v2641 = vpop.f32.mrf.mxu0
    %v2642 = vadd.f32 %v1082, %v2641
    %2643 = vdwg.mxu0
    %2644 = vmatprep.subr.bf16.mxu0 %v2056
    %2645 = vmatpush1.bf16.msra.mxu0 %v2055
    %2646 = vmatprep.subr.bf16.mxu0 %v2048
    %2647 = vmatpush1.bf16.msra.mxu0 %v2047
    %2648 = vmatprep.subr.bf16.mxu0 %v2040
    %2649 = vmatpush1.bf16.msra.mxu0 %v2039
    %2650 = vmatprep.subr.bf16.mxu0 %v2032
    %2651 = vmatpush1.bf16.msra.mxu0 %v2031
    %2652 = vmatprep.subr.bf16.mxu0 %v2024
    %2653 = vmatpush1.bf16.msra.mxu0 %v2023
    %2654 = vmatprep.subr.bf16.mxu0 %v2016
    %2655 = vmatpush1.bf16.msra.mxu0 %v2015
    %2656 = vmatprep.subr.bf16.mxu0 %v2008
    %2657 = vmatpush1.bf16.msra.mxu0 %v2007
    %2658 = vmatprep.subr.bf16.mxu0 %v2000
    %2659 = vmatpush1.bf16.msra.mxu0 %v1999
    %2660 = vmatprep.subr.bf16.mxu0 %v2120
    %2661 = vmatpush2.bf16.msra.mxu0 %v2119
    %2662 = vmatprep.subr.bf16.mxu0 %v2112
    %2663 = vmatpush2.bf16.msra.mxu0 %v2111
    %2664 = vmatprep.subr.bf16.mxu0 %v2104
    %2665 = vmatpush2.bf16.msra.mxu0 %v2103
    %2666 = vmatprep.subr.bf16.mxu0 %v2096
    %2667 = vmatpush2.bf16.msra.mxu0 %v2095
    %2668 = vmatprep.subr.bf16.mxu0 %v2088
    %2669 = vmatpush2.bf16.msra.mxu0 %v2087
    %2670 = vmatprep.subr.bf16.mxu0 %v2080
    %2671 = vmatpush2.bf16.msra.mxu0 %v2079
    %2672 = vmatprep.subr.bf16.mxu0 %v2072
    %2673 = vmatpush2.bf16.msra.mxu0 %v2071
    %2674 = vmatprep.subr.bf16.mxu0 %v2064
    %2675 = vmatpush2.bf16.msra.mxu0 %v2063
    %2676 = vmatprep.mubr.bf16.mxu0 %v796
    %2677 = vmatmul.mubr.bf16.gmra.mxu0 %v795
    %v2678 = vpop.f32.mrf.mxu0
    %v2679 = vadd.f32 %v2626, %v2678
    %v2680 = vpop.f32.mrf.mxu0
    %v2681 = vadd.f32 %v2628, %v2680
    %v2682 = vpop.f32.mrf.mxu0
    %v2683 = vadd.f32 %v2630, %v2682
    %v2684 = vpop.f32.mrf.mxu0
    %v2685 = vadd.f32 %v2632, %v2684
    %2686 = vmatprep.mubr.bf16.mxu0 %v800
    %2687 = vmatmul.mubr.bf16.gmra.mxu0 %v799
    %v2688 = vpop.f32.mrf.mxu0
    %v2689 = vadd.f32 %v2636, %v2688
    %v2690 = vpop.f32.mrf.mxu0
    %v2691 = vadd.f32 %v2638, %v2690
    %v2692 = vpop.f32.mrf.mxu0
    %v2693 = vadd.f32 %v2640, %v2692
    %v2694 = vpop.f32.mrf.mxu0
    %v2695 = vadd.f32 %v2642, %v2694
    %2696 = vdwg.mxu0
    %2697 = vmatprep.subr.bf16.mxu0 %v1930
    %2698 = vmatpush1.bf16.msra.mxu0 %v1929
    %2699 = vmatprep.subr.bf16.mxu0 %v1922
    %2700 = vmatpush1.bf16.msra.mxu0 %v1921
    %2701 = vmatprep.subr.bf16.mxu0 %v1914
    %2702 = vmatpush1.bf16.msra.mxu0 %v1913
    %2703 = vmatprep.subr.bf16.mxu0 %v1906
    %2704 = vmatpush1.bf16.msra.mxu0 %v1905
    %2705 = vmatprep.subr.bf16.mxu0 %v1898
    %2706 = vmatpush1.bf16.msra.mxu0 %v1897
    %2707 = vmatprep.subr.bf16.mxu0 %v1890
    %2708 = vmatpush1.bf16.msra.mxu0 %v1889
    %2709 = vmatprep.subr.bf16.mxu0 %v1882
    %2710 = vmatpush1.bf16.msra.mxu0 %v1881
    %2711 = vmatprep.subr.bf16.mxu0 %v1874
    %2712 = vmatpush1.bf16.msra.mxu0 %v1873
    %2713 = vmatprep.subr.bf16.mxu0 %v1994
    %2714 = vmatpush2.bf16.msra.mxu0 %v1993
    %2715 = vmatprep.subr.bf16.mxu0 %v1986
    %2716 = vmatpush2.bf16.msra.mxu0 %v1985
    %2717 = vmatprep.subr.bf16.mxu0 %v1978
    %2718 = vmatpush2.bf16.msra.mxu0 %v1977
    %2719 = vmatprep.subr.bf16.mxu0 %v1970
    %2720 = vmatpush2.bf16.msra.mxu0 %v1969
    %2721 = vmatprep.subr.bf16.mxu0 %v1962
    %2722 = vmatpush2.bf16.msra.mxu0 %v1961
    %2723 = vmatprep.subr.bf16.mxu0 %v1954
    %2724 = vmatpush2.bf16.msra.mxu0 %v1953
    %2725 = vmatprep.subr.bf16.mxu0 %v1946
    %2726 = vmatpush2.bf16.msra.mxu0 %v1945
    %2727 = vmatprep.subr.bf16.mxu0 %v1938
    %2728 = vmatpush2.bf16.msra.mxu0 %v1937
    %2729 = vmatprep.mubr.bf16.mxu0 %v794
    %2730 = vmatmul.mubr.bf16.gmra.mxu0 %v793
    %v2731 = vpop.f32.mrf.mxu0
    %v2732 = vadd.f32 %v1086, %v2731
    %v2733 = vpop.f32.mrf.mxu0
    %v2734 = vadd.f32 %v1090, %v2733
    %v2735 = vpop.f32.mrf.mxu0
    %v2736 = vadd.f32 %v1086, %v2735
    %v2737 = vpop.f32.mrf.mxu0
    %v2738 = vadd.f32 %v1090, %v2737
    %2739 = vmatprep.mubr.bf16.mxu0 %v798
    %2740 = vmatmul.mubr.bf16.gmra.mxu0 %v797
    %v2741 = vpop.f32.mrf.mxu0
    %v2742 = vadd.f32 %v1086, %v2741
    %v2743 = vpop.f32.mrf.mxu0
    %v2744 = vadd.f32 %v1090, %v2743
    %v2745 = vpop.f32.mrf.mxu0
    %v2746 = vadd.f32 %v1086, %v2745
    %v2747 = vpop.f32.mrf.mxu0
    %v2748 = vadd.f32 %v1090, %v2747
    %2749 = vdwg.mxu0
    %2750 = vmatprep.subr.bf16.mxu0 %v2058
    %2751 = vmatpush1.bf16.msra.mxu0 %v2057
    %2752 = vmatprep.subr.bf16.mxu0 %v2050
    %2753 = vmatpush1.bf16.msra.mxu0 %v2049
    %2754 = vmatprep.subr.bf16.mxu0 %v2042
    %2755 = vmatpush1.bf16.msra.mxu0 %v2041
    %2756 = vmatprep.subr.bf16.mxu0 %v2034
    %2757 = vmatpush1.bf16.msra.mxu0 %v2033
    %2758 = vmatprep.subr.bf16.mxu0 %v2026
    %2759 = vmatpush1.bf16.msra.mxu0 %v2025
    %2760 = vmatprep.subr.bf16.mxu0 %v2018
    %2761 = vmatpush1.bf16.msra.mxu0 %v2017
    %2762 = vmatprep.subr.bf16.mxu0 %v2010
    %2763 = vmatpush1.bf16.msra.mxu0 %v2009
    %2764 = vmatprep.subr.bf16.mxu0 %v2002
    %2765 = vmatpush1.bf16.msra.mxu0 %v2001
    %2766 = vmatprep.subr.bf16.mxu0 %v2122
    %2767 = vmatpush2.bf16.msra.mxu0 %v2121
    %2768 = vmatprep.subr.bf16.mxu0 %v2114
    %2769 = vmatpush2.bf16.msra.mxu0 %v2113
    %2770 = vmatprep.subr.bf16.mxu0 %v2106
    %2771 = vmatpush2.bf16.msra.mxu0 %v2105
    %2772 = vmatprep.subr.bf16.mxu0 %v2098
    %2773 = vmatpush2.bf16.msra.mxu0 %v2097
    %2774 = vmatprep.subr.bf16.mxu0 %v2090
    %2775 = vmatpush2.bf16.msra.mxu0 %v2089
    %2776 = vmatprep.subr.bf16.mxu0 %v2082
    %2777 = vmatpush2.bf16.msra.mxu0 %v2081
    %2778 = vmatprep.subr.bf16.mxu0 %v2074
    %2779 = vmatpush2.bf16.msra.mxu0 %v2073
    %2780 = vmatprep.subr.bf16.mxu0 %v2066
    %2781 = vmatpush2.bf16.msra.mxu0 %v2065
    %2782 = vmatprep.mubr.bf16.mxu0 %v796
    %2783 = vmatmul.mubr.bf16.gmra.mxu0 %v795
    %v2784 = vpop.f32.mrf.mxu0
    %v2785 = vadd.f32 %v2732, %v2784
    %v2786 = vpop.f32.mrf.mxu0
    %v2787 = vadd.f32 %v2734, %v2786
    %v2788 = vpop.f32.mrf.mxu0
    %v2789 = vadd.f32 %v2736, %v2788
    %v2790 = vpop.f32.mrf.mxu0
    %v2791 = vadd.f32 %v2738, %v2790
    %2792 = vmatprep.mubr.bf16.mxu0 %v800
    %2793 = vmatmul.mubr.bf16.gmra.mxu0 %v799
    %v2794 = vpop.f32.mrf.mxu0
    %v2795 = vadd.f32 %v2742, %v2794
    %v2796 = vpop.f32.mrf.mxu0
    %v2797 = vadd.f32 %v2744, %v2796
    %v2798 = vpop.f32.mrf.mxu0
    %v2799 = vadd.f32 %v2746, %v2798
    %v2800 = vpop.f32.mrf.mxu0
    %v2801 = vadd.f32 %v2748, %v2800
    %2802 = vdwg.mxu0
    %v2803 = vpack.c.bf16 %v2471, %v2467
    %v2804 = vpack.c.bf16 %v2473, %v2469
    %v2805 = vpack.c.bf16 %v2577, %v2573
    %v2806 = vpack.c.bf16 %v2579, %v2575
    %v2807 = vpack.c.bf16 %v2683, %v2679
    %v2808 = vpack.c.bf16 %v2685, %v2681
    %v2809 = vpack.c.bf16 %v2789, %v2785
    %v2810 = vpack.c.bf16 %v2791, %v2787
    %v2811 = vpack.c.bf16 %v2481, %v2477
    %v2812 = vpack.c.bf16 %v2483, %v2479
    %v2813 = vpack.c.bf16 %v2587, %v2583
    %v2814 = vpack.c.bf16 %v2589, %v2585
    %v2815 = vpack.c.bf16 %v2693, %v2689
    %v2816 = vpack.c.bf16 %v2695, %v2691
    %v2817 = vpack.c.bf16 %v2799, %v2795
    %v2818 = vpack.c.bf16 %v2801, %v2797
    %vm2819 = vcmp.gt.bf16.partialorder %v2803, 0
    %vm2820 = vcmp.gt.bf16.partialorder %v2804, 0
    %vm2821 = vcmp.gt.bf16.partialorder %v2805, 0
    %vm2822 = vcmp.gt.bf16.partialorder %v2806, 0
    %vm2823 = vcmp.gt.bf16.partialorder %v2807, 0
    %vm2824 = vcmp.gt.bf16.partialorder %v2808, 0
    %vm2825 = vcmp.gt.bf16.partialorder %v2809, 0
    %vm2826 = vcmp.gt.bf16.partialorder %v2810, 0
    %vm2827 = vcmp.gt.bf16.partialorder %v2811, 0
    %vm2828 = vcmp.gt.bf16.partialorder %v2812, 0
    %vm2829 = vcmp.gt.bf16.partialorder %v2813, 0
    %vm2830 = vcmp.gt.bf16.partialorder %v2814, 0
    %vm2831 = vcmp.gt.bf16.partialorder %v2815, 0
    %vm2832 = vcmp.gt.bf16.partialorder %v2816, 0
    %vm2833 = vcmp.gt.bf16.partialorder %v2817, 0
    %vm2834 = vcmp.gt.bf16.partialorder %v2818, 0
    %v2835 = vmul.bf16 %v2803, 1045249613
    %v2836 = vmul.bf16 %v2804, 1045249613
    %v2837 = vmul.bf16 %v2805, 1045249613
    %v2838 = vmul.bf16 %v2806, 1045249613
    %v2839 = vmul.bf16 %v2807, 1045249613
    %v2840 = vmul.bf16 %v2808, 1045249613
    %v2841 = vmul.bf16 %v2809, 1045249613
    %v2842 = vmul.bf16 %v2810, 1045249613
    %v2843 = vmul.bf16 %v2811, 1045249613
    %v2844 = vmul.bf16 %v2812, 1045249613
    %v2845 = vmul.bf16 %v2813, 1045249613
    %v2846 = vmul.bf16 %v2814, 1045249613
    %v2847 = vmul.bf16 %v2815, 1045249613
    %v2848 = vmul.bf16 %v2816, 1045249613
    %v2849 = vmul.bf16 %v2817, 1045249613
    %v2850 = vmul.bf16 %v2818, 1045249613
    %v2851 = vsel %vm2819, %v2803, %v2835
    %v2852 = vsel %vm2820, %v2804, %v2836
    %v2853 = vsel %vm2821, %v2805, %v2837
    %v2854 = vsel %vm2822, %v2806, %v2838
    %v2855 = vsel %vm2823, %v2807, %v2839
    %v2856 = vsel %vm2824, %v2808, %v2840
    %v2857 = vsel %vm2825, %v2809, %v2841
    %v2858 = vsel %vm2826, %v2810, %v2842
    %v2859 = vsel %vm2827, %v2811, %v2843
    %v2860 = vsel %vm2828, %v2812, %v2844
    %v2861 = vsel %vm2829, %v2813, %v2845
    %v2862 = vsel %vm2830, %v2814, %v2846
    %v2863 = vsel %vm2831, %v2815, %v2847
    %v2864 = vsel %vm2832, %v2816, %v2848
    %v2865 = vsel %vm2833, %v2817, %v2849
    %v2866 = vsel %vm2834, %v2818, %v2850
    %v2867 = vld [vmem:[#allocation11] sm:$0xf]
    %v2868 = vld [vmem:[#allocation11 + $0x4] sm:$0xf]
    %v2869 = vld [vmem:[#allocation11 + $0x8] sm:$0xf]
    %v2870 = vld [vmem:[#allocation11 + $0xc] sm:$0xf]
    %v2871 = vld [vmem:[#allocation11 + $0x10] sm:$0xf]
    %v2872 = vld [vmem:[#allocation11 + $0x14] sm:$0xf]
    %v2873 = vld [vmem:[#allocation11 + $0x18] sm:$0xf]
    %v2874 = vld [vmem:[#allocation11 + $0x1c] sm:$0xf]
    %v2875 = vld [vmem:[#allocation11 + $0x20] sm:$0xf]
    %v2876 = vld [vmem:[#allocation11 + $0x24] sm:$0xf]
    %v2877 = vld [vmem:[#allocation11 + $0x28] sm:$0xf]
    %v2878 = vld [vmem:[#allocation11 + $0x2c] sm:$0xf]
    %v2879 = vld [vmem:[#allocation11 + $0x30] sm:$0xf]
    %v2880 = vld [vmem:[#allocation11 + $0x34] sm:$0xf]
    %v2881 = vld [vmem:[#allocation11 + $0x38] sm:$0xf]
    %v2882 = vld [vmem:[#allocation11 + $0x3c] sm:$0xf]
    %v2883 = vld [vmem:[#allocation11 + $0x40] sm:$0xf]
    %v2884 = vld [vmem:[#allocation11 + $0x44] sm:$0xf]
    %v2885 = vld [vmem:[#allocation11 + $0x48] sm:$0xf]
    %v2886 = vld [vmem:[#allocation11 + $0x4c] sm:$0xf]
    %v2887 = vld [vmem:[#allocation11 + $0x50] sm:$0xf]
    %v2888 = vld [vmem:[#allocation11 + $0x54] sm:$0xf]
    %v2889 = vld [vmem:[#allocation11 + $0x58] sm:$0xf]
    %v2890 = vld [vmem:[#allocation11 + $0x5c] sm:$0xf]
    %v2891 = vld [vmem:[#allocation11 + $0x60] sm:$0xf]
    %v2892 = vld [vmem:[#allocation11 + $0x64] sm:$0xf]
    %v2893 = vld [vmem:[#allocation11 + $0x68] sm:$0xf]
    %v2894 = vld [vmem:[#allocation11 + $0x6c] sm:$0xf]
    %v2895 = vld [vmem:[#allocation11 + $0x70] sm:$0xf]
    %v2896 = vld [vmem:[#allocation11 + $0x74] sm:$0xf]
    %v2897 = vld [vmem:[#allocation11 + $0x78] sm:$0xf]
    %v2898 = vld [vmem:[#allocation11 + $0x7c] sm:$0xf]
    %v2899 = vld [vmem:[#allocation11 + $0x80] sm:$0xf]
    %v2900 = vld [vmem:[#allocation11 + $0x84] sm:$0xf]
    %v2901 = vld [vmem:[#allocation11 + $0x88] sm:$0xf]
    %v2902 = vld [vmem:[#allocation11 + $0x8c] sm:$0xf]
    %v2903 = vld [vmem:[#allocation11 + $0x90] sm:$0xf]
    %v2904 = vld [vmem:[#allocation11 + $0x94] sm:$0xf]
    %v2905 = vld [vmem:[#allocation11 + $0x98] sm:$0xf]
    %v2906 = vld [vmem:[#allocation11 + $0x9c] sm:$0xf]
    %v2907 = vld [vmem:[#allocation11 + $0xa0] sm:$0xf]
    %v2908 = vld [vmem:[#allocation11 + $0xa4] sm:$0xf]
    %v2909 = vld [vmem:[#allocation11 + $0xa8] sm:$0xf]
    %v2910 = vld [vmem:[#allocation11 + $0xac] sm:$0xf]
    %v2911 = vld [vmem:[#allocation11 + $0xb0] sm:$0xf]
    %v2912 = vld [vmem:[#allocation11 + $0xb4] sm:$0xf]
    %v2913 = vld [vmem:[#allocation11 + $0xb8] sm:$0xf]
    %v2914 = vld [vmem:[#allocation11 + $0xbc] sm:$0xf]
    %v2915 = vld [vmem:[#allocation11 + $0xc0] sm:$0xf]
    %v2916 = vld [vmem:[#allocation11 + $0xc4] sm:$0xf]
    %v2917 = vld [vmem:[#allocation11 + $0xc8] sm:$0xf]
    %v2918 = vld [vmem:[#allocation11 + $0xcc] sm:$0xf]
    %v2919 = vld [vmem:[#allocation11 + $0xd0] sm:$0xf]
    %v2920 = vld [vmem:[#allocation11 + $0xd4] sm:$0xf]
    %v2921 = vld [vmem:[#allocation11 + $0xd8] sm:$0xf]
    %v2922 = vld [vmem:[#allocation11 + $0xdc] sm:$0xf]
    %v2923 = vld [vmem:[#allocation11 + $0xe0] sm:$0xf]
    %v2924 = vld [vmem:[#allocation11 + $0xe4] sm:$0xf]
    %v2925 = vld [vmem:[#allocation11 + $0xe8] sm:$0xf]
    %v2926 = vld [vmem:[#allocation11 + $0xec] sm:$0xf]
    %v2927 = vld [vmem:[#allocation11 + $0xf0] sm:$0xf]
    %v2928 = vld [vmem:[#allocation11 + $0xf4] sm:$0xf]
    %v2929 = vld [vmem:[#allocation11 + $0xf8] sm:$0xf]
    %v2930 = vld [vmem:[#allocation11 + $0xfc] sm:$0xf]
    %v2931 = vld [vmem:[#allocation11 + $0x100] sm:$0xf]
    %v2932 = vld [vmem:[#allocation11 + $0x104] sm:$0xf]
    %v2933 = vld [vmem:[#allocation11 + $0x108] sm:$0xf]
    %v2934 = vld [vmem:[#allocation11 + $0x10c] sm:$0xf]
    %v2935 = vld [vmem:[#allocation11 + $0x110] sm:$0xf]
    %v2936 = vld [vmem:[#allocation11 + $0x114] sm:$0xf]
    %v2937 = vld [vmem:[#allocation11 + $0x118] sm:$0xf]
    %v2938 = vld [vmem:[#allocation11 + $0x11c] sm:$0xf]
    %v2939 = vld [vmem:[#allocation11 + $0x120] sm:$0xf]
    %v2940 = vld [vmem:[#allocation11 + $0x124] sm:$0xf]
    %v2941 = vld [vmem:[#allocation11 + $0x128] sm:$0xf]
    %v2942 = vld [vmem:[#allocation11 + $0x12c] sm:$0xf]
    %v2943 = vld [vmem:[#allocation11 + $0x130] sm:$0xf]
    %v2944 = vld [vmem:[#allocation11 + $0x134] sm:$0xf]
    %v2945 = vld [vmem:[#allocation11 + $0x138] sm:$0xf]
    %v2946 = vld [vmem:[#allocation11 + $0x13c] sm:$0xf]
    %v2947 = vld [vmem:[#allocation11 + $0x140] sm:$0xf]
    %v2948 = vld [vmem:[#allocation11 + $0x144] sm:$0xf]
    %v2949 = vld [vmem:[#allocation11 + $0x148] sm:$0xf]
    %v2950 = vld [vmem:[#allocation11 + $0x14c] sm:$0xf]
    %v2951 = vld [vmem:[#allocation11 + $0x150] sm:$0xf]
    %v2952 = vld [vmem:[#allocation11 + $0x154] sm:$0xf]
    %v2953 = vld [vmem:[#allocation11 + $0x158] sm:$0xf]
    %v2954 = vld [vmem:[#allocation11 + $0x15c] sm:$0xf]
    %v2955 = vld [vmem:[#allocation11 + $0x160] sm:$0xf]
    %v2956 = vld [vmem:[#allocation11 + $0x164] sm:$0xf]
    %v2957 = vld [vmem:[#allocation11 + $0x168] sm:$0xf]
    %v2958 = vld [vmem:[#allocation11 + $0x16c] sm:$0xf]
    %v2959 = vld [vmem:[#allocation11 + $0x170] sm:$0xf]
    %v2960 = vld [vmem:[#allocation11 + $0x174] sm:$0xf]
    %v2961 = vld [vmem:[#allocation11 + $0x178] sm:$0xf]
    %v2962 = vld [vmem:[#allocation11 + $0x17c] sm:$0xf]
    %v2963 = vld [vmem:[#allocation11 + $0x180] sm:$0xf]
    %v2964 = vld [vmem:[#allocation11 + $0x184] sm:$0xf]
    %v2965 = vld [vmem:[#allocation11 + $0x188] sm:$0xf]
    %v2966 = vld [vmem:[#allocation11 + $0x18c] sm:$0xf]
    %v2967 = vld [vmem:[#allocation11 + $0x190] sm:$0xf]
    %v2968 = vld [vmem:[#allocation11 + $0x194] sm:$0xf]
    %v2969 = vld [vmem:[#allocation11 + $0x198] sm:$0xf]
    %v2970 = vld [vmem:[#allocation11 + $0x19c] sm:$0xf]
    %v2971 = vld [vmem:[#allocation11 + $0x1a0] sm:$0xf]
    %v2972 = vld [vmem:[#allocation11 + $0x1a4] sm:$0xf]
    %v2973 = vld [vmem:[#allocation11 + $0x1a8] sm:$0xf]
    %v2974 = vld [vmem:[#allocation11 + $0x1ac] sm:$0xf]
    %v2975 = vld [vmem:[#allocation11 + $0x1b0] sm:$0xf]
    %v2976 = vld [vmem:[#allocation11 + $0x1b4] sm:$0xf]
    %v2977 = vld [vmem:[#allocation11 + $0x1b8] sm:$0xf]
    %v2978 = vld [vmem:[#allocation11 + $0x1bc] sm:$0xf]
    %v2979 = vld [vmem:[#allocation11 + $0x1c0] sm:$0xf]
    %v2980 = vld [vmem:[#allocation11 + $0x1c4] sm:$0xf]
    %v2981 = vld [vmem:[#allocation11 + $0x1c8] sm:$0xf]
    %v2982 = vld [vmem:[#allocation11 + $0x1cc] sm:$0xf]
    %v2983 = vld [vmem:[#allocation11 + $0x1d0] sm:$0xf]
    %v2984 = vld [vmem:[#allocation11 + $0x1d4] sm:$0xf]
    %v2985 = vld [vmem:[#allocation11 + $0x1d8] sm:$0xf]
    %v2986 = vld [vmem:[#allocation11 + $0x1dc] sm:$0xf]
    %v2987 = vld [vmem:[#allocation11 + $0x1e0] sm:$0xf]
    %v2988 = vld [vmem:[#allocation11 + $0x1e4] sm:$0xf]
    %v2989 = vld [vmem:[#allocation11 + $0x1e8] sm:$0xf]
    %v2990 = vld [vmem:[#allocation11 + $0x1ec] sm:$0xf]
    %v2991 = vld [vmem:[#allocation11 + $0x1f0] sm:$0xf]
    %v2992 = vld [vmem:[#allocation11 + $0x1f4] sm:$0xf]
    %v2993 = vld [vmem:[#allocation11 + $0x1f8] sm:$0xf]
    %v2994 = vld [vmem:[#allocation11 + $0x1fc] sm:$0xf]
    %v2995 = vld [vmem:[%s8] sm:$0x1]
    %v2997 = vlaneseq
    %v2998 = vshrl.u32 %v2997, 7
    %v2999 = vsub.s32 0, %v2998
    %v3000 = vrot.slane %v2995, %v2999
    %v3130 = vunpack.c.l.b16 %v2867
    %v3131 = vunpack.c.l.b16 %v2868
    %v3132 = vunpack.c.l.b16 %v2869
    %v3133 = vunpack.c.l.b16 %v2870
    %v3134 = vunpack.c.l.b16 %v2871
    %v3135 = vunpack.c.l.b16 %v2872
    %v3136 = vunpack.c.l.b16 %v2873
    %v3137 = vunpack.c.l.b16 %v2874
    %v3138 = vunpack.c.l.b16 %v2875
    %v3139 = vunpack.c.l.b16 %v2876
    %v3140 = vunpack.c.l.b16 %v2877
    %v3141 = vunpack.c.l.b16 %v2878
    %v3142 = vunpack.c.l.b16 %v2879
    %v3143 = vunpack.c.l.b16 %v2880
    %v3144 = vunpack.c.l.b16 %v2881
    %v3145 = vunpack.c.l.b16 %v2882
    %v3146 = vunpack.c.l.b16 %v2883
    %v3147 = vunpack.c.l.b16 %v2884
    %v3148 = vunpack.c.l.b16 %v2885
    %v3149 = vunpack.c.l.b16 %v2886
    %v3150 = vunpack.c.l.b16 %v2887
    %v3151 = vunpack.c.l.b16 %v2888
    %v3152 = vunpack.c.l.b16 %v2889
    %v3153 = vunpack.c.l.b16 %v2890
    %v3154 = vunpack.c.l.b16 %v2891
    %v3155 = vunpack.c.l.b16 %v2892
    %v3156 = vunpack.c.l.b16 %v2893
    %v3157 = vunpack.c.l.b16 %v2894
    %v3158 = vunpack.c.l.b16 %v2895
    %v3159 = vunpack.c.l.b16 %v2896
    %v3160 = vunpack.c.l.b16 %v2897
    %v3161 = vunpack.c.l.b16 %v2898
    %v3162 = vunpack.c.l.b16 %v2899
    %v3163 = vunpack.c.l.b16 %v2900
    %v3164 = vunpack.c.l.b16 %v2901
    %v3165 = vunpack.c.l.b16 %v2902
    %v3166 = vunpack.c.l.b16 %v2903
    %v3167 = vunpack.c.l.b16 %v2904
    %v3168 = vunpack.c.l.b16 %v2905
    %v3169 = vunpack.c.l.b16 %v2906
    %v3170 = vunpack.c.l.b16 %v2907
    %v3171 = vunpack.c.l.b16 %v2908
    %v3172 = vunpack.c.l.b16 %v2909
    %v3173 = vunpack.c.l.b16 %v2910
    %v3174 = vunpack.c.l.b16 %v2911
    %v3175 = vunpack.c.l.b16 %v2912
    %v3176 = vunpack.c.l.b16 %v2913
    %v3177 = vunpack.c.l.b16 %v2914
    %v3178 = vunpack.c.l.b16 %v2915
    %v3179 = vunpack.c.l.b16 %v2916
    %v3180 = vunpack.c.l.b16 %v2917
    %v3181 = vunpack.c.l.b16 %v2918
    %v3182 = vunpack.c.l.b16 %v2919
    %v3183 = vunpack.c.l.b16 %v2920
    %v3184 = vunpack.c.l.b16 %v2921
    %v3185 = vunpack.c.l.b16 %v2922
    %v3186 = vunpack.c.l.b16 %v2923
    %v3187 = vunpack.c.l.b16 %v2924
    %v3188 = vunpack.c.l.b16 %v2925
    %v3189 = vunpack.c.l.b16 %v2926
    %v3190 = vunpack.c.l.b16 %v2927
    %v3191 = vunpack.c.l.b16 %v2928
    %v3192 = vunpack.c.l.b16 %v2929
    %v3193 = vunpack.c.l.b16 %v2930
    %v3194 = vunpack.c.l.b16 %v2931
    %v3195 = vunpack.c.l.b16 %v2932
    %v3196 = vunpack.c.l.b16 %v2933
    %v3197 = vunpack.c.l.b16 %v2934
    %v3198 = vunpack.c.l.b16 %v2935
    %v3199 = vunpack.c.l.b16 %v2936
    %v3200 = vunpack.c.l.b16 %v2937
    %v3201 = vunpack.c.l.b16 %v2938
    %v3202 = vunpack.c.l.b16 %v2939
    %v3203 = vunpack.c.l.b16 %v2940
    %v3204 = vunpack.c.l.b16 %v2941
    %v3205 = vunpack.c.l.b16 %v2942
    %v3206 = vunpack.c.l.b16 %v2943
    %v3207 = vunpack.c.l.b16 %v2944
    %v3208 = vunpack.c.l.b16 %v2945
    %v3209 = vunpack.c.l.b16 %v2946
    %v3210 = vunpack.c.l.b16 %v2947
    %v3211 = vunpack.c.l.b16 %v2948
    %v3212 = vunpack.c.l.b16 %v2949
    %v3213 = vunpack.c.l.b16 %v2950
    %v3214 = vunpack.c.l.b16 %v2951
    %v3215 = vunpack.c.l.b16 %v2952
    %v3216 = vunpack.c.l.b16 %v2953
    %v3217 = vunpack.c.l.b16 %v2954
    %v3218 = vunpack.c.l.b16 %v2955
    %v3219 = vunpack.c.l.b16 %v2956
    %v3220 = vunpack.c.l.b16 %v2957
    %v3221 = vunpack.c.l.b16 %v2958
    %v3222 = vunpack.c.l.b16 %v2959
    %v3223 = vunpack.c.l.b16 %v2960
    %v3224 = vunpack.c.l.b16 %v2961
    %v3225 = vunpack.c.l.b16 %v2962
    %v3226 = vunpack.c.l.b16 %v2963
    %v3227 = vunpack.c.l.b16 %v2964
    %v3228 = vunpack.c.l.b16 %v2965
    %v3229 = vunpack.c.l.b16 %v2966
    %v3230 = vunpack.c.l.b16 %v2967
    %v3231 = vunpack.c.l.b16 %v2968
    %v3232 = vunpack.c.l.b16 %v2969
    %v3233 = vunpack.c.l.b16 %v2970
    %v3234 = vunpack.c.l.b16 %v2971
    %v3235 = vunpack.c.l.b16 %v2972
    %v3236 = vunpack.c.l.b16 %v2973
    %v3237 = vunpack.c.l.b16 %v2974
    %v3238 = vunpack.c.l.b16 %v2975
    %v3239 = vunpack.c.l.b16 %v2976
    %v3240 = vunpack.c.l.b16 %v2977
    %v3241 = vunpack.c.l.b16 %v2978
    %v3242 = vunpack.c.l.b16 %v2979
    %v3243 = vunpack.c.l.b16 %v2980
    %v3244 = vunpack.c.l.b16 %v2981
    %v3245 = vunpack.c.l.b16 %v2982
    %v3246 = vunpack.c.l.b16 %v2983
    %v3247 = vunpack.c.l.b16 %v2984
    %v3248 = vunpack.c.l.b16 %v2985
    %v3249 = vunpack.c.l.b16 %v2986
    %v3250 = vunpack.c.l.b16 %v2987
    %v3251 = vunpack.c.l.b16 %v2988
    %v3252 = vunpack.c.l.b16 %v2989
    %v3253 = vunpack.c.l.b16 %v2990
    %v3254 = vunpack.c.l.b16 %v2991
    %v3255 = vunpack.c.l.b16 %v2992
    %v3256 = vunpack.c.l.b16 %v2993
    %v3257 = vunpack.c.l.b16 %v2994
    %v3258 = vpack.c.b16 %v3131, %v3130
    %v3259 = vpack.c.b16 %v3133, %v3132
    %v3260 = vpack.c.b16 %v3135, %v3134
    %v3261 = vpack.c.b16 %v3137, %v3136
    %v3262 = vpack.c.b16 %v3139, %v3138
    %v3263 = vpack.c.b16 %v3141, %v3140
    %v3264 = vpack.c.b16 %v3143, %v3142
    %v3265 = vpack.c.b16 %v3145, %v3144
    %v3266 = vpack.c.b16 %v3147, %v3146
    %v3267 = vpack.c.b16 %v3149, %v3148
    %v3268 = vpack.c.b16 %v3151, %v3150
    %v3269 = vpack.c.b16 %v3153, %v3152
    %v3270 = vpack.c.b16 %v3155, %v3154
    %v3271 = vpack.c.b16 %v3157, %v3156
    %v3272 = vpack.c.b16 %v3159, %v3158
    %v3273 = vpack.c.b16 %v3161, %v3160
    %v3274 = vpack.c.b16 %v3163, %v3162
    %v3275 = vpack.c.b16 %v3165, %v3164
    %v3276 = vpack.c.b16 %v3167, %v3166
    %v3277 = vpack.c.b16 %v3169, %v3168
    %v3278 = vpack.c.b16 %v3171, %v3170
    %v3279 = vpack.c.b16 %v3173, %v3172
    %v3280 = vpack.c.b16 %v3175, %v3174
    %v3281 = vpack.c.b16 %v3177, %v3176
    %v3282 = vpack.c.b16 %v3179, %v3178
    %v3283 = vpack.c.b16 %v3181, %v3180
    %v3284 = vpack.c.b16 %v3183, %v3182
    %v3285 = vpack.c.b16 %v3185, %v3184
    %v3286 = vpack.c.b16 %v3187, %v3186
    %v3287 = vpack.c.b16 %v3189, %v3188
    %v3288 = vpack.c.b16 %v3191, %v3190
    %v3289 = vpack.c.b16 %v3193, %v3192
    %v3290 = vpack.c.b16 %v3195, %v3194
    %v3291 = vpack.c.b16 %v3197, %v3196
    %v3292 = vpack.c.b16 %v3199, %v3198
    %v3293 = vpack.c.b16 %v3201, %v3200
    %v3294 = vpack.c.b16 %v3203, %v3202
    %v3295 = vpack.c.b16 %v3205, %v3204
    %v3296 = vpack.c.b16 %v3207, %v3206
    %v3297 = vpack.c.b16 %v3209, %v3208
    %v3298 = vpack.c.b16 %v3211, %v3210
    %v3299 = vpack.c.b16 %v3213, %v3212
    %v3300 = vpack.c.b16 %v3215, %v3214
    %v3301 = vpack.c.b16 %v3217, %v3216
    %v3302 = vpack.c.b16 %v3219, %v3218
    %v3303 = vpack.c.b16 %v3221, %v3220
    %v3304 = vpack.c.b16 %v3223, %v3222
    %v3305 = vpack.c.b16 %v3225, %v3224
    %v3306 = vpack.c.b16 %v3227, %v3226
    %v3307 = vpack.c.b16 %v3229, %v3228
    %v3308 = vpack.c.b16 %v3231, %v3230
    %v3309 = vpack.c.b16 %v3233, %v3232
    %v3310 = vpack.c.b16 %v3235, %v3234
    %v3311 = vpack.c.b16 %v3237, %v3236
    %v3312 = vpack.c.b16 %v3239, %v3238
    %v3313 = vpack.c.b16 %v3241, %v3240
    %v3314 = vpack.c.b16 %v3243, %v3242
    %v3315 = vpack.c.b16 %v3245, %v3244
    %v3316 = vpack.c.b16 %v3247, %v3246
    %v3317 = vpack.c.b16 %v3249, %v3248
    %v3318 = vpack.c.b16 %v3251, %v3250
    %v3319 = vpack.c.b16 %v3253, %v3252
    %v3320 = vpack.c.b16 %v3255, %v3254
    %v3321 = vpack.c.b16 %v3257, %v3256
    %3386 = vmatprep.subr.bf16.mxu0 0
    %3387 = vmatpush1.bf16.msra.mxu0 %v3265
    %3388 = vmatprep.subr.bf16.mxu0 0
    %3389 = vmatpush1.bf16.msra.mxu0 %v3264
    %3390 = vmatprep.subr.bf16.mxu0 0
    %3391 = vmatpush1.bf16.msra.mxu0 %v3263
    %3392 = vmatprep.subr.bf16.mxu0 0
    %3393 = vmatpush1.bf16.msra.mxu0 %v3262
    %3394 = vmatprep.subr.bf16.mxu0 0
    %3395 = vmatpush1.bf16.msra.mxu0 %v3261
    %3396 = vmatprep.subr.bf16.mxu0 0
    %3397 = vmatpush1.bf16.msra.mxu0 %v3260
    %3398 = vmatprep.subr.bf16.mxu0 0
    %3399 = vmatpush1.bf16.msra.mxu0 %v3259
    %3400 = vmatprep.subr.bf16.mxu0 0
    %3401 = vmatpush1.bf16.msra.mxu0 %v3258
    %3402 = vmatprep.subr.bf16.mxu0 0
    %3403 = vmatpush2.bf16.msra.mxu0 %v3273
    %3404 = vmatprep.subr.bf16.mxu0 0
    %3405 = vmatpush2.bf16.msra.mxu0 %v3272
    %3406 = vmatprep.subr.bf16.mxu0 0
    %3407 = vmatpush2.bf16.msra.mxu0 %v3271
    %3408 = vmatprep.subr.bf16.mxu0 0
    %3409 = vmatpush2.bf16.msra.mxu0 %v3270
    %3410 = vmatprep.subr.bf16.mxu0 0
    %3411 = vmatpush2.bf16.msra.mxu0 %v3269
    %3412 = vmatprep.subr.bf16.mxu0 0
    %3413 = vmatpush2.bf16.msra.mxu0 %v3268
    %3414 = vmatprep.subr.bf16.mxu0 0
    %3415 = vmatpush2.bf16.msra.mxu0 %v3267
    %3416 = vmatprep.subr.bf16.mxu0 0
    %3417 = vmatpush2.bf16.msra.mxu0 %v3266
    %3418 = vmatprep.mubr.bf16.mxu0 %v2852
    %3419 = vmatmul.mubr.bf16.gmra.mxu0 %v2851
    %v3420 = vpop.f32.mrf.mxu0
    %v3421 = vadd.f32 %v3000, %v3420
    %v3422 = vpop.f32.mrf.mxu0
    %v3423 = vpop.f32.mrf.mxu0
    %v3424 = vadd.f32 %v3000, %v3423
    %v3425 = vpop.f32.mrf.mxu0
    %3426 = vmatprep.mubr.bf16.mxu0 %v2860
    %3427 = vmatmul.mubr.bf16.gmra.mxu0 %v2859
    %v3428 = vpop.f32.mrf.mxu0
    %v3429 = vadd.f32 %v3000, %v3428
    %v3430 = vpop.f32.mrf.mxu0
    %v3431 = vpop.f32.mrf.mxu0
    %v3432 = vadd.f32 %v3000, %v3431
    %v3433 = vpop.f32.mrf.mxu0
    %3434 = vdwg.mxu0
    %3435 = vmatprep.subr.bf16.mxu0 0
    %3436 = vmatpush1.bf16.msra.mxu0 %v3281
    %3437 = vmatprep.subr.bf16.mxu0 0
    %3438 = vmatpush1.bf16.msra.mxu0 %v3280
    %3439 = vmatprep.subr.bf16.mxu0 0
    %3440 = vmatpush1.bf16.msra.mxu0 %v3279
    %3441 = vmatprep.subr.bf16.mxu0 0
    %3442 = vmatpush1.bf16.msra.mxu0 %v3278
    %3443 = vmatprep.subr.bf16.mxu0 0
    %3444 = vmatpush1.bf16.msra.mxu0 %v3277
    %3445 = vmatprep.subr.bf16.mxu0 0
    %3446 = vmatpush1.bf16.msra.mxu0 %v3276
    %3447 = vmatprep.subr.bf16.mxu0 0
    %3448 = vmatpush1.bf16.msra.mxu0 %v3275
    %3449 = vmatprep.subr.bf16.mxu0 0
    %3450 = vmatpush1.bf16.msra.mxu0 %v3274
    %3451 = vmatprep.subr.bf16.mxu0 0
    %3452 = vmatpush2.bf16.msra.mxu0 %v3289
    %3453 = vmatprep.subr.bf16.mxu0 0
    %3454 = vmatpush2.bf16.msra.mxu0 %v3288
    %3455 = vmatprep.subr.bf16.mxu0 0
    %3456 = vmatpush2.bf16.msra.mxu0 %v3287
    %3457 = vmatprep.subr.bf16.mxu0 0
    %3458 = vmatpush2.bf16.msra.mxu0 %v3286
    %3459 = vmatprep.subr.bf16.mxu0 0
    %3460 = vmatpush2.bf16.msra.mxu0 %v3285
    %3461 = vmatprep.subr.bf16.mxu0 0
    %3462 = vmatpush2.bf16.msra.mxu0 %v3284
    %3463 = vmatprep.subr.bf16.mxu0 0
    %3464 = vmatpush2.bf16.msra.mxu0 %v3283
    %3465 = vmatprep.subr.bf16.mxu0 0
    %3466 = vmatpush2.bf16.msra.mxu0 %v3282
    %3467 = vmatprep.mubr.bf16.mxu0 %v2854
    %3468 = vmatmul.mubr.bf16.gmra.mxu0 %v2853
    %v3469 = vpop.f32.mrf.mxu0
    %v3470 = vadd.f32 %v3421, %v3469
    %v3471 = vpop.f32.mrf.mxu0
    %v3472 = vpop.f32.mrf.mxu0
    %v3473 = vadd.f32 %v3424, %v3472
    %v3474 = vpop.f32.mrf.mxu0
    %3475 = vmatprep.mubr.bf16.mxu0 %v2862
    %3476 = vmatmul.mubr.bf16.gmra.mxu0 %v2861
    %v3477 = vpop.f32.mrf.mxu0
    %v3478 = vadd.f32 %v3429, %v3477
    %v3479 = vpop.f32.mrf.mxu0
    %v3480 = vpop.f32.mrf.mxu0
    %v3481 = vadd.f32 %v3432, %v3480
    %v3482 = vpop.f32.mrf.mxu0
    %3483 = vdwg.mxu0
    %3484 = vmatprep.subr.bf16.mxu0 0
    %3485 = vmatpush1.bf16.msra.mxu0 %v3297
    %3486 = vmatprep.subr.bf16.mxu0 0
    %3487 = vmatpush1.bf16.msra.mxu0 %v3296
    %3488 = vmatprep.subr.bf16.mxu0 0
    %3489 = vmatpush1.bf16.msra.mxu0 %v3295
    %3490 = vmatprep.subr.bf16.mxu0 0
    %3491 = vmatpush1.bf16.msra.mxu0 %v3294
    %3492 = vmatprep.subr.bf16.mxu0 0
    %3493 = vmatpush1.bf16.msra.mxu0 %v3293
    %3494 = vmatprep.subr.bf16.mxu0 0
    %3495 = vmatpush1.bf16.msra.mxu0 %v3292
    %3496 = vmatprep.subr.bf16.mxu0 0
    %3497 = vmatpush1.bf16.msra.mxu0 %v3291
    %3498 = vmatprep.subr.bf16.mxu0 0
    %3499 = vmatpush1.bf16.msra.mxu0 %v3290
    %3500 = vmatprep.subr.bf16.mxu0 0
    %3501 = vmatpush2.bf16.msra.mxu0 %v3305
    %3502 = vmatprep.subr.bf16.mxu0 0
    %3503 = vmatpush2.bf16.msra.mxu0 %v3304
    %3504 = vmatprep.subr.bf16.mxu0 0
    %3505 = vmatpush2.bf16.msra.mxu0 %v3303
    %3506 = vmatprep.subr.bf16.mxu0 0
    %3507 = vmatpush2.bf16.msra.mxu0 %v3302
    %3508 = vmatprep.subr.bf16.mxu0 0
    %3509 = vmatpush2.bf16.msra.mxu0 %v3301
    %3510 = vmatprep.subr.bf16.mxu0 0
    %3511 = vmatpush2.bf16.msra.mxu0 %v3300
    %3512 = vmatprep.subr.bf16.mxu0 0
    %3513 = vmatpush2.bf16.msra.mxu0 %v3299
    %3514 = vmatprep.subr.bf16.mxu0 0
    %3515 = vmatpush2.bf16.msra.mxu0 %v3298
    %3516 = vmatprep.mubr.bf16.mxu0 %v2856
    %3517 = vmatmul.mubr.bf16.gmra.mxu0 %v2855
    %v3518 = vpop.f32.mrf.mxu0
    %v3519 = vadd.f32 %v3470, %v3518
    %v3520 = vpop.f32.mrf.mxu0
    %v3521 = vpop.f32.mrf.mxu0
    %v3522 = vadd.f32 %v3473, %v3521
    %v3523 = vpop.f32.mrf.mxu0
    %3524 = vmatprep.mubr.bf16.mxu0 %v2864
    %3525 = vmatmul.mubr.bf16.gmra.mxu0 %v2863
    %v3526 = vpop.f32.mrf.mxu0
    %v3527 = vadd.f32 %v3478, %v3526
    %v3528 = vpop.f32.mrf.mxu0
    %v3529 = vpop.f32.mrf.mxu0
    %v3530 = vadd.f32 %v3481, %v3529
    %v3531 = vpop.f32.mrf.mxu0
    %3532 = vdwg.mxu0
    %3533 = vmatprep.subr.bf16.mxu0 0
    %3534 = vmatpush1.bf16.msra.mxu0 %v3313
    %3535 = vmatprep.subr.bf16.mxu0 0
    %3536 = vmatpush1.bf16.msra.mxu0 %v3312
    %3537 = vmatprep.subr.bf16.mxu0 0
    %3538 = vmatpush1.bf16.msra.mxu0 %v3311
    %3539 = vmatprep.subr.bf16.mxu0 0
    %3540 = vmatpush1.bf16.msra.mxu0 %v3310
    %3541 = vmatprep.subr.bf16.mxu0 0
    %3542 = vmatpush1.bf16.msra.mxu0 %v3309
    %3543 = vmatprep.subr.bf16.mxu0 0
    %3544 = vmatpush1.bf16.msra.mxu0 %v3308
    %3545 = vmatprep.subr.bf16.mxu0 0
    %3546 = vmatpush1.bf16.msra.mxu0 %v3307
    %3547 = vmatprep.subr.bf16.mxu0 0
    %3548 = vmatpush1.bf16.msra.mxu0 %v3306
    %3549 = vmatprep.subr.bf16.mxu0 0
    %3550 = vmatpush2.bf16.msra.mxu0 %v3321
    %3551 = vmatprep.subr.bf16.mxu0 0
    %3552 = vmatpush2.bf16.msra.mxu0 %v3320
    %3553 = vmatprep.subr.bf16.mxu0 0
    %3554 = vmatpush2.bf16.msra.mxu0 %v3319
    %3555 = vmatprep.subr.bf16.mxu0 0
    %3556 = vmatpush2.bf16.msra.mxu0 %v3318
    %3557 = vmatprep.subr.bf16.mxu0 0
    %3558 = vmatpush2.bf16.msra.mxu0 %v3317
    %3559 = vmatprep.subr.bf16.mxu0 0
    %3560 = vmatpush2.bf16.msra.mxu0 %v3316
    %3561 = vmatprep.subr.bf16.mxu0 0
    %3562 = vmatpush2.bf16.msra.mxu0 %v3315
    %3563 = vmatprep.subr.bf16.mxu0 0
    %3564 = vmatpush2.bf16.msra.mxu0 %v3314
    %3565 = vmatprep.mubr.bf16.mxu0 %v2858
    %3566 = vmatmul.mubr.bf16.gmra.mxu0 %v2857
    %v3567 = vpop.f32.mrf.mxu0
    %v3568 = vadd.f32 %v3519, %v3567
    %v3569 = vpop.f32.mrf.mxu0
    %v3570 = vpop.f32.mrf.mxu0
    %v3571 = vadd.f32 %v3522, %v3570
    %v3572 = vpop.f32.mrf.mxu0
    %3573 = vmatprep.mubr.bf16.mxu0 %v2866
    %3574 = vmatmul.mubr.bf16.gmra.mxu0 %v2865
    %v3575 = vpop.f32.mrf.mxu0
    %v3576 = vadd.f32 %v3527, %v3575
    %v3577 = vpop.f32.mrf.mxu0
    %v3578 = vpop.f32.mrf.mxu0
    %v3579 = vadd.f32 %v3530, %v3578
    %v3580 = vpop.f32.mrf.mxu0
    %3581 = vdwg.mxu0
    %v3582 = vtanh.pop %v3568
    %v3583 = vtanh.pop %v3571
    %v3584 = vtanh.pop %v3576
    %v3585 = vtanh.pop %v3579
    %v3586 = vpack.c.bf16 %v3583, %v3582
    %v3587 = vpack.c.bf16 %v3585, %v3584
    %v3590 = vunpack.c.l.b16 %v3586
    %v3591 = vunpack.c.h.b16 %v3586
    %v3592 = vunpack.c.l.b16 %v3587
    %v3593 = vunpack.c.h.b16 %v3587
    %v3594 = vpack.c.b16 %v3590, %v3590
    %v3595 = vpack.c.b16 %v3591, %v3591
    %v3596 = vpack.c.b16 %v3592, %v3592
    %v3597 = vpack.c.b16 %v3593, %v3593
    %3602 = vst [vmem:[#allocation13] sm:$0xf] %v3594
    %3603 = vst [vmem:[#allocation13 + $0x4] sm:$0xf] %v3595
    %3604 = vst [vmem:[#allocation13 + $0x8] sm:$0xf] %v3596
    %3605 = vst [vmem:[#allocation13 + $0xc] sm:$0xf] %v3597
    // Predicated region
    $region62: #{tpu_custom_call.1} parent=1 // pred_check
      _
    $region63: #{tpu_custom_call.1} parent=1 // pred_check_branch
      %3607 = sbr.rel (0) target = $region65
    $region64: #{tpu_custom_call.1} parent=1 // pred_region
      %s3609 = ssub.s32 256, 256
      %3610 = vsyncadd [#allocation4], %s3609
      %s3611 = sshll.u32 [#allocation13], 4
      %s3612 = int_to_ptr.vmem [resolvable:$true] %s3611
      %3617 = dma.vmem_to_hbm [thread:$0]  %s3612, 256, %s9, [#allocation4], 64, 64, 4
    $region65: #{tpu_custom_call.1} parent=1 // pred_fallthru
      _
    // Predicated region
    $region66: #{tpu_custom_call.1} parent=1 // pred_check
      _
    $region67: #{tpu_custom_call.1} parent=1 // pred_check_branch
      %3619 = sbr.rel (0) target = $region69
    $region68: #{tpu_custom_call.1} parent=1 // pred_region
      %3620 = dma.done [#allocation4], 256
    $region69: #{tpu_custom_call.1} parent=1 // pred_fallthru
      _
    %3621 = vsyncpa [#allocation3], 1
    %3622 = vsyncpa [#allocation6], 1
    %3623 = vsyncpa [#allocation9], 1
    %3624 = vsyncpa [#allocation12], 1
    %3625 = vsyncpa [#allocation4], 1

</llo_original>
